<compile_context>
chip_gen: v6e
topology: v6e:2x2x1
jax: 0.10.0
libtpu: 0.0.40
codegen_flags: <defaults>
</compile_context>

<pallas_src>
import functools

import jax
import jax.numpy as jnp
import numpy as np
from jax import lax
from jax.experimental import pallas as pl
from jax.experimental.pallas import tpu as pltpu

BN_EPS = 1e-5
_COL0 = 16   # interior column offset in the mid-activation scratch (bf16 tile aligned)


# ----------------------------------------------------------------------------
# Fused DoubleConv Pallas kernel (a block of `bpi` images per grid step)
# ----------------------------------------------------------------------------
def _double_conv_kernel(split_conv2, p1_ref, w1_ref, s1_ref, b1_ref,
                        w2_ref, s2_ref, b2_ref, o_ref, midp_ref, acc_ref=None):
    """Fused (conv3x3 -> BN -> ReLU) * 2.

    p1_ref  : (bpi, H*W, Kpad)   bf16  conv1 im2col patches, K zero-padded to 128
    w1_ref  : (Kpad, Cmid)       bf16  conv1 weights, (dy,dx,cin) row order, K padded
    s1_ref  : (1, Cmid)          f32   folded BN1 scale
    b1_ref  : (1, Cmid)          f32   folded BN1 bias (incl. conv1 bias)
    w2_ref  : (9*Cmid, Cout)     bf16  conv2 weights in (dx,dy,cin) row order
    s2_ref  : (1, Cout)          f32   folded BN2 scale
    b2_ref  : (1, Cout)          f32   folded BN2 bias (incl. conv2 bias)
    o_ref   : (bpi, H, W, Cout)  bf16  NHWC output
    midp_ref: (bpi, H+2, _COL0+W+1, Cmid) bf16 VMEM scratch; interior at
              rows [1, H], cols [_COL0, _COL0+W), 1-px halo around it.
    acc_ref : (bpi*H*W, Cout)    f32   VMEM accumulator (split conv2 only)
    """
    bpi, h, w, cout = o_ref.shape
    cmid = w1_ref.shape[1]
    m = bpi * h * w
    c0 = _COL0

    # ---- conv1: one MXU matmul (K padded to 128), f32 accumulate + epilogue --
    x1 = p1_ref[...].reshape(m, p1_ref.shape[-1])
    acc1 = jnp.dot(x1, w1_ref[...], preferred_element_type=jnp.float32)
    mid = jnp.maximum(acc1 * s1_ref[...] + b1_ref[...], 0.0)          # (m, Cmid)

    # ---- mid activation stays in VMEM; interior store is tile-aligned -------
    midp_ref[:, pl.ds(1, h), pl.ds(c0, w), :] = (
        mid.reshape(bpi, h, w, cmid).astype(midp_ref.dtype))

    # ---- zero ONLY the 1-px halo border read by conv2 -----------------------
    zrow = jnp.zeros((bpi, 1, w + 2, cmid), midp_ref.dtype)
    midp_ref[:, pl.ds(0, 1), pl.ds(c0 - 1, w + 2), :] = zrow
    midp_ref[:, pl.ds(h + 1, 1), pl.ds(c0 - 1, w + 2), :] = zrow
    zcol = jnp.zeros((bpi, h, 1, cmid), midp_ref.dtype)
    midp_ref[:, pl.ds(1, h), pl.ds(c0 - 1, 1), :] = zcol
    midp_ref[:, pl.ds(1, h), pl.ds(c0 + w, 1), :] = zcol

    s2 = s2_ref[...]
    b2 = b2_ref[...]

    if split_conv2:
        # v6e/v7x: 3 per-dx matmuls (K = 3*Cmid) accumulated in a VMEM f32
        # scratch -> tap packing overlaps with the MXU; dy taps are free
        # H-axis slices, only the dx base is sublane-shifted (reads have slack).
        kg = 3 * cmid
        for dx in range(3):
            grp = jnp.concatenate(
                [midp_ref[:, pl.ds(dy, h), pl.ds(c0 - 1 + dx, w), :]
                 for dy in range(3)], axis=-1).reshape(m, kg)
            part = jnp.dot(grp, w2_ref[pl.ds(dx * kg, kg), :],
                           preferred_element_type=jnp.float32)
            if dx == 0:
                acc_ref[...] = part
            else:
                acc_ref[...] += part
        acc2 = acc_ref[...]
    else:
        # v5e: MXU-bound at this size -> single monolithic K = 9*Cmid matmul.
        taps = [midp_ref[:, pl.ds(dy, h), pl.ds(c0 - 1 + dx, w), :]
                for dx in range(3) for dy in range(3)]
        p2 = jnp.concatenate(taps, axis=-1).reshape(m, 9 * cmid)
        acc2 = jnp.dot(p2, w2_ref[...], preferred_element_type=jnp.float32)

    out = jnp.maximum(acc2 * s2 + b2, 0.0)
    o_ref[...] = out.reshape(bpi, h, w, cout).astype(o_ref.dtype)


# ----------------------------------------------------------------------------
# Wrapper (NCHW in; NCHW out by default to match PyTorch, or NHWC bf16)
# ----------------------------------------------------------------------------
def _default_split_conv2():
    # Per-generation choice: v5e is MXU-bound (keep one big-K matmul);
    # v6e/v7x are store/overhead-bound (split conv2 + VMEM accumulator).
    try:
        kind = jax.devices()[0].device_kind.lower()
    except Exception:
        return True
    return not ("v5 lite" in kind or "v5e" in kind or "v5lite" in kind)


def _imgs_per_step(n, h, w, max_m=2048):
    # Fold batch into M to amortize per-grid-step overhead, but keep >= 2 grid
    # steps so both v7x TensorCores get work.
    bpi = max(1, n // 2)
    while bpi > 1 and (n % bpi != 0 or bpi * h * w > max_m):
        bpi -= 1
    return bpi


def double_conv_pallas(params, x_nchw, *, channels_last=False, split_conv2=None):
    (w1, b1, g1, be1, rm1, rv1), (w2, b2, g2, be2, rm2, rv2) = params
    if split_conv2 is None:
        split_conv2 = _default_split_conv2()

    n, cin, h, w = x_nchw.shape
    cmid = w1.shape[-1]
    cout = w2.shape[-1]
    hw = h * w
    bpi = _imgs_per_step(n, h, w)
    m = bpi * hw

    # NCHW -> NHWC: channels ride the 128-lane axis.
    x = jnp.transpose(x_nchw, (0, 2, 3, 1))
    xp = jnp.pad(x, ((0, 0), (1, 1), (1, 1), (0, 0)))

    # conv1 im2col (Cin tiny -> 9x blowup is a few tens of KB); tap order
    # (dy,dx,cin) matches the HWIO weight flatten.  K is zero-padded to 128 so
    # patches are lane-dense and the weight tile is (8,128)-tileable.
    k1 = 9 * cin
    k1p = ((k1 + 127) // 128) * 128
    taps = [xp[:, dy:dy + h, dx:dx + w, :] for dy in range(3) for dx in range(3)]
    p1 = jnp.concatenate(taps, axis=-1).reshape(n, hw, k1)
    p1 = jnp.pad(p1, ((0, 0), (0, 0), (0, k1p - k1))).astype(jnp.bfloat16)

    # Fold BN running stats + conv bias into per-channel scale/bias (f32).
    s1 = g1 / jnp.sqrt(rv1 + BN_EPS)
    bb1 = be1 + s1 * (b1 - rm1)
    s2 = g2 / jnp.sqrt(rv2 + BN_EPS)
    bb2 = be2 + s2 * (b2 - rm2)

    w1m = jnp.pad(w1.reshape(k1, cmid),
                  ((0, k1p - k1), (0, 0))).astype(jnp.bfloat16)
    # conv2 weights in (dx, dy, cin) row order so each per-dx K-group is a
    # contiguous row slice of the weight matrix.
    w2m = jnp.transpose(w2, (1, 0, 2, 3)).reshape(9 * cmid, cout).astype(jnp.bfloat16)

    scratch = [pltpu.VMEM((bpi, h + 2, _COL0 + w + 1, cmid), jnp.bfloat16)]
    if split_conv2:
        scratch.append(pltpu.VMEM((m, cout), jnp.float32))

    flops = 2 * n * hw * (k1p * cmid + 9 * cmid * cout)
    bytes_accessed = (p1.size * 2 + w1m.size * 2 + w2m.size * 2
                      + 4 * 2 * (cmid + cout) + n * hw * cout * 2)

    kernel = functools.partial(_double_conv_kernel, split_conv2)

    out = pl.pallas_call(
        kernel,
        out_shape=jax.ShapeDtypeStruct((n, h, w, cout), jnp.bfloat16),
        grid=(n // bpi,),
        in_specs=[
            pl.BlockSpec((bpi, hw, k1p), lambda i: (i, 0, 0)),
            pl.BlockSpec((k1p, cmid), lambda i: (0, 0)),
            pl.BlockSpec((1, cmid), lambda i: (0, 0)),
            pl.BlockSpec((1, cmid), lambda i: (0, 0)),
            # TODO(synk): at larger Cmid/Cout on v7x, single-buffer these
            # constant-index weight blocks (pipeline_mode=pl.Buffered(1)) to
            # save VMEM; unnecessary at these widths.
            pl.BlockSpec((9 * cmid, cout), lambda i: (0, 0)),
            pl.BlockSpec((1, cout), lambda i: (0, 0)),
            pl.BlockSpec((1, cout), lambda i: (0, 0)),
        ],
        out_specs=pl.BlockSpec((bpi, h, w, cout), lambda i: (i, 0, 0, 0)),
        scratch_shapes=scratch,
        compiler_params=pltpu.CompilerParams(
            dimension_semantics=("parallel",),
            vmem_limit_bytes=32 * 1024 * 1024),
        cost_estimate=pl.CostEstimate(
            flops=flops, transcendentals=0, bytes_accessed=bytes_accessed),
    )(p1,
      w1m, s1.reshape(1, cmid).astype(jnp.float32),
      bb1.reshape(1, cmid).astype(jnp.float32),
      w2m, s2.reshape(1, cout).astype(jnp.float32),
      bb2.reshape(1, cout).astype(jnp.float32))

    if channels_last:
        return out                              # NHWC bf16, no extra round trip
    return jnp.transpose(out, (0, 3, 1, 2))     # NCHW (transpose done in bf16)


# ----------------------------------------------------------------------------
# Pure-JAX reference (mirrors the kernel's bf16 quantization points)
# ----------------------------------------------------------------------------
def double_conv_ref(params, x_nchw):
    x = jnp.transpose(x_nchw, (0, 2, 3, 1))
    for (wc, bc, g, be, rm, rv) in params:
        scale = g / jnp.sqrt(rv + BN_EPS)
        bias = be + scale * (bc - rm)
        y = lax.conv_general_dilated(
            x.astype(jnp.bfloat16), wc.astype(jnp.bfloat16),
            window_strides=(1, 1), padding=((1, 1), (1, 1)),
            dimension_numbers=("NHWC", "HWIO", "NHWC"),
            preferred_element_type=jnp.float32)
        x = jnp.maximum(y * scale + bias, 0.0)
    return jnp.transpose(x.astype(jnp.bfloat16), (0, 3, 1, 2))


# ----------------------------------------------------------------------------
# Deterministic parameter construction (synthetic, no checkpoint)
# ----------------------------------------------------------------------------
def init_double_conv_params(key, cin, cmid, cout):
    def conv_init(k, ci, co):
        kw, kb = jax.random.split(k)
        return (0.1 * jax.random.normal(kw, (3, 3, ci, co), jnp.float32),  # HWIO
                0.1 * jax.random.normal(kb, (co,), jnp.float32))

    def bn_init(k, c):
        k1, k2, k3, k4 = jax.random.split(k, 4)
        return (1.0 + 0.1 * jax.random.normal(k1, (c,), jnp.float32),   # gamma
                0.1 * jax.random.normal(k2, (c,), jnp.float32),          # beta
                0.05 * jax.random.normal(k3, (c,), jnp.float32),         # running_mean
                0.5 + jax.random.uniform(k4, (c,), jnp.float32))         # running_var

    k1, k2, k3, k4 = jax.random.split(key, 4)
    w1, b1 = conv_init(k1, cin, cmid)
    w2, b2 = conv_init(k3, cmid, cout)
    return ((w1, b1) + bn_init(k2, cmid), (w2, b2) + bn_init(k4, cout))


# ----------------------------------------------------------------------------
# Driver
# ----------------------------------------------------------------------------
if __name__ == "__main__":
    key = jax.random.PRNGKey(0)
    k_param, k_in = jax.random.split(key)

    N, CIN, H, W = 2, 4, 16, 16
    CMID, COUT = 128, 256        # lane-dense channel counts (multiples of 128)

    x = jax.random.normal(k_in, (N, CIN, H, W), jnp.float32)   # NCHW, like PyTorch
    params = init_double_conv_params(k_param, CIN, CMID, COUT)

    fwd = jax.jit(double_conv_pallas)
    y = fwd(params, x)
    jax.block_until_ready(y)
    assert y.shape == (N, COUT, H, W), y.shape
    assert y.dtype == jnp.bfloat16, y.dtype

    # Numerical check: both paths use bf16 operands with f32 accumulation and
    # quantize the final activation to bf16, so only accumulation order differs.
    y_ref = double_conv_ref(params, x)
    np.testing.assert_allclose(np.asarray(y, dtype=np.float32),
                               np.asarray(y_ref, dtype=np.float32),
                               rtol=1e-2, atol=1e-2)
    print("KERNEL_OK")
</pallas_src>

<mosaic_0001>
module attributes {stable_mosaic.version = 11 : i64} {
  func.func @_double_conv_kernel(%arg0: i32, %arg1: memref<1x256x128xbf16, #tpu.memory_space<vmem>>, %arg2: memref<128x128xbf16, #tpu.memory_space<vmem>>, %arg3: memref<1x128xf32, #tpu.memory_space<vmem>>, %arg4: memref<1x128xf32, #tpu.memory_space<vmem>>, %arg5: memref<1152x256xbf16, #tpu.memory_space<vmem>>, %arg6: memref<1x256xf32, #tpu.memory_space<vmem>>, %arg7: memref<1x256xf32, #tpu.memory_space<vmem>>, %arg8: memref<1x16x16x256xbf16, #tpu.memory_space<vmem>>, %arg9: memref<1x18x33x128xbf16, #tpu.memory_space<vmem>>, %arg10: memref<256x256xf32, #tpu.memory_space<vmem>>) attributes {dimension_semantics = [#tpu.dimension_semantics<parallel>], iteration_bounds = array<i64: 2>, scalar_prefetch = 0 : i64, scratch_operands = 2 : i64, tpu.core_type = #tpu.core_type<tc>, window_params = [{transform_indices = @transform_0, window_bounds = array<i64: 1, 256, 128>}, {pipeline_mode = #tpu.pipeline_mode<synchronous>, transform_indices = @transform_1, window_bounds = array<i64: 128, 128>}, {pipeline_mode = #tpu.pipeline_mode<synchronous>, transform_indices = @transform_2, window_bounds = array<i64: 1, 128>}, {pipeline_mode = #tpu.pipeline_mode<synchronous>, transform_indices = @transform_3, window_bounds = array<i64: 1, 128>}, {pipeline_mode = #tpu.pipeline_mode<synchronous>, transform_indices = @transform_4, window_bounds = array<i64: 1152, 256>}, {pipeline_mode = #tpu.pipeline_mode<synchronous>, transform_indices = @transform_5, window_bounds = array<i64: 1, 256>}, {pipeline_mode = #tpu.pipeline_mode<synchronous>, transform_indices = @transform_6, window_bounds = array<i64: 1, 256>}, {transform_indices = @transform_7, window_bounds = array<i64: 1, 16, 16, 256>}]} {
    %c0 = arith.constant 0 : index
    %c0_0 = arith.constant 0 : index
    %c0_1 = arith.constant 0 : index
    %0 = vector.load %arg1[%c0, %c0_0, %c0_1] : memref<1x256x128xbf16, #tpu.memory_space<vmem>>, vector<1x256x128xbf16>
    %1 = vector.shape_cast %0 : vector<1x256x128xbf16> to vector<256x128xbf16>
    %c0_2 = arith.constant 0 : index
    %c0_3 = arith.constant 0 : index
    %2 = vector.load %arg2[%c0_2, %c0_3] : memref<128x128xbf16, #tpu.memory_space<vmem>>, vector<128x128xbf16>
    %cst = arith.constant dense<0.000000e+00> : vector<256x128xf32>
    %3 = tpu.matmul %1, %2, %cst {dimension_numbers = #tpu.dot_dimension_numbers<[1], [0], [0], [1], [0, 0, 1, 1], [], []>} : vector<256x128xbf16>, vector<128x128xbf16>, vector<256x128xf32> -> vector<256x128xf32>
    %c0_4 = arith.constant 0 : index
    %c0_5 = arith.constant 0 : index
    %4 = vector.load %arg3[%c0_4, %c0_5] : memref<1x128xf32, #tpu.memory_space<vmem>>, vector<1x128xf32>
    %5 = vector.broadcast %4 : vector<1x128xf32> to vector<256x128xf32>
    %6 = arith.mulf %3, %5 : vector<256x128xf32>
    %c0_6 = arith.constant 0 : index
    %c0_7 = arith.constant 0 : index
    %7 = vector.load %arg4[%c0_6, %c0_7] : memref<1x128xf32, #tpu.memory_space<vmem>>, vector<1x128xf32>
    %8 = vector.broadcast %7 : vector<1x128xf32> to vector<256x128xf32>
    %9 = arith.addf %6, %8 : vector<256x128xf32>
    %cst_8 = arith.constant 0.000000e+00 : f32
    %10 = vector.broadcast %cst_8 : f32 to vector<256x128xf32>
    %11 = arith.maximumf %9, %10 : vector<256x128xf32>
    %12 = vector.shape_cast %11 : vector<256x128xf32> to vector<1x16x16x128xf32>
    %13 = arith.truncf %12 : vector<1x16x16x128xf32> to vector<1x16x16x128xbf16>
    %c0_9 = arith.constant 0 : index
    %c1 = arith.constant 1 : index
    %c16 = arith.constant 16 : index
    %c0_10 = arith.constant 0 : index
    %14 = vector.load %arg9[%c0_9, %c1, %c16, %c0_10] : memref<1x18x33x128xbf16, #tpu.memory_space<vmem>>, vector<1x16x16x128xbf16>
    tpu.vector_store %arg9[%c0_9, %c1, %c16, %c0_10], %13 {strides = array<i32>} : memref<1x18x33x128xbf16, #tpu.memory_space<vmem>>, vector<1x16x16x128xbf16>,
    %cst_11 = arith.constant 0.000000e+00 : bf16
    %15 = vector.broadcast %cst_11 : bf16 to vector<1x1x18x128xbf16>
    %c0_12 = arith.constant 0 : index
    %c0_13 = arith.constant 0 : index
    %c15 = arith.constant 15 : index
    %c0_14 = arith.constant 0 : index
    %16 = vector.load %arg9[%c0_12, %c0_13, %c15, %c0_14] : memref<1x18x33x128xbf16, #tpu.memory_space<vmem>>, vector<1x1x18x128xbf16>
    tpu.vector_store %arg9[%c0_12, %c0_13, %c15, %c0_14], %15 {strides = array<i32>} : memref<1x18x33x128xbf16, #tpu.memory_space<vmem>>, vector<1x1x18x128xbf16>,
    %c0_15 = arith.constant 0 : index
    %c17 = arith.constant 17 : index
    %c15_16 = arith.constant 15 : index
    %c0_17 = arith.constant 0 : index
    %17 = vector.load %arg9[%c0_15, %c17, %c15_16, %c0_17] : memref<1x18x33x128xbf16, #tpu.memory_space<vmem>>, vector<1x1x18x128xbf16>
    tpu.vector_store %arg9[%c0_15, %c17, %c15_16, %c0_17], %15 {strides = array<i32>} : memref<1x18x33x128xbf16, #tpu.memory_space<vmem>>, vector<1x1x18x128xbf16>,
    %cst_18 = arith.constant 0.000000e+00 : bf16
    %18 = vector.broadcast %cst_18 : bf16 to vector<1x16x1x128xbf16>
    %c0_19 = arith.constant 0 : index
    %c1_20 = arith.constant 1 : index
    %c15_21 = arith.constant 15 : index
    %c0_22 = arith.constant 0 : index
    %19 = vector.load %arg9[%c0_19, %c1_20, %c15_21, %c0_22] : memref<1x18x33x128xbf16, #tpu.memory_space<vmem>>, vector<1x16x1x128xbf16>
    tpu.vector_store %arg9[%c0_19, %c1_20, %c15_21, %c0_22], %18 {strides = array<i32>} : memref<1x18x33x128xbf16, #tpu.memory_space<vmem>>, vector<1x16x1x128xbf16>,
    %c0_23 = arith.constant 0 : index
    %c1_24 = arith.constant 1 : index
    %c32 = arith.constant 32 : index
    %c0_25 = arith.constant 0 : index
    %20 = vector.load %arg9[%c0_23, %c1_24, %c32, %c0_25] : memref<1x18x33x128xbf16, #tpu.memory_space<vmem>>, vector<1x16x1x128xbf16>
    tpu.vector_store %arg9[%c0_23, %c1_24, %c32, %c0_25], %18 {strides = array<i32>} : memref<1x18x33x128xbf16, #tpu.memory_space<vmem>>, vector<1x16x1x128xbf16>,
    %c0_26 = arith.constant 0 : index
    %c0_27 = arith.constant 0 : index
    %21 = vector.load %arg6[%c0_26, %c0_27] : memref<1x256xf32, #tpu.memory_space<vmem>>, vector<1x256xf32>
    %c0_28 = arith.constant 0 : index
    %c0_29 = arith.constant 0 : index
    %22 = vector.load %arg7[%c0_28, %c0_29] : memref<1x256xf32, #tpu.memory_space<vmem>>, vector<1x256xf32>
    %c0_30 = arith.constant 0 : index
    %c0_31 = arith.constant 0 : index
    %c15_32 = arith.constant 15 : index
    %c0_33 = arith.constant 0 : index
    %23 = vector.load %arg9[%c0_30, %c0_31, %c15_32, %c0_33] : memref<1x18x33x128xbf16, #tpu.memory_space<vmem>>, vector<1x16x16x128xbf16>
    %c0_34 = arith.constant 0 : index
    %c1_35 = arith.constant 1 : index
    %c15_36 = arith.constant 15 : index
    %c0_37 = arith.constant 0 : index
    %24 = vector.load %arg9[%c0_34, %c1_35, %c15_36, %c0_37] : memref<1x18x33x128xbf16, #tpu.memory_space<vmem>>, vector<1x16x16x128xbf16>
    %c0_38 = arith.constant 0 : index
    %c2 = arith.constant 2 : index
    %c15_39 = arith.constant 15 : index
    %c0_40 = arith.constant 0 : index
    %25 = vector.load %arg9[%c0_38, %c2, %c15_39, %c0_40] : memref<1x18x33x128xbf16, #tpu.memory_space<vmem>>, vector<1x16x16x128xbf16>
    %26 = tpu.concatenate %23, %24, %25 in 3 : vector<1x16x16x128xbf16>, vector<1x16x16x128xbf16>, vector<1x16x16x128xbf16> -> vector<1x16x16x384xbf16>
    %27 = vector.shape_cast %26 : vector<1x16x16x384xbf16> to vector<256x384xbf16>
    %c0_41 = arith.constant 0 : index
    %c0_42 = arith.constant 0 : index
    %28 = vector.load %arg5[%c0_41, %c0_42] : memref<1152x256xbf16, #tpu.memory_space<vmem>>, vector<384x256xbf16>
    %cst_43 = arith.constant dense<0.000000e+00> : vector<256x256xf32>
    %29 = tpu.matmul %27, %28, %cst_43 {dimension_numbers = #tpu.dot_dimension_numbers<[1], [0], [0], [1], [0, 0, 1, 1], [], []>} : vector<256x384xbf16>, vector<384x256xbf16>, vector<256x256xf32> -> vector<256x256xf32>
    %c0_44 = arith.constant 0 : index
    %c0_45 = arith.constant 0 : index
    %30 = vector.load %arg10[%c0_44, %c0_45] : memref<256x256xf32, #tpu.memory_space<vmem>>, vector<256x256xf32>
    tpu.vector_store %arg10[%c0_44, %c0_45], %29 {strides = array<i32>} : memref<256x256xf32, #tpu.memory_space<vmem>>, vector<256x256xf32>,
    %c0_46 = arith.constant 0 : index
    %c0_47 = arith.constant 0 : index
    %c16_48 = arith.constant 16 : index
    %c0_49 = arith.constant 0 : index
    %31 = vector.load %arg9[%c0_46, %c0_47, %c16_48, %c0_49] : memref<1x18x33x128xbf16, #tpu.memory_space<vmem>>, vector<1x16x16x128xbf16>
    %c0_50 = arith.constant 0 : index
    %c1_51 = arith.constant 1 : index
    %c16_52 = arith.constant 16 : index
    %c0_53 = arith.constant 0 : index
    %32 = vector.load %arg9[%c0_50, %c1_51, %c16_52, %c0_53] : memref<1x18x33x128xbf16, #tpu.memory_space<vmem>>, vector<1x16x16x128xbf16>
    %c0_54 = arith.constant 0 : index
    %c2_55 = arith.constant 2 : index
    %c16_56 = arith.constant 16 : index
    %c0_57 = arith.constant 0 : index
    %33 = vector.load %arg9[%c0_54, %c2_55, %c16_56, %c0_57] : memref<1x18x33x128xbf16, #tpu.memory_space<vmem>>, vector<1x16x16x128xbf16>
    %34 = tpu.concatenate %31, %32, %33 in 3 : vector<1x16x16x128xbf16>, vector<1x16x16x128xbf16>, vector<1x16x16x128xbf16> -> vector<1x16x16x384xbf16>
    %35 = vector.shape_cast %34 : vector<1x16x16x384xbf16> to vector<256x384xbf16>
    %c384 = arith.constant 384 : index
    %c0_58 = arith.constant 0 : index
    %36 = vector.load %arg5[%c384, %c0_58] : memref<1152x256xbf16, #tpu.memory_space<vmem>>, vector<384x256xbf16>
    %cst_59 = arith.constant dense<0.000000e+00> : vector<256x256xf32>
    %37 = tpu.matmul %35, %36, %cst_59 {dimension_numbers = #tpu.dot_dimension_numbers<[1], [0], [0], [1], [0, 0, 1, 1], [], []>} : vector<256x384xbf16>, vector<384x256xbf16>, vector<256x256xf32> -> vector<256x256xf32>
    %c0_60 = arith.constant 0 : index
    %c0_61 = arith.constant 0 : index
    %38 = vector.load %arg10[%c0_60, %c0_61] : memref<256x256xf32, #tpu.memory_space<vmem>>, vector<256x256xf32>
    %39 = arith.addf %38, %37 : vector<256x256xf32>
    %c0_62 = arith.constant 0 : index
    %c0_63 = arith.constant 0 : index
    %40 = vector.load %arg10[%c0_62, %c0_63] : memref<256x256xf32, #tpu.memory_space<vmem>>, vector<256x256xf32>
    tpu.vector_store %arg10[%c0_62, %c0_63], %39 {strides = array<i32>} : memref<256x256xf32, #tpu.memory_space<vmem>>, vector<256x256xf32>,
    %c0_64 = arith.constant 0 : index
    %c0_65 = arith.constant 0 : index
    %c17_66 = arith.constant 17 : index
    %c0_67 = arith.constant 0 : index
    %41 = vector.load %arg9[%c0_64, %c0_65, %c17_66, %c0_67] : memref<1x18x33x128xbf16, #tpu.memory_space<vmem>>, vector<1x16x16x128xbf16>
    %c0_68 = arith.constant 0 : index
    %c1_69 = arith.constant 1 : index
    %c17_70 = arith.constant 17 : index
    %c0_71 = arith.constant 0 : index
    %42 = vector.load %arg9[%c0_68, %c1_69, %c17_70, %c0_71] : memref<1x18x33x128xbf16, #tpu.memory_space<vmem>>, vector<1x16x16x128xbf16>
    %c0_72 = arith.constant 0 : index
    %c2_73 = arith.constant 2 : index
    %c17_74 = arith.constant 17 : index
    %c0_75 = arith.constant 0 : index
    %43 = vector.load %arg9[%c0_72, %c2_73, %c17_74, %c0_75] : memref<1x18x33x128xbf16, #tpu.memory_space<vmem>>, vector<1x16x16x128xbf16>
    %44 = tpu.concatenate %41, %42, %43 in 3 : vector<1x16x16x128xbf16>, vector<1x16x16x128xbf16>, vector<1x16x16x128xbf16> -> vector<1x16x16x384xbf16>
    %45 = vector.shape_cast %44 : vector<1x16x16x384xbf16> to vector<256x384xbf16>
    %c768 = arith.constant 768 : index
    %c0_76 = arith.constant 0 : index
    %46 = vector.load %arg5[%c768, %c0_76] : memref<1152x256xbf16, #tpu.memory_space<vmem>>, vector<384x256xbf16>
    %cst_77 = arith.constant dense<0.000000e+00> : vector<256x256xf32>
    %47 = tpu.matmul %45, %46, %cst_77 {dimension_numbers = #tpu.dot_dimension_numbers<[1], [0], [0], [1], [0, 0, 1, 1], [], []>} : vector<256x384xbf16>, vector<384x256xbf16>, vector<256x256xf32> -> vector<256x256xf32>
    %c0_78 = arith.constant 0 : index
    %c0_79 = arith.constant 0 : index
    %48 = vector.load %arg10[%c0_78, %c0_79] : memref<256x256xf32, #tpu.memory_space<vmem>>, vector<256x256xf32>
    %49 = arith.addf %48, %47 : vector<256x256xf32>
    %c0_80 = arith.constant 0 : index
    %c0_81 = arith.constant 0 : index
    %50 = vector.load %arg10[%c0_80, %c0_81] : memref<256x256xf32, #tpu.memory_space<vmem>>, vector<256x256xf32>
    tpu.vector_store %arg10[%c0_80, %c0_81], %49 {strides = array<i32>} : memref<256x256xf32, #tpu.memory_space<vmem>>, vector<256x256xf32>,
    %c0_82 = arith.constant 0 : index
    %c0_83 = arith.constant 0 : index
    %51 = vector.load %arg10[%c0_82, %c0_83] : memref<256x256xf32, #tpu.memory_space<vmem>>, vector<256x256xf32>
    %52 = vector.broadcast %21 : vector<1x256xf32> to vector<256x256xf32>
    %53 = arith.mulf %51, %52 : vector<256x256xf32>
    %54 = vector.broadcast %22 : vector<1x256xf32> to vector<256x256xf32>
    %55 = arith.addf %53, %54 : vector<256x256xf32>
    %cst_84 = arith.constant 0.000000e+00 : f32
    %56 = vector.broadcast %cst_84 : f32 to vector<256x256xf32>
    %57 = arith.maximumf %55, %56 : vector<256x256xf32>
    %58 = vector.shape_cast %57 : vector<256x256xf32> to vector<1x16x16x256xf32>
    %59 = arith.truncf %58 : vector<1x16x16x256xf32> to vector<1x16x16x256xbf16>
    %c0_85 = arith.constant 0 : index
    %c0_86 = arith.constant 0 : index
    %c0_87 = arith.constant 0 : index
    %c0_88 = arith.constant 0 : index
    %60 = vector.load %arg8[%c0_85, %c0_86, %c0_87, %c0_88] : memref<1x16x16x256xbf16, #tpu.memory_space<vmem>>, vector<1x16x16x256xbf16>
    tpu.vector_store %arg8[%c0_85, %c0_86, %c0_87, %c0_88], %59 {strides = array<i32>} : memref<1x16x16x256xbf16, #tpu.memory_space<vmem>>, vector<1x16x16x256xbf16>,
    return
  }
  func.func @transform_0(%arg0: i32) -> (i32, i32, i32) {
    %c0_i32 = arith.constant 0 : i32
    %c0_i32_0 = arith.constant 0 : i32
    %c0_i32_1 = arith.constant 0 : i32
    return %arg0, %c0_i32, %c0_i32_0 : i32, i32, i32
  }
  func.func @transform_1(%arg0: i32) -> (i32, i32) {
    %c0_i32 = arith.constant 0 : i32
    %c0_i32_0 = arith.constant 0 : i32
    %c0_i32_1 = arith.constant 0 : i32
    return %c0_i32, %c0_i32_0 : i32, i32
  }
  func.func @transform_2(%arg0: i32) -> (i32, i32) {
    %c0_i32 = arith.constant 0 : i32
    %c0_i32_0 = arith.constant 0 : i32
    %c0_i32_1 = arith.constant 0 : i32
    return %c0_i32, %c0_i32_0 : i32, i32
  }
  func.func @transform_3(%arg0: i32) -> (i32, i32) {
    %c0_i32 = arith.constant 0 : i32
    %c0_i32_0 = arith.constant 0 : i32
    %c0_i32_1 = arith.constant 0 : i32
    return %c0_i32, %c0_i32_0 : i32, i32
  }
  func.func @transform_4(%arg0: i32) -> (i32, i32) {
    %c0_i32 = arith.constant 0 : i32
    %c0_i32_0 = arith.constant 0 : i32
    %c0_i32_1 = arith.constant 0 : i32
    return %c0_i32, %c0_i32_0 : i32, i32
  }
  func.func @transform_5(%arg0: i32) -> (i32, i32) {
    %c0_i32 = arith.constant 0 : i32
    %c0_i32_0 = arith.constant 0 : i32
    %c0_i32_1 = arith.constant 0 : i32
    return %c0_i32, %c0_i32_0 : i32, i32
  }
  func.func @transform_6(%arg0: i32) -> (i32, i32) {
    %c0_i32 = arith.constant 0 : i32
    %c0_i32_0 = arith.constant 0 : i32
    %c0_i32_1 = arith.constant 0 : i32
    return %c0_i32, %c0_i32_0 : i32, i32
  }
  func.func @transform_7(%arg0: i32) -> (i32, i32, i32, i32) {
    %c0_i32 = arith.constant 0 : i32
    %c0_i32_0 = arith.constant 0 : i32
    %c0_i32_1 = arith.constant 0 : i32
    %c0_i32_2 = arith.constant 0 : i32
    return %arg0, %c0_i32, %c0_i32_0, %c0_i32_1 : i32, i32, i32, i32
  }
}

</mosaic_0001>

<llo_original>
// kernel: double_conv_pallas.1
$region0: #{double_conv_pallas.1}
  #allocation0 [shape = 'u32[]', space=smem, size = 0x4, offset = 0x4, fixed_abs, tag = 'smem constant byte address 0x4 - core index']
  #allocation1 [shape = 'u32[144,128]{1,0:T(1,128)}', space=vmem, size = 0x12000, scoped, tag = 'internal scratch']
  #allocation2 [shape = 'bf16[1,18,33,128]{3,2,1,0:T(8,128)(2,1)}', space=vmem, size = 0x2d000, scoped, tag = 'scratch operand']
  #allocation3 [shape = 'f32[256,256]{1,0:T(8,128)}', space=vmem, size = 0x40000, scoped, tag = 'scratch operand']
  %s0 = inlined_call_operand.vmem [shape: bf16[2,256,128], index: 0, kind: input, shape index: {}]
  %s1 = inlined_call_operand.vmem [shape: bf16[128,128], index: 1, kind: input, shape index: {}]
  %s2 = inlined_call_operand.vmem [shape: f32[1,128], index: 2, kind: input, shape index: {}]
  %s3 = inlined_call_operand.vmem [shape: f32[1,128], index: 3, kind: input, shape index: {}]
  %s4 = inlined_call_operand.vmem [shape: bf16[1152,256], index: 4, kind: input, shape index: {}]
  %s5 = inlined_call_operand.vmem [shape: f32[1,256], index: 5, kind: input, shape index: {}]
  %s6 = inlined_call_operand.vmem [shape: f32[1,256], index: 6, kind: input, shape index: {}]
  %s7 = inlined_call_operand.hbm [shape: bf16[2,16,16,256], index: 7, kind: output, shape index: {}]
  %s8 = sld [smem:[#allocation0]]
  $region61: #{double_conv_pallas.1} parent=0
    _
  %s10 = ssub.s32 1, %s8
  %s11 = scalar_select 0, %s10, %s8
  $region1: #{double_conv_pallas.1} parent=0
    #allocation4 [shape = 'u8[262144]{0}', space=vmem, size = 0x40000, scoped, tag = 'output window, operand 0']
    #allocation5 [shape = 's32[2]{0}', space=sflag, size = 0x8, scoped, tag = 'scoped memory for double_conv_pallas.1']
    %12 = vsyncpa [#allocation5], 0
    %s13 = scalar_lea.sflag [#allocation5], 1
    %14 = vsyncpa %s13, 0
    loop: start=0, step=1, limit=4
    $region2: #{double_conv_pallas.1} parent=1 // loop_pre_header
      _
    $region3: #{double_conv_pallas.1} parent=1 // loop_header
      %s16 = sphi 0, %s20
      %p17 = scmp.ge.s32.totalorder %s16, 4
      %s26 = sphi 0, %s28
      %s29 = sphi 0, %s26
      %s30 = sphi 0, %s29
      %s46 = sphi 0, %s30
      %s50 = sphi 0, %s50
      %s52 = sphi 0, %s50
      %s53 = sphi 0, %s52
      %s67 = sphi 0, %s53
      %s71 = sphi 0, %s71
      %s73 = sphi 0, %s71
      %s74 = sphi 0, %s73
      %s88 = sphi 0, %s74
      %s92 = sphi 0, %s92
      %s94 = sphi 0, %s92
      %s95 = sphi 0, %s94
      %s109 = sphi 0, %s95
      %s113 = sphi 0, %s113
      %s115 = sphi 0, %s113
      %s116 = sphi 0, %s115
      %s130 = sphi 0, %s116
      %s134 = sphi 0, %s134
      %s136 = sphi 0, %s134
      %s137 = sphi 0, %s136
      %s151 = sphi 0, %s137
      %s155 = sphi 0, %s155
      %s157 = sphi 0, %s155
      %s158 = sphi 0, %s157
      %s172 = sphi 0, %s158
      %s178 = sphi 0, %s180
      %s181 = sphi 0, %s178
      %s182 = sphi 0, %s181
      %s198 = sphi 0, %s182
    $region4: #{double_conv_pallas.1} parent=1 // loop_header_branch
      %19 = sbr.rel (%p17) target = $region8
    $region5: #{double_conv_pallas.1} parent=1 // loop_body
      %s21 = ssub.s32 %s16, 1
      %s22 = ssub.s32 %s16, 2
      %s23 = sadd.s32 %s16, 1
      %s24 = ssub.s32 %s16, %s23
      %p25 = scmp.eq.s32.totalorder %s24, 0
      %s27 = sadd.s32 %s26, 1
      %s28 = scalar_select %p25, %s26, %s27
      %p31 = pneg %p25
      %p32 = scmp.eq.s32.totalorder %s16, 1
      %p33 = por %p31, %p32
      %p34 = scmp.ne.s32.totalorder %s26, %s29
      %p35 = scmp.eq.s32.totalorder %s16, 0
      %p36 = por %p34, %p35
      %p37 = scmp.ne.s32.totalorder %s26, %s29
      %p38 = scmp.eq.s32.totalorder %s21, 1
      %p39 = por %p37, %p38
      %p40 = scmp.ne.s32.totalorder %s29, %s30
      %p41 = scmp.eq.s32.totalorder %s21, 0
      %p42 = por %p40, %p41
      %p43 = scmp.ne.s32.totalorder %s29, %s30
      %p44 = scmp.eq.s32.totalorder %s22, 1
      %p45 = por %p43, %p44
      %p47 = scmp.ne.s32.totalorder %s30, %s46
      %p48 = scmp.eq.s32.totalorder %s22, 0
      %p49 = por %p47, %p48
      %s51 = sadd.s32 %s50, 1
      %p54 = scmp.eq.s32.totalorder %s16, 1
      %p55 = scmp.ne.s32.totalorder %s50, %s52
      %p56 = scmp.eq.s32.totalorder %s16, 0
      %p57 = por %p55, %p56
      %p58 = scmp.ne.s32.totalorder %s50, %s52
      %p59 = scmp.eq.s32.totalorder %s21, 1
      %p60 = por %p58, %p59
      %p61 = scmp.ne.s32.totalorder %s52, %s53
      %p62 = scmp.eq.s32.totalorder %s21, 0
      %p63 = por %p61, %p62
      %p64 = scmp.ne.s32.totalorder %s52, %s53
      %p65 = scmp.eq.s32.totalorder %s22, 1
      %p66 = por %p64, %p65
      %p68 = scmp.ne.s32.totalorder %s53, %s67
      %p69 = scmp.eq.s32.totalorder %s22, 0
      %p70 = por %p68, %p69
      %s72 = sadd.s32 %s71, 1
      %p75 = scmp.eq.s32.totalorder %s16, 1
      %p76 = scmp.ne.s32.totalorder %s71, %s73
      %p77 = scmp.eq.s32.totalorder %s16, 0
      %p78 = por %p76, %p77
      %p79 = scmp.ne.s32.totalorder %s71, %s73
      %p80 = scmp.eq.s32.totalorder %s21, 1
      %p81 = por %p79, %p80
      %p82 = scmp.ne.s32.totalorder %s73, %s74
      %p83 = scmp.eq.s32.totalorder %s21, 0
      %p84 = por %p82, %p83
      %p85 = scmp.ne.s32.totalorder %s73, %s74
      %p86 = scmp.eq.s32.totalorder %s22, 1
      %p87 = por %p85, %p86
      %p89 = scmp.ne.s32.totalorder %s74, %s88
      %p90 = scmp.eq.s32.totalorder %s22, 0
      %p91 = por %p89, %p90
      %s93 = sadd.s32 %s92, 1
      %p96 = scmp.eq.s32.totalorder %s16, 1
      %p97 = scmp.ne.s32.totalorder %s92, %s94
      %p98 = scmp.eq.s32.totalorder %s16, 0
      %p99 = por %p97, %p98
      %p100 = scmp.ne.s32.totalorder %s92, %s94
      %p101 = scmp.eq.s32.totalorder %s21, 1
      %p102 = por %p100, %p101
      %p103 = scmp.ne.s32.totalorder %s94, %s95
      %p104 = scmp.eq.s32.totalorder %s21, 0
      %p105 = por %p103, %p104
      %p106 = scmp.ne.s32.totalorder %s94, %s95
      %p107 = scmp.eq.s32.totalorder %s22, 1
      %p108 = por %p106, %p107
      %p110 = scmp.ne.s32.totalorder %s95, %s109
      %p111 = scmp.eq.s32.totalorder %s22, 0
      %p112 = por %p110, %p111
      %s114 = sadd.s32 %s113, 1
      %p117 = scmp.eq.s32.totalorder %s16, 1
      %p118 = scmp.ne.s32.totalorder %s113, %s115
      %p119 = scmp.eq.s32.totalorder %s16, 0
      %p120 = por %p118, %p119
      %p121 = scmp.ne.s32.totalorder %s113, %s115
      %p122 = scmp.eq.s32.totalorder %s21, 1
      %p123 = por %p121, %p122
      %p124 = scmp.ne.s32.totalorder %s115, %s116
      %p125 = scmp.eq.s32.totalorder %s21, 0
      %p126 = por %p124, %p125
      %p127 = scmp.ne.s32.totalorder %s115, %s116
      %p128 = scmp.eq.s32.totalorder %s22, 1
      %p129 = por %p127, %p128
      %p131 = scmp.ne.s32.totalorder %s116, %s130
      %p132 = scmp.eq.s32.totalorder %s22, 0
      %p133 = por %p131, %p132
      %s135 = sadd.s32 %s134, 1
      %p138 = scmp.eq.s32.totalorder %s16, 1
      %p139 = scmp.ne.s32.totalorder %s134, %s136
      %p140 = scmp.eq.s32.totalorder %s16, 0
      %p141 = por %p139, %p140
      %p142 = scmp.ne.s32.totalorder %s134, %s136
      %p143 = scmp.eq.s32.totalorder %s21, 1
      %p144 = por %p142, %p143
      %p145 = scmp.ne.s32.totalorder %s136, %s137
      %p146 = scmp.eq.s32.totalorder %s21, 0
      %p147 = por %p145, %p146
      %p148 = scmp.ne.s32.totalorder %s136, %s137
      %p149 = scmp.eq.s32.totalorder %s22, 1
      %p150 = por %p148, %p149
      %p152 = scmp.ne.s32.totalorder %s137, %s151
      %p153 = scmp.eq.s32.totalorder %s22, 0
      %p154 = por %p152, %p153
      %s156 = sadd.s32 %s155, 1
      %p159 = scmp.eq.s32.totalorder %s16, 1
      %p160 = scmp.ne.s32.totalorder %s155, %s157
      %p161 = scmp.eq.s32.totalorder %s16, 0
      %p162 = por %p160, %p161
      %p163 = scmp.ne.s32.totalorder %s155, %s157
      %p164 = scmp.eq.s32.totalorder %s21, 1
      %p165 = por %p163, %p164
      %p166 = scmp.ne.s32.totalorder %s157, %s158
      %p167 = scmp.eq.s32.totalorder %s21, 0
      %p168 = por %p166, %p167
      %p169 = scmp.ne.s32.totalorder %s157, %s158
      %p170 = scmp.eq.s32.totalorder %s22, 1
      %p171 = por %p169, %p170
      %p173 = scmp.ne.s32.totalorder %s158, %s172
      %p174 = scmp.eq.s32.totalorder %s22, 0
      %p175 = por %p173, %p174
      %s176 = ssub.s32 %s16, %s23
      %p177 = scmp.eq.s32.totalorder %s176, 0
      %s179 = sadd.s32 %s178, 1
      %s180 = scalar_select %p177, %s178, %s179
      %p183 = pneg %p177
      %p184 = scmp.eq.s32.totalorder %s16, 1
      %p185 = por %p183, %p184
      %p186 = scmp.ne.s32.totalorder %s178, %s181
      %p187 = scmp.eq.s32.totalorder %s16, 0
      %p188 = por %p186, %p187
      %p189 = scmp.ne.s32.totalorder %s178, %s181
      %p190 = scmp.eq.s32.totalorder %s21, 1
      %p191 = por %p189, %p190
      %p192 = scmp.ne.s32.totalorder %s181, %s182
      %p193 = scmp.eq.s32.totalorder %s21, 0
      %p194 = por %p192, %p193
      %p195 = scmp.ne.s32.totalorder %s181, %s182
      %p196 = scmp.eq.s32.totalorder %s22, 1
      %p197 = por %p195, %p196
      %p199 = scmp.ne.s32.totalorder %s182, %s198
      %p200 = scmp.eq.s32.totalorder %s22, 0
      %p201 = por %p199, %p200
      %p202 = scmp.le.s32.totalorder 1, %s16
      %p203 = scmp.lt.s32.totalorder %s16, 3
      %p204 = pnand %p202, %p203
      %p205 = pneg %p204
      // Predicated region
      $region9: #{double_conv_pallas.1} parent=5 // pred_check
        _
      $region10: #{double_conv_pallas.1} parent=5 // pred_check_branch
        %207 = sbr.rel (%p204) target = $region12
      $region11: #{double_conv_pallas.1} parent=5 // pred_region
        %s208 = ssub.s32 %s16, 1
        // Predicated region
        $region13: #{double_conv_pallas.1} parent=11 // pred_check
          %p209 = pneg %p63
        $region14: #{double_conv_pallas.1} parent=11 // pred_check_branch
          %211 = sbr.rel (%p209) target = $region16
        $region15: #{double_conv_pallas.1} parent=11 // pred_region
          _
        $region16: #{double_conv_pallas.1} parent=11 // pred_fallthru
          _
        // Predicated region
        $region17: #{double_conv_pallas.1} parent=11 // pred_check
          %p212 = pneg %p84
        $region18: #{double_conv_pallas.1} parent=11 // pred_check_branch
          %214 = sbr.rel (%p212) target = $region20
        $region19: #{double_conv_pallas.1} parent=11 // pred_region
          _
        $region20: #{double_conv_pallas.1} parent=11 // pred_fallthru
          _
        // Predicated region
        $region21: #{double_conv_pallas.1} parent=11 // pred_check
          %p215 = pneg %p105
        $region22: #{double_conv_pallas.1} parent=11 // pred_check_branch
          %217 = sbr.rel (%p215) target = $region24
        $region23: #{double_conv_pallas.1} parent=11 // pred_region
          _
        $region24: #{double_conv_pallas.1} parent=11 // pred_fallthru
          _
        // Predicated region
        $region25: #{double_conv_pallas.1} parent=11 // pred_check
          %p218 = pneg %p126
        $region26: #{double_conv_pallas.1} parent=11 // pred_check_branch
          %220 = sbr.rel (%p218) target = $region28
        $region27: #{double_conv_pallas.1} parent=11 // pred_region
          _
        $region28: #{double_conv_pallas.1} parent=11 // pred_fallthru
          _
        // Predicated region
        $region29: #{double_conv_pallas.1} parent=11 // pred_check
          %p221 = pneg %p147
        $region30: #{double_conv_pallas.1} parent=11 // pred_check_branch
          %223 = sbr.rel (%p221) target = $region32
        $region31: #{double_conv_pallas.1} parent=11 // pred_region
          _
        $region32: #{double_conv_pallas.1} parent=11 // pred_fallthru
          _
        // Predicated region
        $region33: #{double_conv_pallas.1} parent=11 // pred_check
          %p224 = pneg %p168
        $region34: #{double_conv_pallas.1} parent=11 // pred_check_branch
          %226 = sbr.rel (%p224) target = $region36
        $region35: #{double_conv_pallas.1} parent=11 // pred_region
          _
        $region36: #{double_conv_pallas.1} parent=11 // pred_fallthru
          _
      $region12: #{double_conv_pallas.1} parent=5 // pred_fallthru
        _
      %p227 = scmp.lt.s32.totalorder %s16, 2
      // Predicated region
      $region37: #{double_conv_pallas.1} parent=5 // pred_check
        %p228 = pneg %p227
      $region38: #{double_conv_pallas.1} parent=5 // pred_check_branch
        %230 = sbr.rel (%p228) target = $region40
      $region39: #{double_conv_pallas.1} parent=5 // pred_region
        // Predicated region
        $region41: #{double_conv_pallas.1} parent=39 // pred_check
          %p231 = pneg %p36
        $region42: #{double_conv_pallas.1} parent=39 // pred_check_branch
          %233 = sbr.rel (%p231) target = $region44
        $region43: #{double_conv_pallas.1} parent=39 // pred_region
          %p234 = scmp.lt.s32.totalorder %s16, 1
          %s235 = scalar_select %p234, %s16, 1
          %s236 = smul.addr %s235, 32
          %s237 = smul.addr %s236, 4
          %s238 = scalar_lea.vmem %s0, %s237
        $region44: #{double_conv_pallas.1} parent=39 // pred_fallthru
          _
      $region40: #{double_conv_pallas.1} parent=5 // pred_fallthru
        _
      %p239 = scmp.le.s32.totalorder 1, %s16
      %p240 = scmp.lt.s32.totalorder %s16, 3
      %p241 = pnand %p239, %p240
      %p242 = pneg %p241
      // Predicated region
      $region45: #{double_conv_pallas.1} parent=5 // pred_check
        _
      $region46: #{double_conv_pallas.1} parent=5 // pred_check_branch
        %244 = sbr.rel (%p241) target = $region48
      $region47: #{double_conv_pallas.1} parent=5 // pred_region
        %s245 = ssub.s32 %s16, 1
        %p246 = scmp.lt.s32.totalorder %s21, 1
        %s247 = scalar_select %p246, %s21, 1
        %s248 = smul.addr %s247, 32
        %s249 = smul.addr %s248, 4
        %s250 = scalar_lea.vmem %s0, %s249
        %p251 = pneg %p42
        %p252 = pneg %p39
        %p253 = pneg %p63
        %p254 = pneg %p60
        %p255 = pneg %p84
        %p256 = pneg %p81
        %p257 = pneg %p105
        %p258 = pneg %p102
        %p259 = pneg %p126
        %p260 = pneg %p123
        %p261 = pneg %p147
        %p262 = pneg %p144
        %p263 = pneg %p168
        %p264 = pneg %p165
        %p265 = pneg %p194
        %p266 = pneg %p191
        %s267 = sand.u32 %s181, 1
        %s268 = scalar_lea.sflag [#allocation5], %s267
        %s269 = sand.u32 %s181, 1
        %s270 = smul.addr %s269, 256
        %s271 = scalar_lea.vmem [#allocation4], %s270
        %p272 = scmp.lt.s32.totalorder %s21, 1
        %s273 = scalar_select %p272, %s21, 1
        %s274 = smul.addr %s273, 32
        %s275 = smul.addr %s274, 4
        %s276 = scalar_lea.vmem %s0, %s275
        %v278 = vld [vmem:[%s276] sm:$0xf]
        %v279 = vld [vmem:[%s276 + $0x4] sm:$0xf]
        %v280 = vld [vmem:[%s276 + $0x8] sm:$0xf]
        %v281 = vld [vmem:[%s276 + $0xc] sm:$0xf]
        %v282 = vld [vmem:[%s276 + $0x10] sm:$0xf]
        %v283 = vld [vmem:[%s276 + $0x14] sm:$0xf]
        %v284 = vld [vmem:[%s276 + $0x18] sm:$0xf]
        %v285 = vld [vmem:[%s276 + $0x1c] sm:$0xf]
        %v286 = vld [vmem:[%s276 + $0x20] sm:$0xf]
        %v287 = vld [vmem:[%s276 + $0x24] sm:$0xf]
        %v288 = vld [vmem:[%s276 + $0x28] sm:$0xf]
        %v289 = vld [vmem:[%s276 + $0x2c] sm:$0xf]
        %v290 = vld [vmem:[%s276 + $0x30] sm:$0xf]
        %v291 = vld [vmem:[%s276 + $0x34] sm:$0xf]
        %v292 = vld [vmem:[%s276 + $0x38] sm:$0xf]
        %v293 = vld [vmem:[%s276 + $0x3c] sm:$0xf]
        %v294 = vld [vmem:[%s276 + $0x40] sm:$0xf]
        %v295 = vld [vmem:[%s276 + $0x44] sm:$0xf]
        %v296 = vld [vmem:[%s276 + $0x48] sm:$0xf]
        %v297 = vld [vmem:[%s276 + $0x4c] sm:$0xf]
        %v298 = vld [vmem:[%s276 + $0x50] sm:$0xf]
        %v299 = vld [vmem:[%s276 + $0x54] sm:$0xf]
        %v300 = vld [vmem:[%s276 + $0x58] sm:$0xf]
        %v301 = vld [vmem:[%s276 + $0x5c] sm:$0xf]
        %v302 = vld [vmem:[%s276 + $0x60] sm:$0xf]
        %v303 = vld [vmem:[%s276 + $0x64] sm:$0xf]
        %v304 = vld [vmem:[%s276 + $0x68] sm:$0xf]
        %v305 = vld [vmem:[%s276 + $0x6c] sm:$0xf]
        %v306 = vld [vmem:[%s276 + $0x70] sm:$0xf]
        %v307 = vld [vmem:[%s276 + $0x74] sm:$0xf]
        %v308 = vld [vmem:[%s276 + $0x78] sm:$0xf]
        %v309 = vld [vmem:[%s276 + $0x7c] sm:$0xf]
        %v310 = vld [vmem:[%s1] sm:$0xf]
        %v311 = vld [vmem:[%s1 + $0x4] sm:$0xf]
        %v312 = vld [vmem:[%s1 + $0x8] sm:$0xf]
        %v313 = vld [vmem:[%s1 + $0xc] sm:$0xf]
        %v314 = vld [vmem:[%s1 + $0x10] sm:$0xf]
        %v315 = vld [vmem:[%s1 + $0x14] sm:$0xf]
        %v316 = vld [vmem:[%s1 + $0x18] sm:$0xf]
        %v317 = vld [vmem:[%s1 + $0x1c] sm:$0xf]
        %v318 = vld [vmem:[%s1 + $0x20] sm:$0xf]
        %v319 = vld [vmem:[%s1 + $0x24] sm:$0xf]
        %v320 = vld [vmem:[%s1 + $0x28] sm:$0xf]
        %v321 = vld [vmem:[%s1 + $0x2c] sm:$0xf]
        %v322 = vld [vmem:[%s1 + $0x30] sm:$0xf]
        %v323 = vld [vmem:[%s1 + $0x34] sm:$0xf]
        %v324 = vld [vmem:[%s1 + $0x38] sm:$0xf]
        %v325 = vld [vmem:[%s1 + $0x3c] sm:$0xf]
        %v358 = vunpack.c.l.b16 %v278
        %v359 = vunpack.c.l.b16 %v279
        %v360 = vunpack.c.l.b16 %v280
        %v361 = vunpack.c.l.b16 %v281
        %v362 = vunpack.c.l.b16 %v282
        %v363 = vunpack.c.l.b16 %v283
        %v364 = vunpack.c.l.b16 %v284
        %v365 = vunpack.c.l.b16 %v285
        %v366 = vunpack.c.l.b16 %v286
        %v367 = vunpack.c.l.b16 %v287
        %v368 = vunpack.c.l.b16 %v288
        %v369 = vunpack.c.l.b16 %v289
        %v370 = vunpack.c.l.b16 %v290
        %v371 = vunpack.c.l.b16 %v291
        %v372 = vunpack.c.l.b16 %v292
        %v373 = vunpack.c.l.b16 %v293
        %v374 = vunpack.c.l.b16 %v294
        %v375 = vunpack.c.l.b16 %v295
        %v376 = vunpack.c.l.b16 %v296
        %v377 = vunpack.c.l.b16 %v297
        %v378 = vunpack.c.l.b16 %v298
        %v379 = vunpack.c.l.b16 %v299
        %v380 = vunpack.c.l.b16 %v300
        %v381 = vunpack.c.l.b16 %v301
        %v382 = vunpack.c.l.b16 %v302
        %v383 = vunpack.c.l.b16 %v303
        %v384 = vunpack.c.l.b16 %v304
        %v385 = vunpack.c.l.b16 %v305
        %v386 = vunpack.c.l.b16 %v306
        %v387 = vunpack.c.l.b16 %v307
        %v388 = vunpack.c.l.b16 %v308
        %v389 = vunpack.c.l.b16 %v309
        %v390 = vpack.c.b16 %v359, %v358
        %v391 = vpack.c.b16 %v361, %v360
        %v392 = vpack.c.b16 %v363, %v362
        %v393 = vpack.c.b16 %v365, %v364
        %v394 = vpack.c.b16 %v367, %v366
        %v395 = vpack.c.b16 %v369, %v368
        %v396 = vpack.c.b16 %v371, %v370
        %v397 = vpack.c.b16 %v373, %v372
        %v398 = vpack.c.b16 %v375, %v374
        %v399 = vpack.c.b16 %v377, %v376
        %v400 = vpack.c.b16 %v379, %v378
        %v401 = vpack.c.b16 %v381, %v380
        %v402 = vpack.c.b16 %v383, %v382
        %v403 = vpack.c.b16 %v385, %v384
        %v404 = vpack.c.b16 %v387, %v386
        %v405 = vpack.c.b16 %v389, %v388
        %v438 = vunpack.c.l.b16 %v310
        %v439 = vunpack.c.l.b16 %v311
        %v440 = vunpack.c.l.b16 %v312
        %v441 = vunpack.c.l.b16 %v313
        %v442 = vunpack.c.l.b16 %v314
        %v443 = vunpack.c.l.b16 %v315
        %v444 = vunpack.c.l.b16 %v316
        %v445 = vunpack.c.l.b16 %v317
        %v446 = vunpack.c.l.b16 %v318
        %v447 = vunpack.c.l.b16 %v319
        %v448 = vunpack.c.l.b16 %v320
        %v449 = vunpack.c.l.b16 %v321
        %v450 = vunpack.c.l.b16 %v322
        %v451 = vunpack.c.l.b16 %v323
        %v452 = vunpack.c.l.b16 %v324
        %v453 = vunpack.c.l.b16 %v325
        %v454 = vpack.c.b16 %v439, %v438
        %v455 = vpack.c.b16 %v441, %v440
        %v456 = vpack.c.b16 %v443, %v442
        %v457 = vpack.c.b16 %v445, %v444
        %v458 = vpack.c.b16 %v447, %v446
        %v459 = vpack.c.b16 %v449, %v448
        %v460 = vpack.c.b16 %v451, %v450
        %v461 = vpack.c.b16 %v453, %v452
        %470 = vmatprep.subr.bf16.mxu0 0
        %471 = vmatpush1.bf16.msra.mxu0 %v461
        %472 = vmatprep.subr.bf16.mxu0 0
        %473 = vmatpush1.bf16.msra.mxu0 %v460
        %474 = vmatprep.subr.bf16.mxu0 0
        %475 = vmatpush1.bf16.msra.mxu0 %v459
        %476 = vmatprep.subr.bf16.mxu0 0
        %477 = vmatpush1.bf16.msra.mxu0 %v458
        %478 = vmatprep.subr.bf16.mxu0 0
        %479 = vmatpush1.bf16.msra.mxu0 %v457
        %480 = vmatprep.subr.bf16.mxu0 0
        %481 = vmatpush1.bf16.msra.mxu0 %v456
        %482 = vmatprep.subr.bf16.mxu0 0
        %483 = vmatpush1.bf16.msra.mxu0 %v455
        %484 = vmatprep.subr.bf16.mxu0 0
        %485 = vmatpush1.bf16.msra.mxu0 %v454
        %486 = vmatprep.subr.bf16.mxu0 0
        %487 = vmatpush2.bf16.msra.mxu0 0
        %488 = vmatprep.subr.bf16.mxu0 0
        %489 = vmatpush2.bf16.msra.mxu0 0
        %490 = vmatprep.subr.bf16.mxu0 0
        %491 = vmatpush2.bf16.msra.mxu0 0
        %492 = vmatprep.subr.bf16.mxu0 0
        %493 = vmatpush2.bf16.msra.mxu0 0
        %494 = vmatprep.subr.bf16.mxu0 0
        %495 = vmatpush2.bf16.msra.mxu0 0
        %496 = vmatprep.subr.bf16.mxu0 0
        %497 = vmatpush2.bf16.msra.mxu0 0
        %498 = vmatprep.subr.bf16.mxu0 0
        %499 = vmatpush2.bf16.msra.mxu0 0
        %500 = vmatprep.subr.bf16.mxu0 0
        %501 = vmatpush2.bf16.msra.mxu0 0
        %502 = vmatprep.mubr.bf16.mxu0 0
        %503 = vmatmul.mubr.bf16.gmra.mxu0 %v390
        %v504 = vpop.f32.mrf.mxu0
        %v505 = vadd.f32 0.0, %v504
        %v506 = vpop.f32.mrf.mxu0
        %v507 = vpop.f32.mrf.mxu0
        %v508 = vadd.f32 0.0, %v507
        %v509 = vpop.f32.mrf.mxu0
        %510 = vmatprep.mubr.bf16.mxu0 0
        %511 = vmatmul.mubr.bf16.gmra.mxu0 %v391
        %v512 = vpop.f32.mrf.mxu0
        %v513 = vadd.f32 0.0, %v512
        %v514 = vpop.f32.mrf.mxu0
        %v515 = vpop.f32.mrf.mxu0
        %v516 = vadd.f32 0.0, %v515
        %v517 = vpop.f32.mrf.mxu0
        %518 = vmatprep.mubr.bf16.mxu0 0
        %519 = vmatmul.mubr.bf16.gmra.mxu0 %v392
        %v520 = vpop.f32.mrf.mxu0
        %v521 = vadd.f32 0.0, %v520
        %v522 = vpop.f32.mrf.mxu0
        %v523 = vpop.f32.mrf.mxu0
        %v524 = vadd.f32 0.0, %v523
        %v525 = vpop.f32.mrf.mxu0
        %526 = vmatprep.mubr.bf16.mxu0 0
        %527 = vmatmul.mubr.bf16.gmra.mxu0 %v393
        %v528 = vpop.f32.mrf.mxu0
        %v529 = vadd.f32 0.0, %v528
        %v530 = vpop.f32.mrf.mxu0
        %v531 = vpop.f32.mrf.mxu0
        %v532 = vadd.f32 0.0, %v531
        %v533 = vpop.f32.mrf.mxu0
        %534 = vmatprep.mubr.bf16.mxu0 0
        %535 = vmatmul.mubr.bf16.gmra.mxu0 %v394
        %v536 = vpop.f32.mrf.mxu0
        %v537 = vadd.f32 0.0, %v536
        %v538 = vpop.f32.mrf.mxu0
        %v539 = vpop.f32.mrf.mxu0
        %v540 = vadd.f32 0.0, %v539
        %v541 = vpop.f32.mrf.mxu0
        %542 = vmatprep.mubr.bf16.mxu0 0
        %543 = vmatmul.mubr.bf16.gmra.mxu0 %v395
        %v544 = vpop.f32.mrf.mxu0
        %v545 = vadd.f32 0.0, %v544
        %v546 = vpop.f32.mrf.mxu0
        %v547 = vpop.f32.mrf.mxu0
        %v548 = vadd.f32 0.0, %v547
        %v549 = vpop.f32.mrf.mxu0
        %550 = vmatprep.mubr.bf16.mxu0 0
        %551 = vmatmul.mubr.bf16.gmra.mxu0 %v396
        %v552 = vpop.f32.mrf.mxu0
        %v553 = vadd.f32 0.0, %v552
        %v554 = vpop.f32.mrf.mxu0
        %v555 = vpop.f32.mrf.mxu0
        %v556 = vadd.f32 0.0, %v555
        %v557 = vpop.f32.mrf.mxu0
        %558 = vmatprep.mubr.bf16.mxu0 0
        %559 = vmatmul.mubr.bf16.gmra.mxu0 %v397
        %v560 = vpop.f32.mrf.mxu0
        %v561 = vadd.f32 0.0, %v560
        %v562 = vpop.f32.mrf.mxu0
        %v563 = vpop.f32.mrf.mxu0
        %v564 = vadd.f32 0.0, %v563
        %v565 = vpop.f32.mrf.mxu0
        %566 = vmatprep.mubr.bf16.mxu0 0
        %567 = vmatmul.mubr.bf16.gmra.mxu0 %v398
        %v568 = vpop.f32.mrf.mxu0
        %v569 = vadd.f32 0.0, %v568
        %v570 = vpop.f32.mrf.mxu0
        %v571 = vpop.f32.mrf.mxu0
        %v572 = vadd.f32 0.0, %v571
        %v573 = vpop.f32.mrf.mxu0
        %574 = vmatprep.mubr.bf16.mxu0 0
        %575 = vmatmul.mubr.bf16.gmra.mxu0 %v399
        %v576 = vpop.f32.mrf.mxu0
        %v577 = vadd.f32 0.0, %v576
        %v578 = vpop.f32.mrf.mxu0
        %v579 = vpop.f32.mrf.mxu0
        %v580 = vadd.f32 0.0, %v579
        %v581 = vpop.f32.mrf.mxu0
        %582 = vmatprep.mubr.bf16.mxu0 0
        %583 = vmatmul.mubr.bf16.gmra.mxu0 %v400
        %v584 = vpop.f32.mrf.mxu0
        %v585 = vadd.f32 0.0, %v584
        %v586 = vpop.f32.mrf.mxu0
        %v587 = vpop.f32.mrf.mxu0
        %v588 = vadd.f32 0.0, %v587
        %v589 = vpop.f32.mrf.mxu0
        %590 = vmatprep.mubr.bf16.mxu0 0
        %591 = vmatmul.mubr.bf16.gmra.mxu0 %v401
        %v592 = vpop.f32.mrf.mxu0
        %v593 = vadd.f32 0.0, %v592
        %v594 = vpop.f32.mrf.mxu0
        %v595 = vpop.f32.mrf.mxu0
        %v596 = vadd.f32 0.0, %v595
        %v597 = vpop.f32.mrf.mxu0
        %598 = vmatprep.mubr.bf16.mxu0 0
        %599 = vmatmul.mubr.bf16.gmra.mxu0 %v402
        %v600 = vpop.f32.mrf.mxu0
        %v601 = vadd.f32 0.0, %v600
        %v602 = vpop.f32.mrf.mxu0
        %v603 = vpop.f32.mrf.mxu0
        %v604 = vadd.f32 0.0, %v603
        %v605 = vpop.f32.mrf.mxu0
        %606 = vmatprep.mubr.bf16.mxu0 0
        %607 = vmatmul.mubr.bf16.gmra.mxu0 %v403
        %v608 = vpop.f32.mrf.mxu0
        %v609 = vadd.f32 0.0, %v608
        %v610 = vpop.f32.mrf.mxu0
        %v611 = vpop.f32.mrf.mxu0
        %v612 = vadd.f32 0.0, %v611
        %v613 = vpop.f32.mrf.mxu0
        %614 = vmatprep.mubr.bf16.mxu0 0
        %615 = vmatmul.mubr.bf16.gmra.mxu0 %v404
        %v616 = vpop.f32.mrf.mxu0
        %v617 = vadd.f32 0.0, %v616
        %v618 = vpop.f32.mrf.mxu0
        %v619 = vpop.f32.mrf.mxu0
        %v620 = vadd.f32 0.0, %v619
        %v621 = vpop.f32.mrf.mxu0
        %622 = vmatprep.mubr.bf16.mxu0 0
        %623 = vmatmul.mubr.bf16.gmra.mxu0 %v405
        %v624 = vpop.f32.mrf.mxu0
        %v625 = vadd.f32 0.0, %v624
        %v626 = vpop.f32.mrf.mxu0
        %v627 = vpop.f32.mrf.mxu0
        %v628 = vadd.f32 0.0, %v627
        %v629 = vpop.f32.mrf.mxu0
        %630 = vdwg.mxu0
        %v631 = vld [vmem:[%s2] sm:$0x1]
        %v633 = vlaneseq
        %v634 = vshrl.u32 %v633, 7
        %v635 = vsub.s32 0, %v634
        %v636 = vrot.slane %v631, %v635
        %v638 = vmul.f32 %v505, %v636
        %v639 = vmul.f32 %v508, %v636
        %v640 = vmul.f32 %v513, %v636
        %v641 = vmul.f32 %v516, %v636
        %v642 = vmul.f32 %v521, %v636
        %v643 = vmul.f32 %v524, %v636
        %v644 = vmul.f32 %v529, %v636
        %v645 = vmul.f32 %v532, %v636
        %v646 = vmul.f32 %v537, %v636
        %v647 = vmul.f32 %v540, %v636
        %v648 = vmul.f32 %v545, %v636
        %v649 = vmul.f32 %v548, %v636
        %v650 = vmul.f32 %v553, %v636
        %v651 = vmul.f32 %v556, %v636
        %v652 = vmul.f32 %v561, %v636
        %v653 = vmul.f32 %v564, %v636
        %v654 = vmul.f32 %v569, %v636
        %v655 = vmul.f32 %v572, %v636
        %v656 = vmul.f32 %v577, %v636
        %v657 = vmul.f32 %v580, %v636
        %v658 = vmul.f32 %v585, %v636
        %v659 = vmul.f32 %v588, %v636
        %v660 = vmul.f32 %v593, %v636
        %v661 = vmul.f32 %v596, %v636
        %v662 = vmul.f32 %v601, %v636
        %v663 = vmul.f32 %v604, %v636
        %v664 = vmul.f32 %v609, %v636
        %v665 = vmul.f32 %v612, %v636
        %v666 = vmul.f32 %v617, %v636
        %v667 = vmul.f32 %v620, %v636
        %v668 = vmul.f32 %v625, %v636
        %v669 = vmul.f32 %v628, %v636
        %v670 = vld [vmem:[%s3] sm:$0x1]
        %v672 = vlaneseq
        %v673 = vshrl.u32 %v672, 7
        %v674 = vsub.s32 0, %v673
        %v675 = vrot.slane %v670, %v674
        %v677 = vadd.f32 %v638, %v675
        %v678 = vadd.f32 %v639, %v675
        %v679 = vadd.f32 %v640, %v675
        %v680 = vadd.f32 %v641, %v675
        %v681 = vadd.f32 %v642, %v675
        %v682 = vadd.f32 %v643, %v675
        %v683 = vadd.f32 %v644, %v675
        %v684 = vadd.f32 %v645, %v675
        %v685 = vadd.f32 %v646, %v675
        %v686 = vadd.f32 %v647, %v675
        %v687 = vadd.f32 %v648, %v675
        %v688 = vadd.f32 %v649, %v675
        %v689 = vadd.f32 %v650, %v675
        %v690 = vadd.f32 %v651, %v675
        %v691 = vadd.f32 %v652, %v675
        %v692 = vadd.f32 %v653, %v675
        %v693 = vadd.f32 %v654, %v675
        %v694 = vadd.f32 %v655, %v675
        %v695 = vadd.f32 %v656, %v675
        %v696 = vadd.f32 %v657, %v675
        %v697 = vadd.f32 %v658, %v675
        %v698 = vadd.f32 %v659, %v675
        %v699 = vadd.f32 %v660, %v675
        %v700 = vadd.f32 %v661, %v675
        %v701 = vadd.f32 %v662, %v675
        %v702 = vadd.f32 %v663, %v675
        %v703 = vadd.f32 %v664, %v675
        %v704 = vadd.f32 %v665, %v675
        %v705 = vadd.f32 %v666, %v675
        %v706 = vadd.f32 %v667, %v675
        %v707 = vadd.f32 %v668, %v675
        %v708 = vadd.f32 %v669, %v675
        %v709 = vmax.f32 %v677, 0.0
        %v710 = vmax.f32 %v678, 0.0
        %v711 = vmax.f32 %v679, 0.0
        %v712 = vmax.f32 %v680, 0.0
        %v713 = vmax.f32 %v681, 0.0
        %v714 = vmax.f32 %v682, 0.0
        %v715 = vmax.f32 %v683, 0.0
        %v716 = vmax.f32 %v684, 0.0
        %v717 = vmax.f32 %v685, 0.0
        %v718 = vmax.f32 %v686, 0.0
        %v719 = vmax.f32 %v687, 0.0
        %v720 = vmax.f32 %v688, 0.0
        %v721 = vmax.f32 %v689, 0.0
        %v722 = vmax.f32 %v690, 0.0
        %v723 = vmax.f32 %v691, 0.0
        %v724 = vmax.f32 %v692, 0.0
        %v725 = vmax.f32 %v693, 0.0
        %v726 = vmax.f32 %v694, 0.0
        %v727 = vmax.f32 %v695, 0.0
        %v728 = vmax.f32 %v696, 0.0
        %v729 = vmax.f32 %v697, 0.0
        %v730 = vmax.f32 %v698, 0.0
        %v731 = vmax.f32 %v699, 0.0
        %v732 = vmax.f32 %v700, 0.0
        %v733 = vmax.f32 %v701, 0.0
        %v734 = vmax.f32 %v702, 0.0
        %v735 = vmax.f32 %v703, 0.0
        %v736 = vmax.f32 %v704, 0.0
        %v737 = vmax.f32 %v705, 0.0
        %v738 = vmax.f32 %v706, 0.0
        %v739 = vmax.f32 %v707, 0.0
        %v740 = vmax.f32 %v708, 0.0
        %v741 = vpack.c.bf16 %v710, %v709
        %v742 = vpack.c.bf16 %v712, %v711
        %v743 = vpack.c.bf16 %v714, %v713
        %v744 = vpack.c.bf16 %v716, %v715
        %v745 = vpack.c.bf16 %v718, %v717
        %v746 = vpack.c.bf16 %v720, %v719
        %v747 = vpack.c.bf16 %v722, %v721
        %v748 = vpack.c.bf16 %v724, %v723
        %v749 = vpack.c.bf16 %v726, %v725
        %v750 = vpack.c.bf16 %v728, %v727
        %v751 = vpack.c.bf16 %v730, %v729
        %v752 = vpack.c.bf16 %v732, %v731
        %v753 = vpack.c.bf16 %v734, %v733
        %v754 = vpack.c.bf16 %v736, %v735
        %v755 = vpack.c.bf16 %v738, %v737
        %v756 = vpack.c.bf16 %v740, %v739
        %v773 = vunpack.c.l.b16 %v741
        %v774 = vunpack.c.h.b16 %v741
        %v775 = vunpack.c.l.b16 %v742
        %v776 = vunpack.c.h.b16 %v742
        %v777 = vunpack.c.l.b16 %v743
        %v778 = vunpack.c.h.b16 %v743
        %v779 = vunpack.c.l.b16 %v744
        %v780 = vunpack.c.h.b16 %v744
        %v781 = vunpack.c.l.b16 %v745
        %v782 = vunpack.c.h.b16 %v745
        %v783 = vunpack.c.l.b16 %v746
        %v784 = vunpack.c.h.b16 %v746
        %v785 = vunpack.c.l.b16 %v747
        %v786 = vunpack.c.h.b16 %v747
        %v787 = vunpack.c.l.b16 %v748
        %v788 = vunpack.c.h.b16 %v748
        %v789 = vunpack.c.l.b16 %v749
        %v790 = vunpack.c.h.b16 %v749
        %v791 = vunpack.c.l.b16 %v750
        %v792 = vunpack.c.h.b16 %v750
        %v793 = vunpack.c.l.b16 %v751
        %v794 = vunpack.c.h.b16 %v751
        %v795 = vunpack.c.l.b16 %v752
        %v796 = vunpack.c.h.b16 %v752
        %v797 = vunpack.c.l.b16 %v753
        %v798 = vunpack.c.h.b16 %v753
        %v799 = vunpack.c.l.b16 %v754
        %v800 = vunpack.c.h.b16 %v754
        %v801 = vunpack.c.l.b16 %v755
        %v802 = vunpack.c.h.b16 %v755
        %v803 = vunpack.c.l.b16 %v756
        %v804 = vunpack.c.h.b16 %v756
        %v805 = vpack.c.b16 %v773, %v773
        %v806 = vpack.c.b16 %v774, %v774
        %v807 = vpack.c.b16 %v775, %v775
        %v808 = vpack.c.b16 %v776, %v776
        %v809 = vpack.c.b16 %v777, %v777
        %v810 = vpack.c.b16 %v778, %v778
        %v811 = vpack.c.b16 %v779, %v779
        %v812 = vpack.c.b16 %v780, %v780
        %v813 = vpack.c.b16 %v781, %v781
        %v814 = vpack.c.b16 %v782, %v782
        %v815 = vpack.c.b16 %v783, %v783
        %v816 = vpack.c.b16 %v784, %v784
        %v817 = vpack.c.b16 %v785, %v785
        %v818 = vpack.c.b16 %v786, %v786
        %v819 = vpack.c.b16 %v787, %v787
        %v820 = vpack.c.b16 %v788, %v788
        %v821 = vpack.c.b16 %v789, %v789
        %v822 = vpack.c.b16 %v790, %v790
        %v823 = vpack.c.b16 %v791, %v791
        %v824 = vpack.c.b16 %v792, %v792
        %v825 = vpack.c.b16 %v793, %v793
        %v826 = vpack.c.b16 %v794, %v794
        %v827 = vpack.c.b16 %v795, %v795
        %v828 = vpack.c.b16 %v796, %v796
        %v829 = vpack.c.b16 %v797, %v797
        %v830 = vpack.c.b16 %v798, %v798
        %v831 = vpack.c.b16 %v799, %v799
        %v832 = vpack.c.b16 %v800, %v800
        %v833 = vpack.c.b16 %v801, %v801
        %v834 = vpack.c.b16 %v802, %v802
        %v835 = vpack.c.b16 %v803, %v803
        %v836 = vpack.c.b16 %v804, %v804
        %s869 = scalar_lea.vmem [#allocation2], 20
        %870 = vst [vmem:[%s869 + $0x8] sm:$0xf] %v805
        %871 = vst [vmem:[%s869 + $0xc] sm:$0xf] %v806
        %872 = vst [vmem:[%s869 + $0x1c] sm:$0xf] %v807
        %873 = vst [vmem:[%s869 + $0x20] sm:$0xf] %v808
        %874 = vst [vmem:[%s869 + $0x30] sm:$0xf] %v809
        %875 = vst [vmem:[%s869 + $0x34] sm:$0xf] %v810
        %876 = vst [vmem:[%s869 + $0x44] sm:$0xf] %v811
        %877 = vst [vmem:[%s869 + $0x48] sm:$0xf] %v812
        %878 = vst [vmem:[%s869 + $0x58] sm:$0xf] %v813
        %879 = vst [vmem:[%s869 + $0x5c] sm:$0xf] %v814
        %880 = vst [vmem:[%s869 + $0x6c] sm:$0xf] %v815
        %881 = vst [vmem:[%s869 + $0x70] sm:$0xf] %v816
        %882 = vst [vmem:[%s869 + $0x80] sm:$0xf] %v817
        %883 = vst [vmem:[%s869 + $0x84] sm:$0xf] %v818
        %884 = vst [vmem:[%s869 + $0x94] sm:$0xf] %v819
        %885 = vst [vmem:[%s869 + $0x98] sm:$0xf] %v820
        %886 = vst [vmem:[%s869 + $0xa8] sm:$0xf] %v821
        %887 = vst [vmem:[%s869 + $0xac] sm:$0xf] %v822
        %888 = vst [vmem:[%s869 + $0xbc] sm:$0xf] %v823
        %889 = vst [vmem:[%s869 + $0xc0] sm:$0xf] %v824
        %890 = vst [vmem:[%s869 + $0xd0] sm:$0xf] %v825
        %891 = vst [vmem:[%s869 + $0xd4] sm:$0xf] %v826
        %892 = vst [vmem:[%s869 + $0xe4] sm:$0xf] %v827
        %893 = vst [vmem:[%s869 + $0xe8] sm:$0xf] %v828
        %894 = vst [vmem:[%s869 + $0xf8] sm:$0xf] %v829
        %895 = vst [vmem:[%s869 + $0xfc] sm:$0xf] %v830
        %896 = vst [vmem:[%s869 + $0x10c] sm:$0xf] %v831
        %897 = vst [vmem:[%s869 + $0x110] sm:$0xf] %v832
        %898 = vst [vmem:[%s869 + $0x120] sm:$0xf] %v833
        %899 = vst [vmem:[%s869 + $0x124] sm:$0xf] %v834
        %900 = vst [vmem:[%s869 + $0x134] sm:$0xf] %v835
        %901 = vst [vmem:[%s869 + $0x138] sm:$0xf] %v836
        %vm902 = vcmask 1043459
        %vm903 = vsmask.f32 7950
        %vm904 = vmand %vm902, %vm903
        %v905 = vld [vmem:[#allocation2 + $0x4] sm:$0x8]
        %v906 = vsel %vm904, 0, %v905
        %907 = vst [vmem:[#allocation2 + $0x4] sm:$0x8] %v906
        %908 = vst [vmem:[#allocation2 + $0x8] sm:$0xf] 0
        %909 = vst [vmem:[#allocation2 + $0xc] sm:$0xf] 0
        %vm910 = vcmask 1040384
        %vm911 = vsmask.f32 256
        %vm912 = vmand %vm910, %vm911
        %v913 = vld [vmem:[#allocation2 + $0x10] sm:$0x1]
        %v914 = vsel %vm912, 0, %v913
        %915 = vst [vmem:[#allocation2 + $0x10] sm:$0x1] %v914
        %s916 = scalar_lea.vmem [#allocation2], 340
        %v917 = vld [vmem:[%s916 + $0x4] sm:$0x8]
        %v918 = vsel %vm904, 0, %v917
        %919 = vst [vmem:[%s916 + $0x4] sm:$0x8] %v918
        %920 = vst [vmem:[%s916 + $0x8] sm:$0xf] 0
        %921 = vst [vmem:[%s916 + $0xc] sm:$0xf] 0
        %v922 = vld [vmem:[%s916 + $0x10] sm:$0x1]
        %v923 = vsel %vm912, 0, %v922
        %924 = vst [vmem:[%s916 + $0x10] sm:$0x1] %v923
        %v925 = vld [vmem:[%s869 + $0x4] sm:$0x8]
        %v926 = vsel %vm904, 0, %v925
        %927 = vst [vmem:[%s869 + $0x4] sm:$0x8] %v926
        %v928 = vld [vmem:[%s869 + $0x18] sm:$0x8]
        %v929 = vsel %vm904, 0, %v928
        %930 = vst [vmem:[%s869 + $0x18] sm:$0x8] %v929
        %v931 = vld [vmem:[%s869 + $0x2c] sm:$0x8]
        %v932 = vsel %vm904, 0, %v931
        %933 = vst [vmem:[%s869 + $0x2c] sm:$0x8] %v932
        %v934 = vld [vmem:[%s869 + $0x40] sm:$0x8]
        %v935 = vsel %vm904, 0, %v934
        %936 = vst [vmem:[%s869 + $0x40] sm:$0x8] %v935
        %v937 = vld [vmem:[%s869 + $0x54] sm:$0x8]
        %v938 = vsel %vm904, 0, %v937
        %939 = vst [vmem:[%s869 + $0x54] sm:$0x8] %v938
        %v940 = vld [vmem:[%s869 + $0x68] sm:$0x8]
        %v941 = vsel %vm904, 0, %v940
        %942 = vst [vmem:[%s869 + $0x68] sm:$0x8] %v941
        %v943 = vld [vmem:[%s869 + $0x7c] sm:$0x8]
        %v944 = vsel %vm904, 0, %v943
        %945 = vst [vmem:[%s869 + $0x7c] sm:$0x8] %v944
        %v946 = vld [vmem:[%s869 + $0x90] sm:$0x8]
        %v947 = vsel %vm904, 0, %v946
        %948 = vst [vmem:[%s869 + $0x90] sm:$0x8] %v947
        %v949 = vld [vmem:[%s869 + $0xa4] sm:$0x8]
        %v950 = vsel %vm904, 0, %v949
        %951 = vst [vmem:[%s869 + $0xa4] sm:$0x8] %v950
        %v952 = vld [vmem:[%s869 + $0xb8] sm:$0x8]
        %v953 = vsel %vm904, 0, %v952
        %954 = vst [vmem:[%s869 + $0xb8] sm:$0x8] %v953
        %v955 = vld [vmem:[%s869 + $0xcc] sm:$0x8]
        %v956 = vsel %vm904, 0, %v955
        %957 = vst [vmem:[%s869 + $0xcc] sm:$0x8] %v956
        %v958 = vld [vmem:[%s869 + $0xe0] sm:$0x8]
        %v959 = vsel %vm904, 0, %v958
        %960 = vst [vmem:[%s869 + $0xe0] sm:$0x8] %v959
        %v961 = vld [vmem:[%s869 + $0xf4] sm:$0x8]
        %v962 = vsel %vm904, 0, %v961
        %963 = vst [vmem:[%s869 + $0xf4] sm:$0x8] %v962
        %v964 = vld [vmem:[%s869 + $0x108] sm:$0x8]
        %v965 = vsel %vm904, 0, %v964
        %966 = vst [vmem:[%s869 + $0x108] sm:$0x8] %v965
        %v967 = vld [vmem:[%s869 + $0x11c] sm:$0x8]
        %v968 = vsel %vm904, 0, %v967
        %969 = vst [vmem:[%s869 + $0x11c] sm:$0x8] %v968
        %v970 = vld [vmem:[%s869 + $0x130] sm:$0x8]
        %v971 = vsel %vm904, 0, %v970
        %972 = vst [vmem:[%s869 + $0x130] sm:$0x8] %v971
        %v973 = vld [vmem:[%s869 + $0x10] sm:$0x1]
        %v974 = vsel %vm912, 0, %v973
        %975 = vst [vmem:[%s869 + $0x10] sm:$0x1] %v974
        %v976 = vld [vmem:[%s869 + $0x24] sm:$0x1]
        %v977 = vsel %vm912, 0, %v976
        %978 = vst [vmem:[%s869 + $0x24] sm:$0x1] %v977
        %v979 = vld [vmem:[%s869 + $0x38] sm:$0x1]
        %v980 = vsel %vm912, 0, %v979
        %981 = vst [vmem:[%s869 + $0x38] sm:$0x1] %v980
        %v982 = vld [vmem:[%s869 + $0x4c] sm:$0x1]
        %v983 = vsel %vm912, 0, %v982
        %984 = vst [vmem:[%s869 + $0x4c] sm:$0x1] %v983
        %v985 = vld [vmem:[%s869 + $0x60] sm:$0x1]
        %v986 = vsel %vm912, 0, %v985
        %987 = vst [vmem:[%s869 + $0x60] sm:$0x1] %v986
        %v988 = vld [vmem:[%s869 + $0x74] sm:$0x1]
        %v989 = vsel %vm912, 0, %v988
        %990 = vst [vmem:[%s869 + $0x74] sm:$0x1] %v989
        %v991 = vld [vmem:[%s869 + $0x88] sm:$0x1]
        %v992 = vsel %vm912, 0, %v991
        %993 = vst [vmem:[%s869 + $0x88] sm:$0x1] %v992
        %v994 = vld [vmem:[%s869 + $0x9c] sm:$0x1]
        %v995 = vsel %vm912, 0, %v994
        %996 = vst [vmem:[%s869 + $0x9c] sm:$0x1] %v995
        %v997 = vld [vmem:[%s869 + $0xb0] sm:$0x1]
        %v998 = vsel %vm912, 0, %v997
        %999 = vst [vmem:[%s869 + $0xb0] sm:$0x1] %v998
        %v1000 = vld [vmem:[%s869 + $0xc4] sm:$0x1]
        %v1001 = vsel %vm912, 0, %v1000
        %1002 = vst [vmem:[%s869 + $0xc4] sm:$0x1] %v1001
        %v1003 = vld [vmem:[%s869 + $0xd8] sm:$0x1]
        %v1004 = vsel %vm912, 0, %v1003
        %1005 = vst [vmem:[%s869 + $0xd8] sm:$0x1] %v1004
        %v1006 = vld [vmem:[%s869 + $0xec] sm:$0x1]
        %v1007 = vsel %vm912, 0, %v1006
        %1008 = vst [vmem:[%s869 + $0xec] sm:$0x1] %v1007
        %v1009 = vld [vmem:[%s869 + $0x100] sm:$0x1]
        %v1010 = vsel %vm912, 0, %v1009
        %1011 = vst [vmem:[%s869 + $0x100] sm:$0x1] %v1010
        %v1012 = vld [vmem:[%s869 + $0x114] sm:$0x1]
        %v1013 = vsel %vm912, 0, %v1012
        %1014 = vst [vmem:[%s869 + $0x114] sm:$0x1] %v1013
        %v1015 = vld [vmem:[%s869 + $0x128] sm:$0x1]
        %v1016 = vsel %vm912, 0, %v1015
        %1017 = vst [vmem:[%s869 + $0x128] sm:$0x1] %v1016
        %v1018 = vld [vmem:[%s869 + $0x13c] sm:$0x1]
        %v1019 = vsel %vm912, 0, %v1018
        %1020 = vst [vmem:[%s869 + $0x13c] sm:$0x1] %v1019
        %v1021 = vld [vmem:[%s5] sm:$0x3]
        %v1022 = vld [vmem:[%s6] sm:$0x3]
        %v1023 = vld [vmem:[#allocation2 + $0x4] sm:$0x8]
        %v1024 = vld [vmem:[#allocation2 + $0x8] sm:$0xf]
        %v1025 = vld [vmem:[#allocation2 + $0xc] sm:$0xf]
        %v1026 = vld [vmem:[#allocation2 + $0x18] sm:$0x8]
        %v1027 = vld [vmem:[#allocation2 + $0x1c] sm:$0xf]
        %v1028 = vld [vmem:[#allocation2 + $0x20] sm:$0xf]
        %v1029 = vld [vmem:[#allocation2 + $0x2c] sm:$0x8]
        %v1030 = vld [vmem:[#allocation2 + $0x30] sm:$0xf]
        %v1031 = vld [vmem:[#allocation2 + $0x34] sm:$0xf]
        %v1032 = vld [vmem:[#allocation2 + $0x40] sm:$0x8]
        %v1033 = vld [vmem:[#allocation2 + $0x44] sm:$0xf]
        %v1034 = vld [vmem:[#allocation2 + $0x48] sm:$0xf]
        %v1035 = vld [vmem:[#allocation2 + $0x54] sm:$0x8]
        %v1036 = vld [vmem:[#allocation2 + $0x58] sm:$0xf]
        %v1037 = vld [vmem:[#allocation2 + $0x5c] sm:$0xf]
        %v1038 = vld [vmem:[#allocation2 + $0x68] sm:$0x8]
        %v1039 = vld [vmem:[#allocation2 + $0x6c] sm:$0xf]
        %v1040 = vld [vmem:[#allocation2 + $0x70] sm:$0xf]
        %v1041 = vld [vmem:[#allocation2 + $0x7c] sm:$0x8]
        %v1042 = vld [vmem:[#allocation2 + $0x80] sm:$0xf]
        %v1043 = vld [vmem:[#allocation2 + $0x84] sm:$0xf]
        %v1044 = vld [vmem:[#allocation2 + $0x90] sm:$0x8]
        %v1045 = vld [vmem:[#allocation2 + $0x94] sm:$0xf]
        %v1046 = vld [vmem:[#allocation2 + $0x98] sm:$0xf]
        %v1047 = vld [vmem:[#allocation2 + $0xa4] sm:$0x8]
        %v1048 = vld [vmem:[#allocation2 + $0xa8] sm:$0xf]
        %v1049 = vld [vmem:[#allocation2 + $0xac] sm:$0xf]
        %v1050 = vld [vmem:[#allocation2 + $0xb8] sm:$0x8]
        %v1051 = vld [vmem:[#allocation2 + $0xbc] sm:$0xf]
        %v1052 = vld [vmem:[#allocation2 + $0xc0] sm:$0xf]
        %v1053 = vld [vmem:[#allocation2 + $0xcc] sm:$0x8]
        %v1054 = vld [vmem:[#allocation2 + $0xd0] sm:$0xf]
        %v1055 = vld [vmem:[#allocation2 + $0xd4] sm:$0xf]
        %v1056 = vld [vmem:[#allocation2 + $0xe0] sm:$0x8]
        %v1057 = vld [vmem:[#allocation2 + $0xe4] sm:$0xf]
        %v1058 = vld [vmem:[#allocation2 + $0xe8] sm:$0xf]
        %v1059 = vld [vmem:[#allocation2 + $0xf4] sm:$0x8]
        %v1060 = vld [vmem:[#allocation2 + $0xf8] sm:$0xf]
        %v1061 = vld [vmem:[#allocation2 + $0xfc] sm:$0xf]
        %v1062 = vld [vmem:[#allocation2 + $0x108] sm:$0x8]
        %v1063 = vld [vmem:[#allocation2 + $0x10c] sm:$0xf]
        %v1064 = vld [vmem:[#allocation2 + $0x110] sm:$0xf]
        %v1065 = vld [vmem:[#allocation2 + $0x11c] sm:$0x8]
        %v1066 = vld [vmem:[#allocation2 + $0x120] sm:$0xf]
        %v1067 = vld [vmem:[#allocation2 + $0x124] sm:$0xf]
        %v1068 = vld [vmem:[#allocation2 + $0x130] sm:$0x8]
        %v1069 = vld [vmem:[#allocation2 + $0x134] sm:$0xf]
        %v1070 = vld [vmem:[#allocation2 + $0x138] sm:$0xf]
        %v1071 = vld [vmem:[%s869 + $0x4] sm:$0x8]
        %v1072 = vld [vmem:[%s869 + $0x8] sm:$0xf]
        %v1073 = vld [vmem:[%s869 + $0xc] sm:$0xf]
        %v1074 = vld [vmem:[%s869 + $0x18] sm:$0x8]
        %v1075 = vld [vmem:[%s869 + $0x1c] sm:$0xf]
        %v1076 = vld [vmem:[%s869 + $0x20] sm:$0xf]
        %v1077 = vld [vmem:[%s869 + $0x2c] sm:$0x8]
        %v1078 = vld [vmem:[%s869 + $0x30] sm:$0xf]
        %v1079 = vld [vmem:[%s869 + $0x34] sm:$0xf]
        %v1080 = vld [vmem:[%s869 + $0x40] sm:$0x8]
        %v1081 = vld [vmem:[%s869 + $0x44] sm:$0xf]
        %v1082 = vld [vmem:[%s869 + $0x48] sm:$0xf]
        %v1083 = vld [vmem:[%s869 + $0x54] sm:$0x8]
        %v1084 = vld [vmem:[%s869 + $0x58] sm:$0xf]
        %v1085 = vld [vmem:[%s869 + $0x5c] sm:$0xf]
        %v1086 = vld [vmem:[%s869 + $0x68] sm:$0x8]
        %v1087 = vld [vmem:[%s869 + $0x6c] sm:$0xf]
        %v1088 = vld [vmem:[%s869 + $0x70] sm:$0xf]
        %v1089 = vld [vmem:[%s869 + $0x7c] sm:$0x8]
        %v1090 = vld [vmem:[%s869 + $0x80] sm:$0xf]
        %v1091 = vld [vmem:[%s869 + $0x84] sm:$0xf]
        %v1092 = vld [vmem:[%s869 + $0x90] sm:$0x8]
        %v1093 = vld [vmem:[%s869 + $0x94] sm:$0xf]
        %v1094 = vld [vmem:[%s869 + $0x98] sm:$0xf]
        %v1095 = vld [vmem:[%s869 + $0xa4] sm:$0x8]
        %v1096 = vld [vmem:[%s869 + $0xa8] sm:$0xf]
        %v1097 = vld [vmem:[%s869 + $0xac] sm:$0xf]
        %v1098 = vld [vmem:[%s869 + $0xb8] sm:$0x8]
        %v1099 = vld [vmem:[%s869 + $0xbc] sm:$0xf]
        %v1100 = vld [vmem:[%s869 + $0xc0] sm:$0xf]
        %v1101 = vld [vmem:[%s869 + $0xcc] sm:$0x8]
        %v1102 = vld [vmem:[%s869 + $0xd0] sm:$0xf]
        %v1103 = vld [vmem:[%s869 + $0xd4] sm:$0xf]
        %v1104 = vld [vmem:[%s869 + $0xe0] sm:$0x8]
        %v1105 = vld [vmem:[%s869 + $0xe4] sm:$0xf]
        %v1106 = vld [vmem:[%s869 + $0xe8] sm:$0xf]
        %v1107 = vld [vmem:[%s869 + $0xf4] sm:$0x8]
        %v1108 = vld [vmem:[%s869 + $0xf8] sm:$0xf]
        %v1109 = vld [vmem:[%s869 + $0xfc] sm:$0xf]
        %v1110 = vld [vmem:[%s869 + $0x108] sm:$0x8]
        %v1111 = vld [vmem:[%s869 + $0x10c] sm:$0xf]
        %v1112 = vld [vmem:[%s869 + $0x110] sm:$0xf]
        %v1113 = vld [vmem:[%s869 + $0x11c] sm:$0x8]
        %v1114 = vld [vmem:[%s869 + $0x120] sm:$0xf]
        %v1115 = vld [vmem:[%s869 + $0x124] sm:$0xf]
        %v1116 = vld [vmem:[%s869 + $0x130] sm:$0x8]
        %v1117 = vld [vmem:[%s869 + $0x134] sm:$0xf]
        %v1118 = vld [vmem:[%s869 + $0x138] sm:$0xf]
        %s1119 = scalar_lea.vmem [#allocation2], 40
        %v1120 = vld [vmem:[%s1119 + $0x4] sm:$0x8]
        %v1121 = vld [vmem:[%s1119 + $0x8] sm:$0xf]
        %v1122 = vld [vmem:[%s1119 + $0xc] sm:$0xf]
        %v1123 = vld [vmem:[%s1119 + $0x18] sm:$0x8]
        %v1124 = vld [vmem:[%s1119 + $0x1c] sm:$0xf]
        %v1125 = vld [vmem:[%s1119 + $0x20] sm:$0xf]
        %v1126 = vld [vmem:[%s1119 + $0x2c] sm:$0x8]
        %v1127 = vld [vmem:[%s1119 + $0x30] sm:$0xf]
        %v1128 = vld [vmem:[%s1119 + $0x34] sm:$0xf]
        %v1129 = vld [vmem:[%s1119 + $0x40] sm:$0x8]
        %v1130 = vld [vmem:[%s1119 + $0x44] sm:$0xf]
        %v1131 = vld [vmem:[%s1119 + $0x48] sm:$0xf]
        %v1132 = vld [vmem:[%s1119 + $0x54] sm:$0x8]
        %v1133 = vld [vmem:[%s1119 + $0x58] sm:$0xf]
        %v1134 = vld [vmem:[%s1119 + $0x5c] sm:$0xf]
        %v1135 = vld [vmem:[%s1119 + $0x68] sm:$0x8]
        %v1136 = vld [vmem:[%s1119 + $0x6c] sm:$0xf]
        %v1137 = vld [vmem:[%s1119 + $0x70] sm:$0xf]
        %v1138 = vld [vmem:[%s1119 + $0x7c] sm:$0x8]
        %v1139 = vld [vmem:[%s1119 + $0x80] sm:$0xf]
        %v1140 = vld [vmem:[%s1119 + $0x84] sm:$0xf]
        %v1141 = vld [vmem:[%s1119 + $0x90] sm:$0x8]
        %v1142 = vld [vmem:[%s1119 + $0x94] sm:$0xf]
        %v1143 = vld [vmem:[%s1119 + $0x98] sm:$0xf]
        %v1144 = vld [vmem:[%s1119 + $0xa4] sm:$0x8]
        %v1145 = vld [vmem:[%s1119 + $0xa8] sm:$0xf]
        %v1146 = vld [vmem:[%s1119 + $0xac] sm:$0xf]
        %v1147 = vld [vmem:[%s1119 + $0xb8] sm:$0x8]
        %v1148 = vld [vmem:[%s1119 + $0xbc] sm:$0xf]
        %v1149 = vld [vmem:[%s1119 + $0xc0] sm:$0xf]
        %v1150 = vld [vmem:[%s1119 + $0xcc] sm:$0x8]
        %v1151 = vld [vmem:[%s1119 + $0xd0] sm:$0xf]
        %v1152 = vld [vmem:[%s1119 + $0xd4] sm:$0xf]
        %v1153 = vld [vmem:[%s1119 + $0xe0] sm:$0x8]
        %v1154 = vld [vmem:[%s1119 + $0xe4] sm:$0xf]
        %v1155 = vld [vmem:[%s1119 + $0xe8] sm:$0xf]
        %v1156 = vld [vmem:[%s1119 + $0xf4] sm:$0x8]
        %v1157 = vld [vmem:[%s1119 + $0xf8] sm:$0xf]
        %v1158 = vld [vmem:[%s1119 + $0xfc] sm:$0xf]
        %v1159 = vld [vmem:[%s1119 + $0x108] sm:$0x8]
        %v1160 = vld [vmem:[%s1119 + $0x10c] sm:$0xf]
        %v1161 = vld [vmem:[%s1119 + $0x110] sm:$0xf]
        %v1162 = vld [vmem:[%s1119 + $0x11c] sm:$0x8]
        %v1163 = vld [vmem:[%s1119 + $0x120] sm:$0xf]
        %v1164 = vld [vmem:[%s1119 + $0x124] sm:$0xf]
        %v1165 = vld [vmem:[%s1119 + $0x130] sm:$0x8]
        %v1166 = vld [vmem:[%s1119 + $0x134] sm:$0xf]
        %v1167 = vld [vmem:[%s1119 + $0x138] sm:$0xf]
        %v1216 = vunpack.c.l.b16 %v1023
        %v1217 = vunpack.c.l.b16 %v1024
        %v1218 = vunpack.c.l.b16 %v1025
        %v1219 = vunpack.c.l.b16 %v1026
        %v1220 = vunpack.c.l.b16 %v1027
        %v1221 = vunpack.c.l.b16 %v1028
        %v1222 = vunpack.c.l.b16 %v1029
        %v1223 = vunpack.c.l.b16 %v1030
        %v1224 = vunpack.c.l.b16 %v1031
        %v1225 = vunpack.c.l.b16 %v1032
        %v1226 = vunpack.c.l.b16 %v1033
        %v1227 = vunpack.c.l.b16 %v1034
        %v1228 = vunpack.c.l.b16 %v1035
        %v1229 = vunpack.c.l.b16 %v1036
        %v1230 = vunpack.c.l.b16 %v1037
        %v1231 = vunpack.c.l.b16 %v1038
        %v1232 = vunpack.c.l.b16 %v1039
        %v1233 = vunpack.c.l.b16 %v1040
        %v1234 = vunpack.c.l.b16 %v1041
        %v1235 = vunpack.c.l.b16 %v1042
        %v1236 = vunpack.c.l.b16 %v1043
        %v1237 = vunpack.c.l.b16 %v1044
        %v1238 = vunpack.c.l.b16 %v1045
        %v1239 = vunpack.c.l.b16 %v1046
        %v1240 = vunpack.c.l.b16 %v1047
        %v1241 = vunpack.c.l.b16 %v1048
        %v1242 = vunpack.c.l.b16 %v1049
        %v1243 = vunpack.c.l.b16 %v1050
        %v1244 = vunpack.c.l.b16 %v1051
        %v1245 = vunpack.c.l.b16 %v1052
        %v1246 = vunpack.c.l.b16 %v1053
        %v1247 = vunpack.c.l.b16 %v1054
        %v1248 = vunpack.c.l.b16 %v1055
        %v1249 = vunpack.c.l.b16 %v1056
        %v1250 = vunpack.c.l.b16 %v1057
        %v1251 = vunpack.c.l.b16 %v1058
        %v1252 = vunpack.c.l.b16 %v1059
        %v1253 = vunpack.c.l.b16 %v1060
        %v1254 = vunpack.c.l.b16 %v1061
        %v1255 = vunpack.c.l.b16 %v1062
        %v1256 = vunpack.c.l.b16 %v1063
        %v1257 = vunpack.c.l.b16 %v1064
        %v1258 = vunpack.c.l.b16 %v1065
        %v1259 = vunpack.c.l.b16 %v1066
        %v1260 = vunpack.c.l.b16 %v1067
        %v1261 = vunpack.c.l.b16 %v1068
        %v1262 = vunpack.c.l.b16 %v1069
        %v1263 = vunpack.c.l.b16 %v1070
        %v1264 = vpack.c.b16 %v1217, %v1216
        %v1265 = vpack.c.b16 %v1218, %v1218
        %v1266 = vpack.c.b16 %v1220, %v1219
        %v1267 = vpack.c.b16 %v1221, %v1221
        %v1268 = vpack.c.b16 %v1223, %v1222
        %v1269 = vpack.c.b16 %v1224, %v1224
        %v1270 = vpack.c.b16 %v1226, %v1225
        %v1271 = vpack.c.b16 %v1227, %v1227
        %v1272 = vpack.c.b16 %v1229, %v1228
        %v1273 = vpack.c.b16 %v1230, %v1230
        %v1274 = vpack.c.b16 %v1232, %v1231
        %v1275 = vpack.c.b16 %v1233, %v1233
        %v1276 = vpack.c.b16 %v1235, %v1234
        %v1277 = vpack.c.b16 %v1236, %v1236
        %v1278 = vpack.c.b16 %v1238, %v1237
        %v1279 = vpack.c.b16 %v1239, %v1239
        %v1280 = vpack.c.b16 %v1241, %v1240
        %v1281 = vpack.c.b16 %v1242, %v1242
        %v1282 = vpack.c.b16 %v1244, %v1243
        %v1283 = vpack.c.b16 %v1245, %v1245
        %v1284 = vpack.c.b16 %v1247, %v1246
        %v1285 = vpack.c.b16 %v1248, %v1248
        %v1286 = vpack.c.b16 %v1250, %v1249
        %v1287 = vpack.c.b16 %v1251, %v1251
        %v1288 = vpack.c.b16 %v1253, %v1252
        %v1289 = vpack.c.b16 %v1254, %v1254
        %v1290 = vpack.c.b16 %v1256, %v1255
        %v1291 = vpack.c.b16 %v1257, %v1257
        %v1292 = vpack.c.b16 %v1259, %v1258
        %v1293 = vpack.c.b16 %v1260, %v1260
        %v1294 = vpack.c.b16 %v1262, %v1261
        %v1295 = vpack.c.b16 %v1263, %v1263
        %v1344 = vunpack.c.l.b16 %v1071
        %v1345 = vunpack.c.l.b16 %v1072
        %v1346 = vunpack.c.l.b16 %v1073
        %v1347 = vunpack.c.l.b16 %v1074
        %v1348 = vunpack.c.l.b16 %v1075
        %v1349 = vunpack.c.l.b16 %v1076
        %v1350 = vunpack.c.l.b16 %v1077
        %v1351 = vunpack.c.l.b16 %v1078
        %v1352 = vunpack.c.l.b16 %v1079
        %v1353 = vunpack.c.l.b16 %v1080
        %v1354 = vunpack.c.l.b16 %v1081
        %v1355 = vunpack.c.l.b16 %v1082
        %v1356 = vunpack.c.l.b16 %v1083
        %v1357 = vunpack.c.l.b16 %v1084
        %v1358 = vunpack.c.l.b16 %v1085
        %v1359 = vunpack.c.l.b16 %v1086
        %v1360 = vunpack.c.l.b16 %v1087
        %v1361 = vunpack.c.l.b16 %v1088
        %v1362 = vunpack.c.l.b16 %v1089
        %v1363 = vunpack.c.l.b16 %v1090
        %v1364 = vunpack.c.l.b16 %v1091
        %v1365 = vunpack.c.l.b16 %v1092
        %v1366 = vunpack.c.l.b16 %v1093
        %v1367 = vunpack.c.l.b16 %v1094
        %v1368 = vunpack.c.l.b16 %v1095
        %v1369 = vunpack.c.l.b16 %v1096
        %v1370 = vunpack.c.l.b16 %v1097
        %v1371 = vunpack.c.l.b16 %v1098
        %v1372 = vunpack.c.l.b16 %v1099
        %v1373 = vunpack.c.l.b16 %v1100
        %v1374 = vunpack.c.l.b16 %v1101
        %v1375 = vunpack.c.l.b16 %v1102
        %v1376 = vunpack.c.l.b16 %v1103
        %v1377 = vunpack.c.l.b16 %v1104
        %v1378 = vunpack.c.l.b16 %v1105
        %v1379 = vunpack.c.l.b16 %v1106
        %v1380 = vunpack.c.l.b16 %v1107
        %v1381 = vunpack.c.l.b16 %v1108
        %v1382 = vunpack.c.l.b16 %v1109
        %v1383 = vunpack.c.l.b16 %v1110
        %v1384 = vunpack.c.l.b16 %v1111
        %v1385 = vunpack.c.l.b16 %v1112
        %v1386 = vunpack.c.l.b16 %v1113
        %v1387 = vunpack.c.l.b16 %v1114
        %v1388 = vunpack.c.l.b16 %v1115
        %v1389 = vunpack.c.l.b16 %v1116
        %v1390 = vunpack.c.l.b16 %v1117
        %v1391 = vunpack.c.l.b16 %v1118
        %v1392 = vpack.c.b16 %v1345, %v1344
        %v1393 = vpack.c.b16 %v1346, %v1346
        %v1394 = vpack.c.b16 %v1348, %v1347
        %v1395 = vpack.c.b16 %v1349, %v1349
        %v1396 = vpack.c.b16 %v1351, %v1350
        %v1397 = vpack.c.b16 %v1352, %v1352
        %v1398 = vpack.c.b16 %v1354, %v1353
        %v1399 = vpack.c.b16 %v1355, %v1355
        %v1400 = vpack.c.b16 %v1357, %v1356
        %v1401 = vpack.c.b16 %v1358, %v1358
        %v1402 = vpack.c.b16 %v1360, %v1359
        %v1403 = vpack.c.b16 %v1361, %v1361
        %v1404 = vpack.c.b16 %v1363, %v1362
        %v1405 = vpack.c.b16 %v1364, %v1364
        %v1406 = vpack.c.b16 %v1366, %v1365
        %v1407 = vpack.c.b16 %v1367, %v1367
        %v1408 = vpack.c.b16 %v1369, %v1368
        %v1409 = vpack.c.b16 %v1370, %v1370
        %v1410 = vpack.c.b16 %v1372, %v1371
        %v1411 = vpack.c.b16 %v1373, %v1373
        %v1412 = vpack.c.b16 %v1375, %v1374
        %v1413 = vpack.c.b16 %v1376, %v1376
        %v1414 = vpack.c.b16 %v1378, %v1377
        %v1415 = vpack.c.b16 %v1379, %v1379
        %v1416 = vpack.c.b16 %v1381, %v1380
        %v1417 = vpack.c.b16 %v1382, %v1382
        %v1418 = vpack.c.b16 %v1384, %v1383
        %v1419 = vpack.c.b16 %v1385, %v1385
        %v1420 = vpack.c.b16 %v1387, %v1386
        %v1421 = vpack.c.b16 %v1388, %v1388
        %v1422 = vpack.c.b16 %v1390, %v1389
        %v1423 = vpack.c.b16 %v1391, %v1391
        %v1472 = vunpack.c.l.b16 %v1120
        %v1473 = vunpack.c.l.b16 %v1121
        %v1474 = vunpack.c.l.b16 %v1122
        %v1475 = vunpack.c.l.b16 %v1123
        %v1476 = vunpack.c.l.b16 %v1124
        %v1477 = vunpack.c.l.b16 %v1125
        %v1478 = vunpack.c.l.b16 %v1126
        %v1479 = vunpack.c.l.b16 %v1127
        %v1480 = vunpack.c.l.b16 %v1128
        %v1481 = vunpack.c.l.b16 %v1129
        %v1482 = vunpack.c.l.b16 %v1130
        %v1483 = vunpack.c.l.b16 %v1131
        %v1484 = vunpack.c.l.b16 %v1132
        %v1485 = vunpack.c.l.b16 %v1133
        %v1486 = vunpack.c.l.b16 %v1134
        %v1487 = vunpack.c.l.b16 %v1135
        %v1488 = vunpack.c.l.b16 %v1136
        %v1489 = vunpack.c.l.b16 %v1137
        %v1490 = vunpack.c.l.b16 %v1138
        %v1491 = vunpack.c.l.b16 %v1139
        %v1492 = vunpack.c.l.b16 %v1140
        %v1493 = vunpack.c.l.b16 %v1141
        %v1494 = vunpack.c.l.b16 %v1142
        %v1495 = vunpack.c.l.b16 %v1143
        %v1496 = vunpack.c.l.b16 %v1144
        %v1497 = vunpack.c.l.b16 %v1145
        %v1498 = vunpack.c.l.b16 %v1146
        %v1499 = vunpack.c.l.b16 %v1147
        %v1500 = vunpack.c.l.b16 %v1148
        %v1501 = vunpack.c.l.b16 %v1149
        %v1502 = vunpack.c.l.b16 %v1150
        %v1503 = vunpack.c.l.b16 %v1151
        %v1504 = vunpack.c.l.b16 %v1152
        %v1505 = vunpack.c.l.b16 %v1153
        %v1506 = vunpack.c.l.b16 %v1154
        %v1507 = vunpack.c.l.b16 %v1155
        %v1508 = vunpack.c.l.b16 %v1156
        %v1509 = vunpack.c.l.b16 %v1157
        %v1510 = vunpack.c.l.b16 %v1158
        %v1511 = vunpack.c.l.b16 %v1159
        %v1512 = vunpack.c.l.b16 %v1160
        %v1513 = vunpack.c.l.b16 %v1161
        %v1514 = vunpack.c.l.b16 %v1162
        %v1515 = vunpack.c.l.b16 %v1163
        %v1516 = vunpack.c.l.b16 %v1164
        %v1517 = vunpack.c.l.b16 %v1165
        %v1518 = vunpack.c.l.b16 %v1166
        %v1519 = vunpack.c.l.b16 %v1167
        %v1520 = vpack.c.b16 %v1473, %v1472
        %v1521 = vpack.c.b16 %v1474, %v1474
        %v1522 = vpack.c.b16 %v1476, %v1475
        %v1523 = vpack.c.b16 %v1477, %v1477
        %v1524 = vpack.c.b16 %v1479, %v1478
        %v1525 = vpack.c.b16 %v1480, %v1480
        %v1526 = vpack.c.b16 %v1482, %v1481
        %v1527 = vpack.c.b16 %v1483, %v1483
        %v1528 = vpack.c.b16 %v1485, %v1484
        %v1529 = vpack.c.b16 %v1486, %v1486
        %v1530 = vpack.c.b16 %v1488, %v1487
        %v1531 = vpack.c.b16 %v1489, %v1489
        %v1532 = vpack.c.b16 %v1491, %v1490
        %v1533 = vpack.c.b16 %v1492, %v1492
        %v1534 = vpack.c.b16 %v1494, %v1493
        %v1535 = vpack.c.b16 %v1495, %v1495
        %v1536 = vpack.c.b16 %v1497, %v1496
        %v1537 = vpack.c.b16 %v1498, %v1498
        %v1538 = vpack.c.b16 %v1500, %v1499
        %v1539 = vpack.c.b16 %v1501, %v1501
        %v1540 = vpack.c.b16 %v1503, %v1502
        %v1541 = vpack.c.b16 %v1504, %v1504
        %v1542 = vpack.c.b16 %v1506, %v1505
        %v1543 = vpack.c.b16 %v1507, %v1507
        %v1544 = vpack.c.b16 %v1509, %v1508
        %v1545 = vpack.c.b16 %v1510, %v1510
        %v1546 = vpack.c.b16 %v1512, %v1511
        %v1547 = vpack.c.b16 %v1513, %v1513
        %v1548 = vpack.c.b16 %v1515, %v1514
        %v1549 = vpack.c.b16 %v1516, %v1516
        %v1550 = vpack.c.b16 %v1518, %v1517
        %v1551 = vpack.c.b16 %v1519, %v1519
        %vm1552 = vsmask.f32 4352
        %v1554 = vshrl.u32 %v1264, 16
        %v1556 = vrot.slane %v1554, 3
        %v1557 = vshll.u32 %v1264, 16
        %v1559 = vrot.slane %v1557, 4
        %v1560 = vor.u32 %v1556, %v1559
        %v1562 = vshrl.u32 %v1265, 16
        %v1564 = vrot.slane %v1562, 3
        %v1565 = vshll.u32 %v1265, 16
        %v1567 = vrot.slane %v1565, 4
        %v1568 = vor.u32 %v1564, %v1567
        %v1569 = vsel %vm1552, %v1560, %v1568
        %v1571 = vshrl.u32 %v1392, 16
        %v1573 = vrot.slane %v1571, 3
        %v1574 = vshll.u32 %v1392, 16
        %v1576 = vrot.slane %v1574, 4
        %v1577 = vor.u32 %v1573, %v1576
        %v1579 = vshrl.u32 %v1393, 16
        %v1581 = vrot.slane %v1579, 3
        %v1582 = vshll.u32 %v1393, 16
        %v1584 = vrot.slane %v1582, 4
        %v1585 = vor.u32 %v1581, %v1584
        %v1586 = vsel %vm1552, %v1577, %v1585
        %v1588 = vshrl.u32 %v1520, 16
        %v1590 = vrot.slane %v1588, 3
        %v1591 = vshll.u32 %v1520, 16
        %v1593 = vrot.slane %v1591, 4
        %v1594 = vor.u32 %v1590, %v1593
        %v1596 = vshrl.u32 %v1521, 16
        %v1598 = vrot.slane %v1596, 3
        %v1599 = vshll.u32 %v1521, 16
        %v1601 = vrot.slane %v1599, 4
        %v1602 = vor.u32 %v1598, %v1601
        %v1603 = vsel %vm1552, %v1594, %v1602
        %v1605 = vshrl.u32 %v1266, 16
        %v1607 = vrot.slane %v1605, 3
        %v1608 = vshll.u32 %v1266, 16
        %v1610 = vrot.slane %v1608, 4
        %v1611 = vor.u32 %v1607, %v1610
        %v1613 = vshrl.u32 %v1267, 16
        %v1615 = vrot.slane %v1613, 3
        %v1616 = vshll.u32 %v1267, 16
        %v1618 = vrot.slane %v1616, 4
        %v1619 = vor.u32 %v1615, %v1618
        %v1620 = vsel %vm1552, %v1611, %v1619
        %v1622 = vshrl.u32 %v1394, 16
        %v1624 = vrot.slane %v1622, 3
        %v1625 = vshll.u32 %v1394, 16
        %v1627 = vrot.slane %v1625, 4
        %v1628 = vor.u32 %v1624, %v1627
        %v1630 = vshrl.u32 %v1395, 16
        %v1632 = vrot.slane %v1630, 3
        %v1633 = vshll.u32 %v1395, 16
        %v1635 = vrot.slane %v1633, 4
        %v1636 = vor.u32 %v1632, %v1635
        %v1637 = vsel %vm1552, %v1628, %v1636
        %v1639 = vshrl.u32 %v1522, 16
        %v1641 = vrot.slane %v1639, 3
        %v1642 = vshll.u32 %v1522, 16
        %v1644 = vrot.slane %v1642, 4
        %v1645 = vor.u32 %v1641, %v1644
        %v1647 = vshrl.u32 %v1523, 16
        %v1649 = vrot.slane %v1647, 3
        %v1650 = vshll.u32 %v1523, 16
        %v1652 = vrot.slane %v1650, 4
        %v1653 = vor.u32 %v1649, %v1652
        %v1654 = vsel %vm1552, %v1645, %v1653
        %v1656 = vshrl.u32 %v1268, 16
        %v1658 = vrot.slane %v1656, 3
        %v1659 = vshll.u32 %v1268, 16
        %v1661 = vrot.slane %v1659, 4
        %v1662 = vor.u32 %v1658, %v1661
        %v1664 = vshrl.u32 %v1269, 16
        %v1666 = vrot.slane %v1664, 3
        %v1667 = vshll.u32 %v1269, 16
        %v1669 = vrot.slane %v1667, 4
        %v1670 = vor.u32 %v1666, %v1669
        %v1671 = vsel %vm1552, %v1662, %v1670
        %v1673 = vshrl.u32 %v1396, 16
        %v1675 = vrot.slane %v1673, 3
        %v1676 = vshll.u32 %v1396, 16
        %v1678 = vrot.slane %v1676, 4
        %v1679 = vor.u32 %v1675, %v1678
        %v1681 = vshrl.u32 %v1397, 16
        %v1683 = vrot.slane %v1681, 3
        %v1684 = vshll.u32 %v1397, 16
        %v1686 = vrot.slane %v1684, 4
        %v1687 = vor.u32 %v1683, %v1686
        %v1688 = vsel %vm1552, %v1679, %v1687
        %v1690 = vshrl.u32 %v1524, 16
        %v1692 = vrot.slane %v1690, 3
        %v1693 = vshll.u32 %v1524, 16
        %v1695 = vrot.slane %v1693, 4
        %v1696 = vor.u32 %v1692, %v1695
        %v1698 = vshrl.u32 %v1525, 16
        %v1700 = vrot.slane %v1698, 3
        %v1701 = vshll.u32 %v1525, 16
        %v1703 = vrot.slane %v1701, 4
        %v1704 = vor.u32 %v1700, %v1703
        %v1705 = vsel %vm1552, %v1696, %v1704
        %v1707 = vshrl.u32 %v1270, 16
        %v1709 = vrot.slane %v1707, 3
        %v1710 = vshll.u32 %v1270, 16
        %v1712 = vrot.slane %v1710, 4
        %v1713 = vor.u32 %v1709, %v1712
        %v1715 = vshrl.u32 %v1271, 16
        %v1717 = vrot.slane %v1715, 3
        %v1718 = vshll.u32 %v1271, 16
        %v1720 = vrot.slane %v1718, 4
        %v1721 = vor.u32 %v1717, %v1720
        %v1722 = vsel %vm1552, %v1713, %v1721
        %v1724 = vshrl.u32 %v1398, 16
        %v1726 = vrot.slane %v1724, 3
        %v1727 = vshll.u32 %v1398, 16
        %v1729 = vrot.slane %v1727, 4
        %v1730 = vor.u32 %v1726, %v1729
        %v1732 = vshrl.u32 %v1399, 16
        %v1734 = vrot.slane %v1732, 3
        %v1735 = vshll.u32 %v1399, 16
        %v1737 = vrot.slane %v1735, 4
        %v1738 = vor.u32 %v1734, %v1737
        %v1739 = vsel %vm1552, %v1730, %v1738
        %v1741 = vshrl.u32 %v1526, 16
        %v1743 = vrot.slane %v1741, 3
        %v1744 = vshll.u32 %v1526, 16
        %v1746 = vrot.slane %v1744, 4
        %v1747 = vor.u32 %v1743, %v1746
        %v1749 = vshrl.u32 %v1527, 16
        %v1751 = vrot.slane %v1749, 3
        %v1752 = vshll.u32 %v1527, 16
        %v1754 = vrot.slane %v1752, 4
        %v1755 = vor.u32 %v1751, %v1754
        %v1756 = vsel %vm1552, %v1747, %v1755
        %v1758 = vshrl.u32 %v1272, 16
        %v1760 = vrot.slane %v1758, 3
        %v1761 = vshll.u32 %v1272, 16
        %v1763 = vrot.slane %v1761, 4
        %v1764 = vor.u32 %v1760, %v1763
        %v1766 = vshrl.u32 %v1273, 16
        %v1768 = vrot.slane %v1766, 3
        %v1769 = vshll.u32 %v1273, 16
        %v1771 = vrot.slane %v1769, 4
        %v1772 = vor.u32 %v1768, %v1771
        %v1773 = vsel %vm1552, %v1764, %v1772
        %v1775 = vshrl.u32 %v1400, 16
        %v1777 = vrot.slane %v1775, 3
        %v1778 = vshll.u32 %v1400, 16
        %v1780 = vrot.slane %v1778, 4
        %v1781 = vor.u32 %v1777, %v1780
        %v1783 = vshrl.u32 %v1401, 16
        %v1785 = vrot.slane %v1783, 3
        %v1786 = vshll.u32 %v1401, 16
        %v1788 = vrot.slane %v1786, 4
        %v1789 = vor.u32 %v1785, %v1788
        %v1790 = vsel %vm1552, %v1781, %v1789
        %v1792 = vshrl.u32 %v1528, 16
        %v1794 = vrot.slane %v1792, 3
        %v1795 = vshll.u32 %v1528, 16
        %v1797 = vrot.slane %v1795, 4
        %v1798 = vor.u32 %v1794, %v1797
        %v1800 = vshrl.u32 %v1529, 16
        %v1802 = vrot.slane %v1800, 3
        %v1803 = vshll.u32 %v1529, 16
        %v1805 = vrot.slane %v1803, 4
        %v1806 = vor.u32 %v1802, %v1805
        %v1807 = vsel %vm1552, %v1798, %v1806
        %v1809 = vshrl.u32 %v1274, 16
        %v1811 = vrot.slane %v1809, 3
        %v1812 = vshll.u32 %v1274, 16
        %v1814 = vrot.slane %v1812, 4
        %v1815 = vor.u32 %v1811, %v1814
        %v1817 = vshrl.u32 %v1275, 16
        %v1819 = vrot.slane %v1817, 3
        %v1820 = vshll.u32 %v1275, 16
        %v1822 = vrot.slane %v1820, 4
        %v1823 = vor.u32 %v1819, %v1822
        %v1824 = vsel %vm1552, %v1815, %v1823
        %v1826 = vshrl.u32 %v1402, 16
        %v1828 = vrot.slane %v1826, 3
        %v1829 = vshll.u32 %v1402, 16
        %v1831 = vrot.slane %v1829, 4
        %v1832 = vor.u32 %v1828, %v1831
        %v1834 = vshrl.u32 %v1403, 16
        %v1836 = vrot.slane %v1834, 3
        %v1837 = vshll.u32 %v1403, 16
        %v1839 = vrot.slane %v1837, 4
        %v1840 = vor.u32 %v1836, %v1839
        %v1841 = vsel %vm1552, %v1832, %v1840
        %v1843 = vshrl.u32 %v1530, 16
        %v1845 = vrot.slane %v1843, 3
        %v1846 = vshll.u32 %v1530, 16
        %v1848 = vrot.slane %v1846, 4
        %v1849 = vor.u32 %v1845, %v1848
        %v1851 = vshrl.u32 %v1531, 16
        %v1853 = vrot.slane %v1851, 3
        %v1854 = vshll.u32 %v1531, 16
        %v1856 = vrot.slane %v1854, 4
        %v1857 = vor.u32 %v1853, %v1856
        %v1858 = vsel %vm1552, %v1849, %v1857
        %v1860 = vshrl.u32 %v1276, 16
        %v1862 = vrot.slane %v1860, 3
        %v1863 = vshll.u32 %v1276, 16
        %v1865 = vrot.slane %v1863, 4
        %v1866 = vor.u32 %v1862, %v1865
        %v1868 = vshrl.u32 %v1277, 16
        %v1870 = vrot.slane %v1868, 3
        %v1871 = vshll.u32 %v1277, 16
        %v1873 = vrot.slane %v1871, 4
        %v1874 = vor.u32 %v1870, %v1873
        %v1875 = vsel %vm1552, %v1866, %v1874
        %v1877 = vshrl.u32 %v1404, 16
        %v1879 = vrot.slane %v1877, 3
        %v1880 = vshll.u32 %v1404, 16
        %v1882 = vrot.slane %v1880, 4
        %v1883 = vor.u32 %v1879, %v1882
        %v1885 = vshrl.u32 %v1405, 16
        %v1887 = vrot.slane %v1885, 3
        %v1888 = vshll.u32 %v1405, 16
        %v1890 = vrot.slane %v1888, 4
        %v1891 = vor.u32 %v1887, %v1890
        %v1892 = vsel %vm1552, %v1883, %v1891
        %v1894 = vshrl.u32 %v1532, 16
        %v1896 = vrot.slane %v1894, 3
        %v1897 = vshll.u32 %v1532, 16
        %v1899 = vrot.slane %v1897, 4
        %v1900 = vor.u32 %v1896, %v1899
        %v1902 = vshrl.u32 %v1533, 16
        %v1904 = vrot.slane %v1902, 3
        %v1905 = vshll.u32 %v1533, 16
        %v1907 = vrot.slane %v1905, 4
        %v1908 = vor.u32 %v1904, %v1907
        %v1909 = vsel %vm1552, %v1900, %v1908
        %v1911 = vshrl.u32 %v1278, 16
        %v1913 = vrot.slane %v1911, 3
        %v1914 = vshll.u32 %v1278, 16
        %v1916 = vrot.slane %v1914, 4
        %v1917 = vor.u32 %v1913, %v1916
        %v1919 = vshrl.u32 %v1279, 16
        %v1921 = vrot.slane %v1919, 3
        %v1922 = vshll.u32 %v1279, 16
        %v1924 = vrot.slane %v1922, 4
        %v1925 = vor.u32 %v1921, %v1924
        %v1926 = vsel %vm1552, %v1917, %v1925
        %v1928 = vshrl.u32 %v1406, 16
        %v1930 = vrot.slane %v1928, 3
        %v1931 = vshll.u32 %v1406, 16
        %v1933 = vrot.slane %v1931, 4
        %v1934 = vor.u32 %v1930, %v1933
        %v1936 = vshrl.u32 %v1407, 16
        %v1938 = vrot.slane %v1936, 3
        %v1939 = vshll.u32 %v1407, 16
        %v1941 = vrot.slane %v1939, 4
        %v1942 = vor.u32 %v1938, %v1941
        %v1943 = vsel %vm1552, %v1934, %v1942
        %v1945 = vshrl.u32 %v1534, 16
        %v1947 = vrot.slane %v1945, 3
        %v1948 = vshll.u32 %v1534, 16
        %v1950 = vrot.slane %v1948, 4
        %v1951 = vor.u32 %v1947, %v1950
        %v1953 = vshrl.u32 %v1535, 16
        %v1955 = vrot.slane %v1953, 3
        %v1956 = vshll.u32 %v1535, 16
        %v1958 = vrot.slane %v1956, 4
        %v1959 = vor.u32 %v1955, %v1958
        %v1960 = vsel %vm1552, %v1951, %v1959
        %v1962 = vshrl.u32 %v1280, 16
        %v1964 = vrot.slane %v1962, 3
        %v1965 = vshll.u32 %v1280, 16
        %v1967 = vrot.slane %v1965, 4
        %v1968 = vor.u32 %v1964, %v1967
        %v1970 = vshrl.u32 %v1281, 16
        %v1972 = vrot.slane %v1970, 3
        %v1973 = vshll.u32 %v1281, 16
        %v1975 = vrot.slane %v1973, 4
        %v1976 = vor.u32 %v1972, %v1975
        %v1977 = vsel %vm1552, %v1968, %v1976
        %v1979 = vshrl.u32 %v1408, 16
        %v1981 = vrot.slane %v1979, 3
        %v1982 = vshll.u32 %v1408, 16
        %v1984 = vrot.slane %v1982, 4
        %v1985 = vor.u32 %v1981, %v1984
        %v1987 = vshrl.u32 %v1409, 16
        %v1989 = vrot.slane %v1987, 3
        %v1990 = vshll.u32 %v1409, 16
        %v1992 = vrot.slane %v1990, 4
        %v1993 = vor.u32 %v1989, %v1992
        %v1994 = vsel %vm1552, %v1985, %v1993
        %v1996 = vshrl.u32 %v1536, 16
        %v1998 = vrot.slane %v1996, 3
        %v1999 = vshll.u32 %v1536, 16
        %v2001 = vrot.slane %v1999, 4
        %v2002 = vor.u32 %v1998, %v2001
        %v2004 = vshrl.u32 %v1537, 16
        %v2006 = vrot.slane %v2004, 3
        %v2007 = vshll.u32 %v1537, 16
        %v2009 = vrot.slane %v2007, 4
        %v2010 = vor.u32 %v2006, %v2009
        %v2011 = vsel %vm1552, %v2002, %v2010
        %v2013 = vshrl.u32 %v1282, 16
        %v2015 = vrot.slane %v2013, 3
        %v2016 = vshll.u32 %v1282, 16
        %v2018 = vrot.slane %v2016, 4
        %v2019 = vor.u32 %v2015, %v2018
        %v2021 = vshrl.u32 %v1283, 16
        %v2023 = vrot.slane %v2021, 3
        %v2024 = vshll.u32 %v1283, 16
        %v2026 = vrot.slane %v2024, 4
        %v2027 = vor.u32 %v2023, %v2026
        %v2028 = vsel %vm1552, %v2019, %v2027
        %v2030 = vshrl.u32 %v1410, 16
        %v2032 = vrot.slane %v2030, 3
        %v2033 = vshll.u32 %v1410, 16
        %v2035 = vrot.slane %v2033, 4
        %v2036 = vor.u32 %v2032, %v2035
        %v2038 = vshrl.u32 %v1411, 16
        %v2040 = vrot.slane %v2038, 3
        %v2041 = vshll.u32 %v1411, 16
        %v2043 = vrot.slane %v2041, 4
        %v2044 = vor.u32 %v2040, %v2043
        %v2045 = vsel %vm1552, %v2036, %v2044
        %v2047 = vshrl.u32 %v1538, 16
        %v2049 = vrot.slane %v2047, 3
        %v2050 = vshll.u32 %v1538, 16
        %v2052 = vrot.slane %v2050, 4
        %v2053 = vor.u32 %v2049, %v2052
        %v2055 = vshrl.u32 %v1539, 16
        %v2057 = vrot.slane %v2055, 3
        %v2058 = vshll.u32 %v1539, 16
        %v2060 = vrot.slane %v2058, 4
        %v2061 = vor.u32 %v2057, %v2060
        %v2062 = vsel %vm1552, %v2053, %v2061
        %v2064 = vshrl.u32 %v1284, 16
        %v2066 = vrot.slane %v2064, 3
        %v2067 = vshll.u32 %v1284, 16
        %v2069 = vrot.slane %v2067, 4
        %v2070 = vor.u32 %v2066, %v2069
        %v2072 = vshrl.u32 %v1285, 16
        %v2074 = vrot.slane %v2072, 3
        %v2075 = vshll.u32 %v1285, 16
        %v2077 = vrot.slane %v2075, 4
        %v2078 = vor.u32 %v2074, %v2077
        %v2079 = vsel %vm1552, %v2070, %v2078
        %v2081 = vshrl.u32 %v1412, 16
        %v2083 = vrot.slane %v2081, 3
        %v2084 = vshll.u32 %v1412, 16
        %v2086 = vrot.slane %v2084, 4
        %v2087 = vor.u32 %v2083, %v2086
        %v2089 = vshrl.u32 %v1413, 16
        %v2091 = vrot.slane %v2089, 3
        %v2092 = vshll.u32 %v1413, 16
        %v2094 = vrot.slane %v2092, 4
        %v2095 = vor.u32 %v2091, %v2094
        %v2096 = vsel %vm1552, %v2087, %v2095
        %v2098 = vshrl.u32 %v1540, 16
        %v2100 = vrot.slane %v2098, 3
        %v2101 = vshll.u32 %v1540, 16
        %v2103 = vrot.slane %v2101, 4
        %v2104 = vor.u32 %v2100, %v2103
        %v2106 = vshrl.u32 %v1541, 16
        %v2108 = vrot.slane %v2106, 3
        %v2109 = vshll.u32 %v1541, 16
        %v2111 = vrot.slane %v2109, 4
        %v2112 = vor.u32 %v2108, %v2111
        %v2113 = vsel %vm1552, %v2104, %v2112
        %v2115 = vshrl.u32 %v1286, 16
        %v2117 = vrot.slane %v2115, 3
        %v2118 = vshll.u32 %v1286, 16
        %v2120 = vrot.slane %v2118, 4
        %v2121 = vor.u32 %v2117, %v2120
        %v2123 = vshrl.u32 %v1287, 16
        %v2125 = vrot.slane %v2123, 3
        %v2126 = vshll.u32 %v1287, 16
        %v2128 = vrot.slane %v2126, 4
        %v2129 = vor.u32 %v2125, %v2128
        %v2130 = vsel %vm1552, %v2121, %v2129
        %v2132 = vshrl.u32 %v1414, 16
        %v2134 = vrot.slane %v2132, 3
        %v2135 = vshll.u32 %v1414, 16
        %v2137 = vrot.slane %v2135, 4
        %v2138 = vor.u32 %v2134, %v2137
        %v2140 = vshrl.u32 %v1415, 16
        %v2142 = vrot.slane %v2140, 3
        %v2143 = vshll.u32 %v1415, 16
        %v2145 = vrot.slane %v2143, 4
        %v2146 = vor.u32 %v2142, %v2145
        %v2147 = vsel %vm1552, %v2138, %v2146
        %v2149 = vshrl.u32 %v1542, 16
        %v2151 = vrot.slane %v2149, 3
        %v2152 = vshll.u32 %v1542, 16
        %v2154 = vrot.slane %v2152, 4
        %v2155 = vor.u32 %v2151, %v2154
        %v2157 = vshrl.u32 %v1543, 16
        %v2159 = vrot.slane %v2157, 3
        %v2160 = vshll.u32 %v1543, 16
        %v2162 = vrot.slane %v2160, 4
        %v2163 = vor.u32 %v2159, %v2162
        %v2164 = vsel %vm1552, %v2155, %v2163
        %v2166 = vshrl.u32 %v1288, 16
        %v2168 = vrot.slane %v2166, 3
        %v2169 = vshll.u32 %v1288, 16
        %v2171 = vrot.slane %v2169, 4
        %v2172 = vor.u32 %v2168, %v2171
        %v2174 = vshrl.u32 %v1289, 16
        %v2176 = vrot.slane %v2174, 3
        %v2177 = vshll.u32 %v1289, 16
        %v2179 = vrot.slane %v2177, 4
        %v2180 = vor.u32 %v2176, %v2179
        %v2181 = vsel %vm1552, %v2172, %v2180
        %v2183 = vshrl.u32 %v1416, 16
        %v2185 = vrot.slane %v2183, 3
        %v2186 = vshll.u32 %v1416, 16
        %v2188 = vrot.slane %v2186, 4
        %v2189 = vor.u32 %v2185, %v2188
        %v2191 = vshrl.u32 %v1417, 16
        %v2193 = vrot.slane %v2191, 3
        %v2194 = vshll.u32 %v1417, 16
        %v2196 = vrot.slane %v2194, 4
        %v2197 = vor.u32 %v2193, %v2196
        %v2198 = vsel %vm1552, %v2189, %v2197
        %v2200 = vshrl.u32 %v1544, 16
        %v2202 = vrot.slane %v2200, 3
        %v2203 = vshll.u32 %v1544, 16
        %v2205 = vrot.slane %v2203, 4
        %v2206 = vor.u32 %v2202, %v2205
        %v2208 = vshrl.u32 %v1545, 16
        %v2210 = vrot.slane %v2208, 3
        %v2211 = vshll.u32 %v1545, 16
        %v2213 = vrot.slane %v2211, 4
        %v2214 = vor.u32 %v2210, %v2213
        %v2215 = vsel %vm1552, %v2206, %v2214
        %v2217 = vshrl.u32 %v1290, 16
        %v2219 = vrot.slane %v2217, 3
        %v2220 = vshll.u32 %v1290, 16
        %v2222 = vrot.slane %v2220, 4
        %v2223 = vor.u32 %v2219, %v2222
        %v2225 = vshrl.u32 %v1291, 16
        %v2227 = vrot.slane %v2225, 3
        %v2228 = vshll.u32 %v1291, 16
        %v2230 = vrot.slane %v2228, 4
        %v2231 = vor.u32 %v2227, %v2230
        %v2232 = vsel %vm1552, %v2223, %v2231
        %v2234 = vshrl.u32 %v1418, 16
        %v2236 = vrot.slane %v2234, 3
        %v2237 = vshll.u32 %v1418, 16
        %v2239 = vrot.slane %v2237, 4
        %v2240 = vor.u32 %v2236, %v2239
        %v2242 = vshrl.u32 %v1419, 16
        %v2244 = vrot.slane %v2242, 3
        %v2245 = vshll.u32 %v1419, 16
        %v2247 = vrot.slane %v2245, 4
        %v2248 = vor.u32 %v2244, %v2247
        %v2249 = vsel %vm1552, %v2240, %v2248
        %v2251 = vshrl.u32 %v1546, 16
        %v2253 = vrot.slane %v2251, 3
        %v2254 = vshll.u32 %v1546, 16
        %v2256 = vrot.slane %v2254, 4
        %v2257 = vor.u32 %v2253, %v2256
        %v2259 = vshrl.u32 %v1547, 16
        %v2261 = vrot.slane %v2259, 3
        %v2262 = vshll.u32 %v1547, 16
        %v2264 = vrot.slane %v2262, 4
        %v2265 = vor.u32 %v2261, %v2264
        %v2266 = vsel %vm1552, %v2257, %v2265
        %v2268 = vshrl.u32 %v1292, 16
        %v2270 = vrot.slane %v2268, 3
        %v2271 = vshll.u32 %v1292, 16
        %v2273 = vrot.slane %v2271, 4
        %v2274 = vor.u32 %v2270, %v2273
        %v2276 = vshrl.u32 %v1293, 16
        %v2278 = vrot.slane %v2276, 3
        %v2279 = vshll.u32 %v1293, 16
        %v2281 = vrot.slane %v2279, 4
        %v2282 = vor.u32 %v2278, %v2281
        %v2283 = vsel %vm1552, %v2274, %v2282
        %v2285 = vshrl.u32 %v1420, 16
        %v2287 = vrot.slane %v2285, 3
        %v2288 = vshll.u32 %v1420, 16
        %v2290 = vrot.slane %v2288, 4
        %v2291 = vor.u32 %v2287, %v2290
        %v2293 = vshrl.u32 %v1421, 16
        %v2295 = vrot.slane %v2293, 3
        %v2296 = vshll.u32 %v1421, 16
        %v2298 = vrot.slane %v2296, 4
        %v2299 = vor.u32 %v2295, %v2298
        %v2300 = vsel %vm1552, %v2291, %v2299
        %v2302 = vshrl.u32 %v1548, 16
        %v2304 = vrot.slane %v2302, 3
        %v2305 = vshll.u32 %v1548, 16
        %v2307 = vrot.slane %v2305, 4
        %v2308 = vor.u32 %v2304, %v2307
        %v2310 = vshrl.u32 %v1549, 16
        %v2312 = vrot.slane %v2310, 3
        %v2313 = vshll.u32 %v1549, 16
        %v2315 = vrot.slane %v2313, 4
        %v2316 = vor.u32 %v2312, %v2315
        %v2317 = vsel %vm1552, %v2308, %v2316
        %v2319 = vshrl.u32 %v1294, 16
        %v2321 = vrot.slane %v2319, 3
        %v2322 = vshll.u32 %v1294, 16
        %v2324 = vrot.slane %v2322, 4
        %v2325 = vor.u32 %v2321, %v2324
        %v2327 = vshrl.u32 %v1295, 16
        %v2329 = vrot.slane %v2327, 3
        %v2330 = vshll.u32 %v1295, 16
        %v2332 = vrot.slane %v2330, 4
        %v2333 = vor.u32 %v2329, %v2332
        %v2334 = vsel %vm1552, %v2325, %v2333
        %v2336 = vshrl.u32 %v1422, 16
        %v2338 = vrot.slane %v2336, 3
        %v2339 = vshll.u32 %v1422, 16
        %v2341 = vrot.slane %v2339, 4
        %v2342 = vor.u32 %v2338, %v2341
        %v2344 = vshrl.u32 %v1423, 16
        %v2346 = vrot.slane %v2344, 3
        %v2347 = vshll.u32 %v1423, 16
        %v2349 = vrot.slane %v2347, 4
        %v2350 = vor.u32 %v2346, %v2349
        %v2351 = vsel %vm1552, %v2342, %v2350
        %v2353 = vshrl.u32 %v1550, 16
        %v2355 = vrot.slane %v2353, 3
        %v2356 = vshll.u32 %v1550, 16
        %v2358 = vrot.slane %v2356, 4
        %v2359 = vor.u32 %v2355, %v2358
        %v2361 = vshrl.u32 %v1551, 16
        %v2363 = vrot.slane %v2361, 3
        %v2364 = vshll.u32 %v1551, 16
        %v2366 = vrot.slane %v2364, 4
        %v2367 = vor.u32 %v2363, %v2366
        %v2368 = vsel %vm1552, %v2359, %v2367
        %v2417 = vld [vmem:[%s4] sm:$0xff]
        %v2418 = vld [vmem:[%s4 + $0x8] sm:$0xff]
        %v2419 = vld [vmem:[%s4 + $0x10] sm:$0xff]
        %v2420 = vld [vmem:[%s4 + $0x18] sm:$0xff]
        %v2421 = vld [vmem:[%s4 + $0x20] sm:$0xff]
        %v2422 = vld [vmem:[%s4 + $0x28] sm:$0xff]
        %v2423 = vld [vmem:[%s4 + $0x30] sm:$0xff]
        %v2424 = vld [vmem:[%s4 + $0x38] sm:$0xff]
        %v2425 = vld [vmem:[%s4 + $0x40] sm:$0xff]
        %v2426 = vld [vmem:[%s4 + $0x48] sm:$0xff]
        %v2427 = vld [vmem:[%s4 + $0x50] sm:$0xff]
        %v2428 = vld [vmem:[%s4 + $0x58] sm:$0xff]
        %v2429 = vld [vmem:[%s4 + $0x60] sm:$0xff]
        %v2430 = vld [vmem:[%s4 + $0x68] sm:$0xff]
        %v2431 = vld [vmem:[%s4 + $0x70] sm:$0xff]
        %v2432 = vld [vmem:[%s4 + $0x78] sm:$0xff]
        %v2433 = vld [vmem:[%s4 + $0x80] sm:$0xff]
        %v2434 = vld [vmem:[%s4 + $0x88] sm:$0xff]
        %v2435 = vld [vmem:[%s4 + $0x90] sm:$0xff]
        %v2436 = vld [vmem:[%s4 + $0x98] sm:$0xff]
        %v2437 = vld [vmem:[%s4 + $0xa0] sm:$0xff]
        %v2438 = vld [vmem:[%s4 + $0xa8] sm:$0xff]
        %v2439 = vld [vmem:[%s4 + $0xb0] sm:$0xff]
        %v2440 = vld [vmem:[%s4 + $0xb8] sm:$0xff]
        %v2441 = vld [vmem:[%s4 + $0xc0] sm:$0xff]
        %v2442 = vld [vmem:[%s4 + $0xc8] sm:$0xff]
        %v2443 = vld [vmem:[%s4 + $0xd0] sm:$0xff]
        %v2444 = vld [vmem:[%s4 + $0xd8] sm:$0xff]
        %v2445 = vld [vmem:[%s4 + $0xe0] sm:$0xff]
        %v2446 = vld [vmem:[%s4 + $0xe8] sm:$0xff]
        %v2447 = vld [vmem:[%s4 + $0xf0] sm:$0xff]
        %v2448 = vld [vmem:[%s4 + $0xf8] sm:$0xff]
        %v2449 = vld [vmem:[%s4 + $0x100] sm:$0xff]
        %v2450 = vld [vmem:[%s4 + $0x108] sm:$0xff]
        %v2451 = vld [vmem:[%s4 + $0x110] sm:$0xff]
        %v2452 = vld [vmem:[%s4 + $0x118] sm:$0xff]
        %v2453 = vld [vmem:[%s4 + $0x120] sm:$0xff]
        %v2454 = vld [vmem:[%s4 + $0x128] sm:$0xff]
        %v2455 = vld [vmem:[%s4 + $0x130] sm:$0xff]
        %v2456 = vld [vmem:[%s4 + $0x138] sm:$0xff]
        %v2457 = vld [vmem:[%s4 + $0x140] sm:$0xff]
        %v2458 = vld [vmem:[%s4 + $0x148] sm:$0xff]
        %v2459 = vld [vmem:[%s4 + $0x150] sm:$0xff]
        %v2460 = vld [vmem:[%s4 + $0x158] sm:$0xff]
        %v2461 = vld [vmem:[%s4 + $0x160] sm:$0xff]
        %v2462 = vld [vmem:[%s4 + $0x168] sm:$0xff]
        %v2463 = vld [vmem:[%s4 + $0x170] sm:$0xff]
        %v2464 = vld [vmem:[%s4 + $0x178] sm:$0xff]
        %v2513 = vunpack.c.l.b16 %v2417
        %v2514 = vunpack.c.h.b16 %v2417
        %v2515 = vunpack.c.l.b16 %v2418
        %v2516 = vunpack.c.h.b16 %v2418
        %v2517 = vunpack.c.l.b16 %v2419
        %v2518 = vunpack.c.h.b16 %v2419
        %v2519 = vunpack.c.l.b16 %v2420
        %v2520 = vunpack.c.h.b16 %v2420
        %v2521 = vunpack.c.l.b16 %v2421
        %v2522 = vunpack.c.h.b16 %v2421
        %v2523 = vunpack.c.l.b16 %v2422
        %v2524 = vunpack.c.h.b16 %v2422
        %v2525 = vunpack.c.l.b16 %v2423
        %v2526 = vunpack.c.h.b16 %v2423
        %v2527 = vunpack.c.l.b16 %v2424
        %v2528 = vunpack.c.h.b16 %v2424
        %v2529 = vunpack.c.l.b16 %v2425
        %v2530 = vunpack.c.h.b16 %v2425
        %v2531 = vunpack.c.l.b16 %v2426
        %v2532 = vunpack.c.h.b16 %v2426
        %v2533 = vunpack.c.l.b16 %v2427
        %v2534 = vunpack.c.h.b16 %v2427
        %v2535 = vunpack.c.l.b16 %v2428
        %v2536 = vunpack.c.h.b16 %v2428
        %v2537 = vunpack.c.l.b16 %v2429
        %v2538 = vunpack.c.h.b16 %v2429
        %v2539 = vunpack.c.l.b16 %v2430
        %v2540 = vunpack.c.h.b16 %v2430
        %v2541 = vunpack.c.l.b16 %v2431
        %v2542 = vunpack.c.h.b16 %v2431
        %v2543 = vunpack.c.l.b16 %v2432
        %v2544 = vunpack.c.h.b16 %v2432
        %v2545 = vunpack.c.l.b16 %v2433
        %v2546 = vunpack.c.h.b16 %v2433
        %v2547 = vunpack.c.l.b16 %v2434
        %v2548 = vunpack.c.h.b16 %v2434
        %v2549 = vunpack.c.l.b16 %v2435
        %v2550 = vunpack.c.h.b16 %v2435
        %v2551 = vunpack.c.l.b16 %v2436
        %v2552 = vunpack.c.h.b16 %v2436
        %v2553 = vunpack.c.l.b16 %v2437
        %v2554 = vunpack.c.h.b16 %v2437
        %v2555 = vunpack.c.l.b16 %v2438
        %v2556 = vunpack.c.h.b16 %v2438
        %v2557 = vunpack.c.l.b16 %v2439
        %v2558 = vunpack.c.h.b16 %v2439
        %v2559 = vunpack.c.l.b16 %v2440
        %v2560 = vunpack.c.h.b16 %v2440
        %v2561 = vunpack.c.l.b16 %v2441
        %v2562 = vunpack.c.h.b16 %v2441
        %v2563 = vunpack.c.l.b16 %v2442
        %v2564 = vunpack.c.h.b16 %v2442
        %v2565 = vunpack.c.l.b16 %v2443
        %v2566 = vunpack.c.h.b16 %v2443
        %v2567 = vunpack.c.l.b16 %v2444
        %v2568 = vunpack.c.h.b16 %v2444
        %v2569 = vunpack.c.l.b16 %v2445
        %v2570 = vunpack.c.h.b16 %v2445
        %v2571 = vunpack.c.l.b16 %v2446
        %v2572 = vunpack.c.h.b16 %v2446
        %v2573 = vunpack.c.l.b16 %v2447
        %v2574 = vunpack.c.h.b16 %v2447
        %v2575 = vunpack.c.l.b16 %v2448
        %v2576 = vunpack.c.h.b16 %v2448
        %v2577 = vunpack.c.l.b16 %v2449
        %v2578 = vunpack.c.h.b16 %v2449
        %v2579 = vunpack.c.l.b16 %v2450
        %v2580 = vunpack.c.h.b16 %v2450
        %v2581 = vunpack.c.l.b16 %v2451
        %v2582 = vunpack.c.h.b16 %v2451
        %v2583 = vunpack.c.l.b16 %v2452
        %v2584 = vunpack.c.h.b16 %v2452
        %v2585 = vunpack.c.l.b16 %v2453
        %v2586 = vunpack.c.h.b16 %v2453
        %v2587 = vunpack.c.l.b16 %v2454
        %v2588 = vunpack.c.h.b16 %v2454
        %v2589 = vunpack.c.l.b16 %v2455
        %v2590 = vunpack.c.h.b16 %v2455
        %v2591 = vunpack.c.l.b16 %v2456
        %v2592 = vunpack.c.h.b16 %v2456
        %v2593 = vunpack.c.l.b16 %v2457
        %v2594 = vunpack.c.h.b16 %v2457
        %v2595 = vunpack.c.l.b16 %v2458
        %v2596 = vunpack.c.h.b16 %v2458
        %v2597 = vunpack.c.l.b16 %v2459
        %v2598 = vunpack.c.h.b16 %v2459
        %v2599 = vunpack.c.l.b16 %v2460
        %v2600 = vunpack.c.h.b16 %v2460
        %v2601 = vunpack.c.l.b16 %v2461
        %v2602 = vunpack.c.h.b16 %v2461
        %v2603 = vunpack.c.l.b16 %v2462
        %v2604 = vunpack.c.h.b16 %v2462
        %v2605 = vunpack.c.l.b16 %v2463
        %v2606 = vunpack.c.h.b16 %v2463
        %v2607 = vunpack.c.l.b16 %v2464
        %v2608 = vunpack.c.h.b16 %v2464
        %v2609 = vpack.c.b16 %v2515, %v2513
        %v2610 = vpack.c.b16 %v2516, %v2514
        %v2611 = vpack.c.b16 %v2519, %v2517
        %v2612 = vpack.c.b16 %v2520, %v2518
        %v2613 = vpack.c.b16 %v2523, %v2521
        %v2614 = vpack.c.b16 %v2524, %v2522
        %v2615 = vpack.c.b16 %v2527, %v2525
        %v2616 = vpack.c.b16 %v2528, %v2526
        %v2617 = vpack.c.b16 %v2531, %v2529
        %v2618 = vpack.c.b16 %v2532, %v2530
        %v2619 = vpack.c.b16 %v2535, %v2533
        %v2620 = vpack.c.b16 %v2536, %v2534
        %v2621 = vpack.c.b16 %v2539, %v2537
        %v2622 = vpack.c.b16 %v2540, %v2538
        %v2623 = vpack.c.b16 %v2543, %v2541
        %v2624 = vpack.c.b16 %v2544, %v2542
        %v2625 = vpack.c.b16 %v2547, %v2545
        %v2626 = vpack.c.b16 %v2548, %v2546
        %v2627 = vpack.c.b16 %v2551, %v2549
        %v2628 = vpack.c.b16 %v2552, %v2550
        %v2629 = vpack.c.b16 %v2555, %v2553
        %v2630 = vpack.c.b16 %v2556, %v2554
        %v2631 = vpack.c.b16 %v2559, %v2557
        %v2632 = vpack.c.b16 %v2560, %v2558
        %v2633 = vpack.c.b16 %v2563, %v2561
        %v2634 = vpack.c.b16 %v2564, %v2562
        %v2635 = vpack.c.b16 %v2567, %v2565
        %v2636 = vpack.c.b16 %v2568, %v2566
        %v2637 = vpack.c.b16 %v2571, %v2569
        %v2638 = vpack.c.b16 %v2572, %v2570
        %v2639 = vpack.c.b16 %v2575, %v2573
        %v2640 = vpack.c.b16 %v2576, %v2574
        %v2641 = vpack.c.b16 %v2579, %v2577
        %v2642 = vpack.c.b16 %v2580, %v2578
        %v2643 = vpack.c.b16 %v2583, %v2581
        %v2644 = vpack.c.b16 %v2584, %v2582
        %v2645 = vpack.c.b16 %v2587, %v2585
        %v2646 = vpack.c.b16 %v2588, %v2586
        %v2647 = vpack.c.b16 %v2591, %v2589
        %v2648 = vpack.c.b16 %v2592, %v2590
        %v2649 = vpack.c.b16 %v2595, %v2593
        %v2650 = vpack.c.b16 %v2596, %v2594
        %v2651 = vpack.c.b16 %v2599, %v2597
        %v2652 = vpack.c.b16 %v2600, %v2598
        %v2653 = vpack.c.b16 %v2603, %v2601
        %v2654 = vpack.c.b16 %v2604, %v2602
        %v2655 = vpack.c.b16 %v2607, %v2605
        %v2656 = vpack.c.b16 %v2608, %v2606
        %2705 = vmatprep.subr.bf16.mxu0 %v2624
        %2706 = vmatpush1.bf16.msra.mxu0 %v2623
        %2707 = vmatprep.subr.bf16.mxu0 %v2622
        %2708 = vmatpush1.bf16.msra.mxu0 %v2621
        %2709 = vmatprep.subr.bf16.mxu0 %v2620
        %2710 = vmatpush1.bf16.msra.mxu0 %v2619
        %2711 = vmatprep.subr.bf16.mxu0 %v2618
        %2712 = vmatpush1.bf16.msra.mxu0 %v2617
        %2713 = vmatprep.subr.bf16.mxu0 %v2616
        %2714 = vmatpush1.bf16.msra.mxu0 %v2615
        %2715 = vmatprep.subr.bf16.mxu0 %v2614
        %2716 = vmatpush1.bf16.msra.mxu0 %v2613
        %2717 = vmatprep.subr.bf16.mxu0 %v2612
        %2718 = vmatpush1.bf16.msra.mxu0 %v2611
        %2719 = vmatprep.subr.bf16.mxu0 %v2610
        %2720 = vmatpush1.bf16.msra.mxu0 %v2609
        %2721 = vmatprep.subr.bf16.mxu0 %v2640
        %2722 = vmatpush2.bf16.msra.mxu0 %v2639
        %2723 = vmatprep.subr.bf16.mxu0 %v2638
        %2724 = vmatpush2.bf16.msra.mxu0 %v2637
        %2725 = vmatprep.subr.bf16.mxu0 %v2636
        %2726 = vmatpush2.bf16.msra.mxu0 %v2635
        %2727 = vmatprep.subr.bf16.mxu0 %v2634
        %2728 = vmatpush2.bf16.msra.mxu0 %v2633
        %2729 = vmatprep.subr.bf16.mxu0 %v2632
        %2730 = vmatpush2.bf16.msra.mxu0 %v2631
        %2731 = vmatprep.subr.bf16.mxu0 %v2630
        %2732 = vmatpush2.bf16.msra.mxu0 %v2629
        %2733 = vmatprep.subr.bf16.mxu0 %v2628
        %2734 = vmatpush2.bf16.msra.mxu0 %v2627
        %2735 = vmatprep.subr.bf16.mxu0 %v2626
        %2736 = vmatpush2.bf16.msra.mxu0 %v2625
        %2737 = vmatprep.mubr.bf16.mxu0 %v1586
        %2738 = vmatmul.mubr.bf16.gmra.mxu0 %v1569
        %v2739 = vpop.f32.mrf.mxu0
        %v2740 = vadd.f32 0.0, %v2739
        %v2741 = vpop.f32.mrf.mxu0
        %v2742 = vadd.f32 0.0, %v2741
        %v2743 = vpop.f32.mrf.mxu0
        %v2744 = vadd.f32 0.0, %v2743
        %v2745 = vpop.f32.mrf.mxu0
        %v2746 = vadd.f32 0.0, %v2745
        %2747 = vmatprep.mubr.bf16.mxu0 %v1637
        %2748 = vmatmul.mubr.bf16.gmra.mxu0 %v1620
        %v2749 = vpop.f32.mrf.mxu0
        %v2750 = vadd.f32 0.0, %v2749
        %v2751 = vpop.f32.mrf.mxu0
        %v2752 = vadd.f32 0.0, %v2751
        %v2753 = vpop.f32.mrf.mxu0
        %v2754 = vadd.f32 0.0, %v2753
        %v2755 = vpop.f32.mrf.mxu0
        %v2756 = vadd.f32 0.0, %v2755
        %2757 = vmatprep.mubr.bf16.mxu0 %v1688
        %2758 = vmatmul.mubr.bf16.gmra.mxu0 %v1671
        %v2759 = vpop.f32.mrf.mxu0
        %v2760 = vadd.f32 0.0, %v2759
        %v2761 = vpop.f32.mrf.mxu0
        %v2762 = vadd.f32 0.0, %v2761
        %v2763 = vpop.f32.mrf.mxu0
        %v2764 = vadd.f32 0.0, %v2763
        %v2765 = vpop.f32.mrf.mxu0
        %v2766 = vadd.f32 0.0, %v2765
        %2767 = vmatprep.mubr.bf16.mxu0 %v1739
        %2768 = vmatmul.mubr.bf16.gmra.mxu0 %v1722
        %v2769 = vpop.f32.mrf.mxu0
        %v2770 = vadd.f32 0.0, %v2769
        %v2771 = vpop.f32.mrf.mxu0
        %v2772 = vadd.f32 0.0, %v2771
        %v2773 = vpop.f32.mrf.mxu0
        %v2774 = vadd.f32 0.0, %v2773
        %v2775 = vpop.f32.mrf.mxu0
        %v2776 = vadd.f32 0.0, %v2775
        %2777 = vmatprep.mubr.bf16.mxu0 %v1790
        %2778 = vmatmul.mubr.bf16.gmra.mxu0 %v1773
        %v2779 = vpop.f32.mrf.mxu0
        %v2780 = vadd.f32 0.0, %v2779
        %v2781 = vpop.f32.mrf.mxu0
        %v2782 = vadd.f32 0.0, %v2781
        %v2783 = vpop.f32.mrf.mxu0
        %v2784 = vadd.f32 0.0, %v2783
        %v2785 = vpop.f32.mrf.mxu0
        %v2786 = vadd.f32 0.0, %v2785
        %2787 = vmatprep.mubr.bf16.mxu0 %v1841
        %2788 = vmatmul.mubr.bf16.gmra.mxu0 %v1824
        %v2789 = vpop.f32.mrf.mxu0
        %v2790 = vadd.f32 0.0, %v2789
        %v2791 = vpop.f32.mrf.mxu0
        %v2792 = vadd.f32 0.0, %v2791
        %v2793 = vpop.f32.mrf.mxu0
        %v2794 = vadd.f32 0.0, %v2793
        %v2795 = vpop.f32.mrf.mxu0
        %v2796 = vadd.f32 0.0, %v2795
        %2797 = vmatprep.mubr.bf16.mxu0 %v1892
        %2798 = vmatmul.mubr.bf16.gmra.mxu0 %v1875
        %v2799 = vpop.f32.mrf.mxu0
        %v2800 = vadd.f32 0.0, %v2799
        %v2801 = vpop.f32.mrf.mxu0
        %v2802 = vadd.f32 0.0, %v2801
        %v2803 = vpop.f32.mrf.mxu0
        %v2804 = vadd.f32 0.0, %v2803
        %v2805 = vpop.f32.mrf.mxu0
        %v2806 = vadd.f32 0.0, %v2805
        %2807 = vmatprep.mubr.bf16.mxu0 %v1943
        %2808 = vmatmul.mubr.bf16.gmra.mxu0 %v1926
        %v2809 = vpop.f32.mrf.mxu0
        %v2810 = vadd.f32 0.0, %v2809
        %v2811 = vpop.f32.mrf.mxu0
        %v2812 = vadd.f32 0.0, %v2811
        %v2813 = vpop.f32.mrf.mxu0
        %v2814 = vadd.f32 0.0, %v2813
        %v2815 = vpop.f32.mrf.mxu0
        %v2816 = vadd.f32 0.0, %v2815
        %2817 = vmatprep.mubr.bf16.mxu0 %v1994
        %2818 = vmatmul.mubr.bf16.gmra.mxu0 %v1977
        %v2819 = vpop.f32.mrf.mxu0
        %v2820 = vadd.f32 0.0, %v2819
        %v2821 = vpop.f32.mrf.mxu0
        %v2822 = vadd.f32 0.0, %v2821
        %v2823 = vpop.f32.mrf.mxu0
        %v2824 = vadd.f32 0.0, %v2823
        %v2825 = vpop.f32.mrf.mxu0
        %v2826 = vadd.f32 0.0, %v2825
        %2827 = vmatprep.mubr.bf16.mxu0 %v2045
        %2828 = vmatmul.mubr.bf16.gmra.mxu0 %v2028
        %v2829 = vpop.f32.mrf.mxu0
        %v2830 = vadd.f32 0.0, %v2829
        %v2831 = vpop.f32.mrf.mxu0
        %v2832 = vadd.f32 0.0, %v2831
        %v2833 = vpop.f32.mrf.mxu0
        %v2834 = vadd.f32 0.0, %v2833
        %v2835 = vpop.f32.mrf.mxu0
        %v2836 = vadd.f32 0.0, %v2835
        %2837 = vmatprep.mubr.bf16.mxu0 %v2096
        %2838 = vmatmul.mubr.bf16.gmra.mxu0 %v2079
        %v2839 = vpop.f32.mrf.mxu0
        %v2840 = vadd.f32 0.0, %v2839
        %v2841 = vpop.f32.mrf.mxu0
        %v2842 = vadd.f32 0.0, %v2841
        %v2843 = vpop.f32.mrf.mxu0
        %v2844 = vadd.f32 0.0, %v2843
        %v2845 = vpop.f32.mrf.mxu0
        %v2846 = vadd.f32 0.0, %v2845
        %2847 = vmatprep.mubr.bf16.mxu0 %v2147
        %2848 = vmatmul.mubr.bf16.gmra.mxu0 %v2130
        %v2849 = vpop.f32.mrf.mxu0
        %v2850 = vadd.f32 0.0, %v2849
        %v2851 = vpop.f32.mrf.mxu0
        %v2852 = vadd.f32 0.0, %v2851
        %v2853 = vpop.f32.mrf.mxu0
        %v2854 = vadd.f32 0.0, %v2853
        %v2855 = vpop.f32.mrf.mxu0
        %v2856 = vadd.f32 0.0, %v2855
        %2857 = vmatprep.mubr.bf16.mxu0 %v2198
        %2858 = vmatmul.mubr.bf16.gmra.mxu0 %v2181
        %v2859 = vpop.f32.mrf.mxu0
        %v2860 = vadd.f32 0.0, %v2859
        %v2861 = vpop.f32.mrf.mxu0
        %v2862 = vadd.f32 0.0, %v2861
        %v2863 = vpop.f32.mrf.mxu0
        %v2864 = vadd.f32 0.0, %v2863
        %v2865 = vpop.f32.mrf.mxu0
        %v2866 = vadd.f32 0.0, %v2865
        %2867 = vmatprep.mubr.bf16.mxu0 %v2249
        %2868 = vmatmul.mubr.bf16.gmra.mxu0 %v2232
        %v2869 = vpop.f32.mrf.mxu0
        %v2870 = vadd.f32 0.0, %v2869
        %v2871 = vpop.f32.mrf.mxu0
        %v2872 = vadd.f32 0.0, %v2871
        %v2873 = vpop.f32.mrf.mxu0
        %v2874 = vadd.f32 0.0, %v2873
        %v2875 = vpop.f32.mrf.mxu0
        %v2876 = vadd.f32 0.0, %v2875
        %2877 = vmatprep.mubr.bf16.mxu0 %v2300
        %2878 = vmatmul.mubr.bf16.gmra.mxu0 %v2283
        %v2879 = vpop.f32.mrf.mxu0
        %v2880 = vadd.f32 0.0, %v2879
        %v2881 = vpop.f32.mrf.mxu0
        %v2882 = vadd.f32 0.0, %v2881
        %v2883 = vpop.f32.mrf.mxu0
        %v2884 = vadd.f32 0.0, %v2883
        %v2885 = vpop.f32.mrf.mxu0
        %v2886 = vadd.f32 0.0, %v2885
        %2887 = vmatprep.mubr.bf16.mxu0 %v2351
        %2888 = vmatmul.mubr.bf16.gmra.mxu0 %v2334
        %v2889 = vpop.f32.mrf.mxu0
        %v2890 = vadd.f32 0.0, %v2889
        %v2891 = vpop.f32.mrf.mxu0
        %v2892 = vadd.f32 0.0, %v2891
        %v2893 = vpop.f32.mrf.mxu0
        %v2894 = vadd.f32 0.0, %v2893
        %v2895 = vpop.f32.mrf.mxu0
        %v2896 = vadd.f32 0.0, %v2895
        %2897 = vdwg.mxu0
        %2898 = vmatprep.subr.bf16.mxu0 %v2656
        %2899 = vmatpush1.bf16.msra.mxu0 %v2655
        %2900 = vmatprep.subr.bf16.mxu0 %v2654
        %2901 = vmatpush1.bf16.msra.mxu0 %v2653
        %2902 = vmatprep.subr.bf16.mxu0 %v2652
        %2903 = vmatpush1.bf16.msra.mxu0 %v2651
        %2904 = vmatprep.subr.bf16.mxu0 %v2650
        %2905 = vmatpush1.bf16.msra.mxu0 %v2649
        %2906 = vmatprep.subr.bf16.mxu0 %v2648
        %2907 = vmatpush1.bf16.msra.mxu0 %v2647
        %2908 = vmatprep.subr.bf16.mxu0 %v2646
        %2909 = vmatpush1.bf16.msra.mxu0 %v2645
        %2910 = vmatprep.subr.bf16.mxu0 %v2644
        %2911 = vmatpush1.bf16.msra.mxu0 %v2643
        %2912 = vmatprep.subr.bf16.mxu0 %v2642
        %2913 = vmatpush1.bf16.msra.mxu0 %v2641
        %2914 = vmatprep.subr.bf16.mxu0 0
        %2915 = vmatpush2.bf16.msra.mxu0 0
        %2916 = vmatprep.subr.bf16.mxu0 0
        %2917 = vmatpush2.bf16.msra.mxu0 0
        %2918 = vmatprep.subr.bf16.mxu0 0
        %2919 = vmatpush2.bf16.msra.mxu0 0
        %2920 = vmatprep.subr.bf16.mxu0 0
        %2921 = vmatpush2.bf16.msra.mxu0 0
        %2922 = vmatprep.subr.bf16.mxu0 0
        %2923 = vmatpush2.bf16.msra.mxu0 0
        %2924 = vmatprep.subr.bf16.mxu0 0
        %2925 = vmatpush2.bf16.msra.mxu0 0
        %2926 = vmatprep.subr.bf16.mxu0 0
        %2927 = vmatpush2.bf16.msra.mxu0 0
        %2928 = vmatprep.subr.bf16.mxu0 0
        %2929 = vmatpush2.bf16.msra.mxu0 0
        %2930 = vmatprep.mubr.bf16.mxu0 0
        %2931 = vmatmul.mubr.bf16.gmra.mxu0 %v1603
        %v2932 = vpop.f32.mrf.mxu0
        %v2933 = vadd.f32 %v2740, %v2932
        %v2934 = vpop.f32.mrf.mxu0
        %v2935 = vadd.f32 %v2742, %v2934
        %v2936 = vpop.f32.mrf.mxu0
        %v2937 = vadd.f32 %v2744, %v2936
        %v2938 = vpop.f32.mrf.mxu0
        %v2939 = vadd.f32 %v2746, %v2938
        %2940 = vmatprep.mubr.bf16.mxu0 0
        %2941 = vmatmul.mubr.bf16.gmra.mxu0 %v1654
        %v2942 = vpop.f32.mrf.mxu0
        %v2943 = vadd.f32 %v2750, %v2942
        %v2944 = vpop.f32.mrf.mxu0
        %v2945 = vadd.f32 %v2752, %v2944
        %v2946 = vpop.f32.mrf.mxu0
        %v2947 = vadd.f32 %v2754, %v2946
        %v2948 = vpop.f32.mrf.mxu0
        %v2949 = vadd.f32 %v2756, %v2948
        %2950 = vmatprep.mubr.bf16.mxu0 0
        %2951 = vmatmul.mubr.bf16.gmra.mxu0 %v1705
        %v2952 = vpop.f32.mrf.mxu0
        %v2953 = vadd.f32 %v2760, %v2952
        %v2954 = vpop.f32.mrf.mxu0
        %v2955 = vadd.f32 %v2762, %v2954
        %v2956 = vpop.f32.mrf.mxu0
        %v2957 = vadd.f32 %v2764, %v2956
        %v2958 = vpop.f32.mrf.mxu0
        %v2959 = vadd.f32 %v2766, %v2958
        %2960 = vmatprep.mubr.bf16.mxu0 0
        %2961 = vmatmul.mubr.bf16.gmra.mxu0 %v1756
        %v2962 = vpop.f32.mrf.mxu0
        %v2963 = vadd.f32 %v2770, %v2962
        %v2964 = vpop.f32.mrf.mxu0
        %v2965 = vadd.f32 %v2772, %v2964
        %v2966 = vpop.f32.mrf.mxu0
        %v2967 = vadd.f32 %v2774, %v2966
        %v2968 = vpop.f32.mrf.mxu0
        %v2969 = vadd.f32 %v2776, %v2968
        %2970 = vmatprep.mubr.bf16.mxu0 0
        %2971 = vmatmul.mubr.bf16.gmra.mxu0 %v1807
        %v2972 = vpop.f32.mrf.mxu0
        %v2973 = vadd.f32 %v2780, %v2972
        %v2974 = vpop.f32.mrf.mxu0
        %v2975 = vadd.f32 %v2782, %v2974
        %v2976 = vpop.f32.mrf.mxu0
        %v2977 = vadd.f32 %v2784, %v2976
        %v2978 = vpop.f32.mrf.mxu0
        %v2979 = vadd.f32 %v2786, %v2978
        %2980 = vmatprep.mubr.bf16.mxu0 0
        %2981 = vmatmul.mubr.bf16.gmra.mxu0 %v1858
        %v2982 = vpop.f32.mrf.mxu0
        %v2983 = vadd.f32 %v2790, %v2982
        %v2984 = vpop.f32.mrf.mxu0
        %v2985 = vadd.f32 %v2792, %v2984
        %v2986 = vpop.f32.mrf.mxu0
        %v2987 = vadd.f32 %v2794, %v2986
        %v2988 = vpop.f32.mrf.mxu0
        %v2989 = vadd.f32 %v2796, %v2988
        %2990 = vmatprep.mubr.bf16.mxu0 0
        %2991 = vmatmul.mubr.bf16.gmra.mxu0 %v1909
        %v2992 = vpop.f32.mrf.mxu0
        %v2993 = vadd.f32 %v2800, %v2992
        %v2994 = vpop.f32.mrf.mxu0
        %v2995 = vadd.f32 %v2802, %v2994
        %v2996 = vpop.f32.mrf.mxu0
        %v2997 = vadd.f32 %v2804, %v2996
        %v2998 = vpop.f32.mrf.mxu0
        %v2999 = vadd.f32 %v2806, %v2998
        %3000 = vmatprep.mubr.bf16.mxu0 0
        %3001 = vmatmul.mubr.bf16.gmra.mxu0 %v1960
        %v3002 = vpop.f32.mrf.mxu0
        %v3003 = vadd.f32 %v2810, %v3002
        %v3004 = vpop.f32.mrf.mxu0
        %v3005 = vadd.f32 %v2812, %v3004
        %v3006 = vpop.f32.mrf.mxu0
        %v3007 = vadd.f32 %v2814, %v3006
        %v3008 = vpop.f32.mrf.mxu0
        %v3009 = vadd.f32 %v2816, %v3008
        %3010 = vmatprep.mubr.bf16.mxu0 0
        %3011 = vmatmul.mubr.bf16.gmra.mxu0 %v2011
        %v3012 = vpop.f32.mrf.mxu0
        %v3013 = vadd.f32 %v2820, %v3012
        %v3014 = vpop.f32.mrf.mxu0
        %v3015 = vadd.f32 %v2822, %v3014
        %v3016 = vpop.f32.mrf.mxu0
        %v3017 = vadd.f32 %v2824, %v3016
        %v3018 = vpop.f32.mrf.mxu0
        %v3019 = vadd.f32 %v2826, %v3018
        %3020 = vmatprep.mubr.bf16.mxu0 0
        %3021 = vmatmul.mubr.bf16.gmra.mxu0 %v2062
        %v3022 = vpop.f32.mrf.mxu0
        %v3023 = vadd.f32 %v2830, %v3022
        %v3024 = vpop.f32.mrf.mxu0
        %v3025 = vadd.f32 %v2832, %v3024
        %v3026 = vpop.f32.mrf.mxu0
        %v3027 = vadd.f32 %v2834, %v3026
        %v3028 = vpop.f32.mrf.mxu0
        %v3029 = vadd.f32 %v2836, %v3028
        %3030 = vmatprep.mubr.bf16.mxu0 0
        %3031 = vmatmul.mubr.bf16.gmra.mxu0 %v2113
        %v3032 = vpop.f32.mrf.mxu0
        %v3033 = vadd.f32 %v2840, %v3032
        %v3034 = vpop.f32.mrf.mxu0
        %v3035 = vadd.f32 %v2842, %v3034
        %v3036 = vpop.f32.mrf.mxu0
        %v3037 = vadd.f32 %v2844, %v3036
        %v3038 = vpop.f32.mrf.mxu0
        %v3039 = vadd.f32 %v2846, %v3038
        %3040 = vmatprep.mubr.bf16.mxu0 0
        %3041 = vmatmul.mubr.bf16.gmra.mxu0 %v2164
        %v3042 = vpop.f32.mrf.mxu0
        %v3043 = vadd.f32 %v2850, %v3042
        %v3044 = vpop.f32.mrf.mxu0
        %v3045 = vadd.f32 %v2852, %v3044
        %v3046 = vpop.f32.mrf.mxu0
        %v3047 = vadd.f32 %v2854, %v3046
        %v3048 = vpop.f32.mrf.mxu0
        %v3049 = vadd.f32 %v2856, %v3048
        %3050 = vmatprep.mubr.bf16.mxu0 0
        %3051 = vmatmul.mubr.bf16.gmra.mxu0 %v2215
        %v3052 = vpop.f32.mrf.mxu0
        %v3053 = vadd.f32 %v2860, %v3052
        %v3054 = vpop.f32.mrf.mxu0
        %v3055 = vadd.f32 %v2862, %v3054
        %v3056 = vpop.f32.mrf.mxu0
        %v3057 = vadd.f32 %v2864, %v3056
        %v3058 = vpop.f32.mrf.mxu0
        %v3059 = vadd.f32 %v2866, %v3058
        %3060 = vmatprep.mubr.bf16.mxu0 0
        %3061 = vmatmul.mubr.bf16.gmra.mxu0 %v2266
        %v3062 = vpop.f32.mrf.mxu0
        %v3063 = vadd.f32 %v2870, %v3062
        %v3064 = vpop.f32.mrf.mxu0
        %v3065 = vadd.f32 %v2872, %v3064
        %v3066 = vpop.f32.mrf.mxu0
        %v3067 = vadd.f32 %v2874, %v3066
        %v3068 = vpop.f32.mrf.mxu0
        %v3069 = vadd.f32 %v2876, %v3068
        %3070 = vmatprep.mubr.bf16.mxu0 0
        %3071 = vmatmul.mubr.bf16.gmra.mxu0 %v2317
        %v3072 = vpop.f32.mrf.mxu0
        %v3073 = vadd.f32 %v2880, %v3072
        %v3074 = vpop.f32.mrf.mxu0
        %v3075 = vadd.f32 %v2882, %v3074
        %v3076 = vpop.f32.mrf.mxu0
        %v3077 = vadd.f32 %v2884, %v3076
        %v3078 = vpop.f32.mrf.mxu0
        %v3079 = vadd.f32 %v2886, %v3078
        %3080 = vmatprep.mubr.bf16.mxu0 0
        %3081 = vmatmul.mubr.bf16.gmra.mxu0 %v2368
        %v3082 = vpop.f32.mrf.mxu0
        %v3083 = vadd.f32 %v2890, %v3082
        %v3084 = vpop.f32.mrf.mxu0
        %v3085 = vadd.f32 %v2892, %v3084
        %v3086 = vpop.f32.mrf.mxu0
        %v3087 = vadd.f32 %v2894, %v3086
        %v3088 = vpop.f32.mrf.mxu0
        %v3089 = vadd.f32 %v2896, %v3088
        %3090 = vdwg.mxu0
        %3091 = vst [vmem:[#allocation3] sm:$0xff] %v2933
        %3092 = vst [vmem:[#allocation3 + $0x8] sm:$0xff] %v2935
        %3093 = vst [vmem:[#allocation3 + $0x10] sm:$0xff] %v2937
        %3094 = vst [vmem:[#allocation3 + $0x18] sm:$0xff] %v2939
        %3095 = vst [vmem:[#allocation3 + $0x20] sm:$0xff] %v2943
        %3096 = vst [vmem:[#allocation3 + $0x28] sm:$0xff] %v2945
        %3097 = vst [vmem:[#allocation3 + $0x30] sm:$0xff] %v2947
        %3098 = vst [vmem:[#allocation3 + $0x38] sm:$0xff] %v2949
        %3099 = vst [vmem:[#allocation3 + $0x40] sm:$0xff] %v2953
        %3100 = vst [vmem:[#allocation3 + $0x48] sm:$0xff] %v2955
        %3101 = vst [vmem:[#allocation3 + $0x50] sm:$0xff] %v2957
        %3102 = vst [vmem:[#allocation3 + $0x58] sm:$0xff] %v2959
        %3103 = vst [vmem:[#allocation3 + $0x60] sm:$0xff] %v2963
        %3104 = vst [vmem:[#allocation3 + $0x68] sm:$0xff] %v2965
        %3105 = vst [vmem:[#allocation3 + $0x70] sm:$0xff] %v2967
        %3106 = vst [vmem:[#allocation3 + $0x78] sm:$0xff] %v2969
        %3107 = vst [vmem:[#allocation3 + $0x80] sm:$0xff] %v2973
        %3108 = vst [vmem:[#allocation3 + $0x88] sm:$0xff] %v2975
        %3109 = vst [vmem:[#allocation3 + $0x90] sm:$0xff] %v2977
        %3110 = vst [vmem:[#allocation3 + $0x98] sm:$0xff] %v2979
        %3111 = vst [vmem:[#allocation3 + $0xa0] sm:$0xff] %v2983
        %3112 = vst [vmem:[#allocation3 + $0xa8] sm:$0xff] %v2985
        %3113 = vst [vmem:[#allocation3 + $0xb0] sm:$0xff] %v2987
        %3114 = vst [vmem:[#allocation3 + $0xb8] sm:$0xff] %v2989
        %3115 = vst [vmem:[#allocation3 + $0xc0] sm:$0xff] %v2993
        %3116 = vst [vmem:[#allocation3 + $0xc8] sm:$0xff] %v2995
        %3117 = vst [vmem:[#allocation3 + $0xd0] sm:$0xff] %v2997
        %3118 = vst [vmem:[#allocation3 + $0xd8] sm:$0xff] %v2999
        %3119 = vst [vmem:[#allocation3 + $0xe0] sm:$0xff] %v3003
        %3120 = vst [vmem:[#allocation3 + $0xe8] sm:$0xff] %v3005
        %3121 = vst [vmem:[#allocation3 + $0xf0] sm:$0xff] %v3007
        %3122 = vst [vmem:[#allocation3 + $0xf8] sm:$0xff] %v3009
        %3123 = vst [vmem:[#allocation3 + $0x100] sm:$0xff] %v3013
        %3124 = vst [vmem:[#allocation3 + $0x108] sm:$0xff] %v3015
        %3125 = vst [vmem:[#allocation3 + $0x110] sm:$0xff] %v3017
        %3126 = vst [vmem:[#allocation3 + $0x118] sm:$0xff] %v3019
        %3127 = vst [vmem:[#allocation3 + $0x120] sm:$0xff] %v3023
        %3128 = vst [vmem:[#allocation3 + $0x128] sm:$0xff] %v3025
        %3129 = vst [vmem:[#allocation3 + $0x130] sm:$0xff] %v3027
        %3130 = vst [vmem:[#allocation3 + $0x138] sm:$0xff] %v3029
        %3131 = vst [vmem:[#allocation3 + $0x140] sm:$0xff] %v3033
        %3132 = vst [vmem:[#allocation3 + $0x148] sm:$0xff] %v3035
        %3133 = vst [vmem:[#allocation3 + $0x150] sm:$0xff] %v3037
        %3134 = vst [vmem:[#allocation3 + $0x158] sm:$0xff] %v3039
        %3135 = vst [vmem:[#allocation3 + $0x160] sm:$0xff] %v3043
        %3136 = vst [vmem:[#allocation3 + $0x168] sm:$0xff] %v3045
        %3137 = vst [vmem:[#allocation3 + $0x170] sm:$0xff] %v3047
        %3138 = vst [vmem:[#allocation3 + $0x178] sm:$0xff] %v3049
        %3139 = vst [vmem:[#allocation3 + $0x180] sm:$0xff] %v3053
        %3140 = vst [vmem:[#allocation3 + $0x188] sm:$0xff] %v3055
        %3141 = vst [vmem:[#allocation3 + $0x190] sm:$0xff] %v3057
        %3142 = vst [vmem:[#allocation3 + $0x198] sm:$0xff] %v3059
        %3143 = vst [vmem:[#allocation3 + $0x1a0] sm:$0xff] %v3063
        %3144 = vst [vmem:[#allocation3 + $0x1a8] sm:$0xff] %v3065
        %3145 = vst [vmem:[#allocation3 + $0x1b0] sm:$0xff] %v3067
        %3146 = vst [vmem:[#allocation3 + $0x1b8] sm:$0xff] %v3069
        %3147 = vst [vmem:[#allocation3 + $0x1c0] sm:$0xff] %v3073
        %3148 = vst [vmem:[#allocation3 + $0x1c8] sm:$0xff] %v3075
        %3149 = vst [vmem:[#allocation3 + $0x1d0] sm:$0xff] %v3077
        %3150 = vst [vmem:[#allocation3 + $0x1d8] sm:$0xff] %v3079
        %3151 = vst [vmem:[#allocation3 + $0x1e0] sm:$0xff] %v3083
        %3152 = vst [vmem:[#allocation3 + $0x1e8] sm:$0xff] %v3085
        %3153 = vst [vmem:[#allocation3 + $0x1f0] sm:$0xff] %v3087
        %3154 = vst [vmem:[#allocation3 + $0x1f8] sm:$0xff] %v3089
        %v3155 = vld [vmem:[#allocation2 + $0x8] sm:$0xf]
        %v3156 = vld [vmem:[#allocation2 + $0xc] sm:$0xf]
        %v3157 = vld [vmem:[#allocation2 + $0x1c] sm:$0xf]
        %v3158 = vld [vmem:[#allocation2 + $0x20] sm:$0xf]
        %v3159 = vld [vmem:[#allocation2 + $0x30] sm:$0xf]
        %v3160 = vld [vmem:[#allocation2 + $0x34] sm:$0xf]
        %v3161 = vld [vmem:[#allocation2 + $0x44] sm:$0xf]
        %v3162 = vld [vmem:[#allocation2 + $0x48] sm:$0xf]
        %v3163 = vld [vmem:[#allocation2 + $0x58] sm:$0xf]
        %v3164 = vld [vmem:[#allocation2 + $0x5c] sm:$0xf]
        %v3165 = vld [vmem:[#allocation2 + $0x6c] sm:$0xf]
        %v3166 = vld [vmem:[#allocation2 + $0x70] sm:$0xf]
        %v3167 = vld [vmem:[#allocation2 + $0x80] sm:$0xf]
        %v3168 = vld [vmem:[#allocation2 + $0x84] sm:$0xf]
        %v3169 = vld [vmem:[#allocation2 + $0x94] sm:$0xf]
        %v3170 = vld [vmem:[#allocation2 + $0x98] sm:$0xf]
        %v3171 = vld [vmem:[#allocation2 + $0xa8] sm:$0xf]
        %v3172 = vld [vmem:[#allocation2 + $0xac] sm:$0xf]
        %v3173 = vld [vmem:[#allocation2 + $0xbc] sm:$0xf]
        %v3174 = vld [vmem:[#allocation2 + $0xc0] sm:$0xf]
        %v3175 = vld [vmem:[#allocation2 + $0xd0] sm:$0xf]
        %v3176 = vld [vmem:[#allocation2 + $0xd4] sm:$0xf]
        %v3177 = vld [vmem:[#allocation2 + $0xe4] sm:$0xf]
        %v3178 = vld [vmem:[#allocation2 + $0xe8] sm:$0xf]
        %v3179 = vld [vmem:[#allocation2 + $0xf8] sm:$0xf]
        %v3180 = vld [vmem:[#allocation2 + $0xfc] sm:$0xf]
        %v3181 = vld [vmem:[#allocation2 + $0x10c] sm:$0xf]
        %v3182 = vld [vmem:[#allocation2 + $0x110] sm:$0xf]
        %v3183 = vld [vmem:[#allocation2 + $0x120] sm:$0xf]
        %v3184 = vld [vmem:[#allocation2 + $0x124] sm:$0xf]
        %v3185 = vld [vmem:[#allocation2 + $0x134] sm:$0xf]
        %v3186 = vld [vmem:[#allocation2 + $0x138] sm:$0xf]
        %v3187 = vld [vmem:[%s869 + $0x8] sm:$0xf]
        %v3188 = vld [vmem:[%s869 + $0xc] sm:$0xf]
        %v3189 = vld [vmem:[%s869 + $0x1c] sm:$0xf]
        %v3190 = vld [vmem:[%s869 + $0x20] sm:$0xf]
        %v3191 = vld [vmem:[%s869 + $0x30] sm:$0xf]
        %v3192 = vld [vmem:[%s869 + $0x34] sm:$0xf]
        %v3193 = vld [vmem:[%s869 + $0x44] sm:$0xf]
        %v3194 = vld [vmem:[%s869 + $0x48] sm:$0xf]
        %v3195 = vld [vmem:[%s869 + $0x58] sm:$0xf]
        %v3196 = vld [vmem:[%s869 + $0x5c] sm:$0xf]
        %v3197 = vld [vmem:[%s869 + $0x6c] sm:$0xf]
        %v3198 = vld [vmem:[%s869 + $0x70] sm:$0xf]
        %v3199 = vld [vmem:[%s869 + $0x80] sm:$0xf]
        %v3200 = vld [vmem:[%s869 + $0x84] sm:$0xf]
        %v3201 = vld [vmem:[%s869 + $0x94] sm:$0xf]
        %v3202 = vld [vmem:[%s869 + $0x98] sm:$0xf]
        %v3203 = vld [vmem:[%s869 + $0xa8] sm:$0xf]
        %v3204 = vld [vmem:[%s869 + $0xac] sm:$0xf]
        %v3205 = vld [vmem:[%s869 + $0xbc] sm:$0xf]
        %v3206 = vld [vmem:[%s869 + $0xc0] sm:$0xf]
        %v3207 = vld [vmem:[%s869 + $0xd0] sm:$0xf]
        %v3208 = vld [vmem:[%s869 + $0xd4] sm:$0xf]
        %v3209 = vld [vmem:[%s869 + $0xe4] sm:$0xf]
        %v3210 = vld [vmem:[%s869 + $0xe8] sm:$0xf]
        %v3211 = vld [vmem:[%s869 + $0xf8] sm:$0xf]
        %v3212 = vld [vmem:[%s869 + $0xfc] sm:$0xf]
        %v3213 = vld [vmem:[%s869 + $0x10c] sm:$0xf]
        %v3214 = vld [vmem:[%s869 + $0x110] sm:$0xf]
        %v3215 = vld [vmem:[%s869 + $0x120] sm:$0xf]
        %v3216 = vld [vmem:[%s869 + $0x124] sm:$0xf]
        %v3217 = vld [vmem:[%s869 + $0x134] sm:$0xf]
        %v3218 = vld [vmem:[%s869 + $0x138] sm:$0xf]
        %v3219 = vld [vmem:[%s1119 + $0x8] sm:$0xf]
        %v3220 = vld [vmem:[%s1119 + $0xc] sm:$0xf]
        %v3221 = vld [vmem:[%s1119 + $0x1c] sm:$0xf]
        %v3222 = vld [vmem:[%s1119 + $0x20] sm:$0xf]
        %v3223 = vld [vmem:[%s1119 + $0x30] sm:$0xf]
        %v3224 = vld [vmem:[%s1119 + $0x34] sm:$0xf]
        %v3225 = vld [vmem:[%s1119 + $0x44] sm:$0xf]
        %v3226 = vld [vmem:[%s1119 + $0x48] sm:$0xf]
        %v3227 = vld [vmem:[%s1119 + $0x58] sm:$0xf]
        %v3228 = vld [vmem:[%s1119 + $0x5c] sm:$0xf]
        %v3229 = vld [vmem:[%s1119 + $0x6c] sm:$0xf]
        %v3230 = vld [vmem:[%s1119 + $0x70] sm:$0xf]
        %v3231 = vld [vmem:[%s1119 + $0x80] sm:$0xf]
        %v3232 = vld [vmem:[%s1119 + $0x84] sm:$0xf]
        %v3233 = vld [vmem:[%s1119 + $0x94] sm:$0xf]
        %v3234 = vld [vmem:[%s1119 + $0x98] sm:$0xf]
        %v3235 = vld [vmem:[%s1119 + $0xa8] sm:$0xf]
        %v3236 = vld [vmem:[%s1119 + $0xac] sm:$0xf]
        %v3237 = vld [vmem:[%s1119 + $0xbc] sm:$0xf]
        %v3238 = vld [vmem:[%s1119 + $0xc0] sm:$0xf]
        %v3239 = vld [vmem:[%s1119 + $0xd0] sm:$0xf]
        %v3240 = vld [vmem:[%s1119 + $0xd4] sm:$0xf]
        %v3241 = vld [vmem:[%s1119 + $0xe4] sm:$0xf]
        %v3242 = vld [vmem:[%s1119 + $0xe8] sm:$0xf]
        %v3243 = vld [vmem:[%s1119 + $0xf8] sm:$0xf]
        %v3244 = vld [vmem:[%s1119 + $0xfc] sm:$0xf]
        %v3245 = vld [vmem:[%s1119 + $0x10c] sm:$0xf]
        %v3246 = vld [vmem:[%s1119 + $0x110] sm:$0xf]
        %v3247 = vld [vmem:[%s1119 + $0x120] sm:$0xf]
        %v3248 = vld [vmem:[%s1119 + $0x124] sm:$0xf]
        %v3249 = vld [vmem:[%s1119 + $0x134] sm:$0xf]
        %v3250 = vld [vmem:[%s1119 + $0x138] sm:$0xf]
        %v3283 = vunpack.c.l.b16 %v3155
        %v3284 = vunpack.c.l.b16 %v3156
        %v3285 = vunpack.c.l.b16 %v3157
        %v3286 = vunpack.c.l.b16 %v3158
        %v3287 = vunpack.c.l.b16 %v3159
        %v3288 = vunpack.c.l.b16 %v3160
        %v3289 = vunpack.c.l.b16 %v3161
        %v3290 = vunpack.c.l.b16 %v3162
        %v3291 = vunpack.c.l.b16 %v3163
        %v3292 = vunpack.c.l.b16 %v3164
        %v3293 = vunpack.c.l.b16 %v3165
        %v3294 = vunpack.c.l.b16 %v3166
        %v3295 = vunpack.c.l.b16 %v3167
        %v3296 = vunpack.c.l.b16 %v3168
        %v3297 = vunpack.c.l.b16 %v3169
        %v3298 = vunpack.c.l.b16 %v3170
        %v3299 = vunpack.c.l.b16 %v3171
        %v3300 = vunpack.c.l.b16 %v3172
        %v3301 = vunpack.c.l.b16 %v3173
        %v3302 = vunpack.c.l.b16 %v3174
        %v3303 = vunpack.c.l.b16 %v3175
        %v3304 = vunpack.c.l.b16 %v3176
        %v3305 = vunpack.c.l.b16 %v3177
        %v3306 = vunpack.c.l.b16 %v3178
        %v3307 = vunpack.c.l.b16 %v3179
        %v3308 = vunpack.c.l.b16 %v3180
        %v3309 = vunpack.c.l.b16 %v3181
        %v3310 = vunpack.c.l.b16 %v3182
        %v3311 = vunpack.c.l.b16 %v3183
        %v3312 = vunpack.c.l.b16 %v3184
        %v3313 = vunpack.c.l.b16 %v3185
        %v3314 = vunpack.c.l.b16 %v3186
        %v3315 = vpack.c.b16 %v3284, %v3283
        %v3316 = vpack.c.b16 %v3286, %v3285
        %v3317 = vpack.c.b16 %v3288, %v3287
        %v3318 = vpack.c.b16 %v3290, %v3289
        %v3319 = vpack.c.b16 %v3292, %v3291
        %v3320 = vpack.c.b16 %v3294, %v3293
        %v3321 = vpack.c.b16 %v3296, %v3295
        %v3322 = vpack.c.b16 %v3298, %v3297
        %v3323 = vpack.c.b16 %v3300, %v3299
        %v3324 = vpack.c.b16 %v3302, %v3301
        %v3325 = vpack.c.b16 %v3304, %v3303
        %v3326 = vpack.c.b16 %v3306, %v3305
        %v3327 = vpack.c.b16 %v3308, %v3307
        %v3328 = vpack.c.b16 %v3310, %v3309
        %v3329 = vpack.c.b16 %v3312, %v3311
        %v3330 = vpack.c.b16 %v3314, %v3313
        %v3379 = vunpack.c.l.b16 %v3187
        %v3380 = vunpack.c.l.b16 %v3188
        %v3381 = vunpack.c.l.b16 %v3189
        %v3382 = vunpack.c.l.b16 %v3190
        %v3383 = vunpack.c.l.b16 %v3191
        %v3384 = vunpack.c.l.b16 %v3192
        %v3385 = vunpack.c.l.b16 %v3193
        %v3386 = vunpack.c.l.b16 %v3194
        %v3387 = vunpack.c.l.b16 %v3195
        %v3388 = vunpack.c.l.b16 %v3196
        %v3389 = vunpack.c.l.b16 %v3197
        %v3390 = vunpack.c.l.b16 %v3198
        %v3391 = vunpack.c.l.b16 %v3199
        %v3392 = vunpack.c.l.b16 %v3200
        %v3393 = vunpack.c.l.b16 %v3201
        %v3394 = vunpack.c.l.b16 %v3202
        %v3395 = vunpack.c.l.b16 %v3203
        %v3396 = vunpack.c.l.b16 %v3204
        %v3397 = vunpack.c.l.b16 %v3205
        %v3398 = vunpack.c.l.b16 %v3206
        %v3399 = vunpack.c.l.b16 %v3207
        %v3400 = vunpack.c.l.b16 %v3208
        %v3401 = vunpack.c.l.b16 %v3209
        %v3402 = vunpack.c.l.b16 %v3210
        %v3403 = vunpack.c.l.b16 %v3211
        %v3404 = vunpack.c.l.b16 %v3212
        %v3405 = vunpack.c.l.b16 %v3213
        %v3406 = vunpack.c.l.b16 %v3214
        %v3407 = vunpack.c.l.b16 %v3215
        %v3408 = vunpack.c.l.b16 %v3216
        %v3409 = vunpack.c.l.b16 %v3217
        %v3410 = vunpack.c.l.b16 %v3218
        %v3411 = vpack.c.b16 %v3380, %v3379
        %v3412 = vpack.c.b16 %v3382, %v3381
        %v3413 = vpack.c.b16 %v3384, %v3383
        %v3414 = vpack.c.b16 %v3386, %v3385
        %v3415 = vpack.c.b16 %v3388, %v3387
        %v3416 = vpack.c.b16 %v3390, %v3389
        %v3417 = vpack.c.b16 %v3392, %v3391
        %v3418 = vpack.c.b16 %v3394, %v3393
        %v3419 = vpack.c.b16 %v3396, %v3395
        %v3420 = vpack.c.b16 %v3398, %v3397
        %v3421 = vpack.c.b16 %v3400, %v3399
        %v3422 = vpack.c.b16 %v3402, %v3401
        %v3423 = vpack.c.b16 %v3404, %v3403
        %v3424 = vpack.c.b16 %v3406, %v3405
        %v3425 = vpack.c.b16 %v3408, %v3407
        %v3426 = vpack.c.b16 %v3410, %v3409
        %v3475 = vunpack.c.l.b16 %v3219
        %v3476 = vunpack.c.l.b16 %v3220
        %v3477 = vunpack.c.l.b16 %v3221
        %v3478 = vunpack.c.l.b16 %v3222
        %v3479 = vunpack.c.l.b16 %v3223
        %v3480 = vunpack.c.l.b16 %v3224
        %v3481 = vunpack.c.l.b16 %v3225
        %v3482 = vunpack.c.l.b16 %v3226
        %v3483 = vunpack.c.l.b16 %v3227
        %v3484 = vunpack.c.l.b16 %v3228
        %v3485 = vunpack.c.l.b16 %v3229
        %v3486 = vunpack.c.l.b16 %v3230
        %v3487 = vunpack.c.l.b16 %v3231
        %v3488 = vunpack.c.l.b16 %v3232
        %v3489 = vunpack.c.l.b16 %v3233
        %v3490 = vunpack.c.l.b16 %v3234
        %v3491 = vunpack.c.l.b16 %v3235
        %v3492 = vunpack.c.l.b16 %v3236
        %v3493 = vunpack.c.l.b16 %v3237
        %v3494 = vunpack.c.l.b16 %v3238
        %v3495 = vunpack.c.l.b16 %v3239
        %v3496 = vunpack.c.l.b16 %v3240
        %v3497 = vunpack.c.l.b16 %v3241
        %v3498 = vunpack.c.l.b16 %v3242
        %v3499 = vunpack.c.l.b16 %v3243
        %v3500 = vunpack.c.l.b16 %v3244
        %v3501 = vunpack.c.l.b16 %v3245
        %v3502 = vunpack.c.l.b16 %v3246
        %v3503 = vunpack.c.l.b16 %v3247
        %v3504 = vunpack.c.l.b16 %v3248
        %v3505 = vunpack.c.l.b16 %v3249
        %v3506 = vunpack.c.l.b16 %v3250
        %v3507 = vpack.c.b16 %v3476, %v3475
        %v3508 = vpack.c.b16 %v3478, %v3477
        %v3509 = vpack.c.b16 %v3480, %v3479
        %v3510 = vpack.c.b16 %v3482, %v3481
        %v3511 = vpack.c.b16 %v3484, %v3483
        %v3512 = vpack.c.b16 %v3486, %v3485
        %v3513 = vpack.c.b16 %v3488, %v3487
        %v3514 = vpack.c.b16 %v3490, %v3489
        %v3515 = vpack.c.b16 %v3492, %v3491
        %v3516 = vpack.c.b16 %v3494, %v3493
        %v3517 = vpack.c.b16 %v3496, %v3495
        %v3518 = vpack.c.b16 %v3498, %v3497
        %v3519 = vpack.c.b16 %v3500, %v3499
        %v3520 = vpack.c.b16 %v3502, %v3501
        %v3521 = vpack.c.b16 %v3504, %v3503
        %v3522 = vpack.c.b16 %v3506, %v3505
        %v3539 = vld [vmem:[%s4 + $0x180] sm:$0xff]
        %v3540 = vld [vmem:[%s4 + $0x188] sm:$0xff]
        %v3541 = vld [vmem:[%s4 + $0x190] sm:$0xff]
        %v3542 = vld [vmem:[%s4 + $0x198] sm:$0xff]
        %v3543 = vld [vmem:[%s4 + $0x1a0] sm:$0xff]
        %v3544 = vld [vmem:[%s4 + $0x1a8] sm:$0xff]
        %v3545 = vld [vmem:[%s4 + $0x1b0] sm:$0xff]
        %v3546 = vld [vmem:[%s4 + $0x1b8] sm:$0xff]
        %v3547 = vld [vmem:[%s4 + $0x1c0] sm:$0xff]
        %v3548 = vld [vmem:[%s4 + $0x1c8] sm:$0xff]
        %v3549 = vld [vmem:[%s4 + $0x1d0] sm:$0xff]
        %v3550 = vld [vmem:[%s4 + $0x1d8] sm:$0xff]
        %v3551 = vld [vmem:[%s4 + $0x1e0] sm:$0xff]
        %v3552 = vld [vmem:[%s4 + $0x1e8] sm:$0xff]
        %v3553 = vld [vmem:[%s4 + $0x1f0] sm:$0xff]
        %v3554 = vld [vmem:[%s4 + $0x1f8] sm:$0xff]
        %v3555 = vld [vmem:[%s4 + $0x200] sm:$0xff]
        %v3556 = vld [vmem:[%s4 + $0x208] sm:$0xff]
        %v3557 = vld [vmem:[%s4 + $0x210] sm:$0xff]
        %v3558 = vld [vmem:[%s4 + $0x218] sm:$0xff]
        %v3559 = vld [vmem:[%s4 + $0x220] sm:$0xff]
        %v3560 = vld [vmem:[%s4 + $0x228] sm:$0xff]
        %v3561 = vld [vmem:[%s4 + $0x230] sm:$0xff]
        %v3562 = vld [vmem:[%s4 + $0x238] sm:$0xff]
        %v3563 = vld [vmem:[%s4 + $0x240] sm:$0xff]
        %v3564 = vld [vmem:[%s4 + $0x248] sm:$0xff]
        %v3565 = vld [vmem:[%s4 + $0x250] sm:$0xff]
        %v3566 = vld [vmem:[%s4 + $0x258] sm:$0xff]
        %v3567 = vld [vmem:[%s4 + $0x260] sm:$0xff]
        %v3568 = vld [vmem:[%s4 + $0x268] sm:$0xff]
        %v3569 = vld [vmem:[%s4 + $0x270] sm:$0xff]
        %v3570 = vld [vmem:[%s4 + $0x278] sm:$0xff]
        %v3571 = vld [vmem:[%s4 + $0x280] sm:$0xff]
        %v3572 = vld [vmem:[%s4 + $0x288] sm:$0xff]
        %v3573 = vld [vmem:[%s4 + $0x290] sm:$0xff]
        %v3574 = vld [vmem:[%s4 + $0x298] sm:$0xff]
        %v3575 = vld [vmem:[%s4 + $0x2a0] sm:$0xff]
        %v3576 = vld [vmem:[%s4 + $0x2a8] sm:$0xff]
        %v3577 = vld [vmem:[%s4 + $0x2b0] sm:$0xff]
        %v3578 = vld [vmem:[%s4 + $0x2b8] sm:$0xff]
        %v3579 = vld [vmem:[%s4 + $0x2c0] sm:$0xff]
        %v3580 = vld [vmem:[%s4 + $0x2c8] sm:$0xff]
        %v3581 = vld [vmem:[%s4 + $0x2d0] sm:$0xff]
        %v3582 = vld [vmem:[%s4 + $0x2d8] sm:$0xff]
        %v3583 = vld [vmem:[%s4 + $0x2e0] sm:$0xff]
        %v3584 = vld [vmem:[%s4 + $0x2e8] sm:$0xff]
        %v3585 = vld [vmem:[%s4 + $0x2f0] sm:$0xff]
        %v3586 = vld [vmem:[%s4 + $0x2f8] sm:$0xff]
        %v3635 = vunpack.c.l.b16 %v3539
        %v3636 = vunpack.c.h.b16 %v3539
        %v3637 = vunpack.c.l.b16 %v3540
        %v3638 = vunpack.c.h.b16 %v3540
        %v3639 = vunpack.c.l.b16 %v3541
        %v3640 = vunpack.c.h.b16 %v3541
        %v3641 = vunpack.c.l.b16 %v3542
        %v3642 = vunpack.c.h.b16 %v3542
        %v3643 = vunpack.c.l.b16 %v3543
        %v3644 = vunpack.c.h.b16 %v3543
        %v3645 = vunpack.c.l.b16 %v3544
        %v3646 = vunpack.c.h.b16 %v3544
        %v3647 = vunpack.c.l.b16 %v3545
        %v3648 = vunpack.c.h.b16 %v3545
        %v3649 = vunpack.c.l.b16 %v3546
        %v3650 = vunpack.c.h.b16 %v3546
        %v3651 = vunpack.c.l.b16 %v3547
        %v3652 = vunpack.c.h.b16 %v3547
        %v3653 = vunpack.c.l.b16 %v3548
        %v3654 = vunpack.c.h.b16 %v3548
        %v3655 = vunpack.c.l.b16 %v3549
        %v3656 = vunpack.c.h.b16 %v3549
        %v3657 = vunpack.c.l.b16 %v3550
        %v3658 = vunpack.c.h.b16 %v3550
        %v3659 = vunpack.c.l.b16 %v3551
        %v3660 = vunpack.c.h.b16 %v3551
        %v3661 = vunpack.c.l.b16 %v3552
        %v3662 = vunpack.c.h.b16 %v3552
        %v3663 = vunpack.c.l.b16 %v3553
        %v3664 = vunpack.c.h.b16 %v3553
        %v3665 = vunpack.c.l.b16 %v3554
        %v3666 = vunpack.c.h.b16 %v3554
        %v3667 = vunpack.c.l.b16 %v3555
        %v3668 = vunpack.c.h.b16 %v3555
        %v3669 = vunpack.c.l.b16 %v3556
        %v3670 = vunpack.c.h.b16 %v3556
        %v3671 = vunpack.c.l.b16 %v3557
        %v3672 = vunpack.c.h.b16 %v3557
        %v3673 = vunpack.c.l.b16 %v3558
        %v3674 = vunpack.c.h.b16 %v3558
        %v3675 = vunpack.c.l.b16 %v3559
        %v3676 = vunpack.c.h.b16 %v3559
        %v3677 = vunpack.c.l.b16 %v3560
        %v3678 = vunpack.c.h.b16 %v3560
        %v3679 = vunpack.c.l.b16 %v3561
        %v3680 = vunpack.c.h.b16 %v3561
        %v3681 = vunpack.c.l.b16 %v3562
        %v3682 = vunpack.c.h.b16 %v3562
        %v3683 = vunpack.c.l.b16 %v3563
        %v3684 = vunpack.c.h.b16 %v3563
        %v3685 = vunpack.c.l.b16 %v3564
        %v3686 = vunpack.c.h.b16 %v3564
        %v3687 = vunpack.c.l.b16 %v3565
        %v3688 = vunpack.c.h.b16 %v3565
        %v3689 = vunpack.c.l.b16 %v3566
        %v3690 = vunpack.c.h.b16 %v3566
        %v3691 = vunpack.c.l.b16 %v3567
        %v3692 = vunpack.c.h.b16 %v3567
        %v3693 = vunpack.c.l.b16 %v3568
        %v3694 = vunpack.c.h.b16 %v3568
        %v3695 = vunpack.c.l.b16 %v3569
        %v3696 = vunpack.c.h.b16 %v3569
        %v3697 = vunpack.c.l.b16 %v3570
        %v3698 = vunpack.c.h.b16 %v3570
        %v3699 = vunpack.c.l.b16 %v3571
        %v3700 = vunpack.c.h.b16 %v3571
        %v3701 = vunpack.c.l.b16 %v3572
        %v3702 = vunpack.c.h.b16 %v3572
        %v3703 = vunpack.c.l.b16 %v3573
        %v3704 = vunpack.c.h.b16 %v3573
        %v3705 = vunpack.c.l.b16 %v3574
        %v3706 = vunpack.c.h.b16 %v3574
        %v3707 = vunpack.c.l.b16 %v3575
        %v3708 = vunpack.c.h.b16 %v3575
        %v3709 = vunpack.c.l.b16 %v3576
        %v3710 = vunpack.c.h.b16 %v3576
        %v3711 = vunpack.c.l.b16 %v3577
        %v3712 = vunpack.c.h.b16 %v3577
        %v3713 = vunpack.c.l.b16 %v3578
        %v3714 = vunpack.c.h.b16 %v3578
        %v3715 = vunpack.c.l.b16 %v3579
        %v3716 = vunpack.c.h.b16 %v3579
        %v3717 = vunpack.c.l.b16 %v3580
        %v3718 = vunpack.c.h.b16 %v3580
        %v3719 = vunpack.c.l.b16 %v3581
        %v3720 = vunpack.c.h.b16 %v3581
        %v3721 = vunpack.c.l.b16 %v3582
        %v3722 = vunpack.c.h.b16 %v3582
        %v3723 = vunpack.c.l.b16 %v3583
        %v3724 = vunpack.c.h.b16 %v3583
        %v3725 = vunpack.c.l.b16 %v3584
        %v3726 = vunpack.c.h.b16 %v3584
        %v3727 = vunpack.c.l.b16 %v3585
        %v3728 = vunpack.c.h.b16 %v3585
        %v3729 = vunpack.c.l.b16 %v3586
        %v3730 = vunpack.c.h.b16 %v3586
        %v3731 = vpack.c.b16 %v3637, %v3635
        %v3732 = vpack.c.b16 %v3638, %v3636
        %v3733 = vpack.c.b16 %v3641, %v3639
        %v3734 = vpack.c.b16 %v3642, %v3640
        %v3735 = vpack.c.b16 %v3645, %v3643
        %v3736 = vpack.c.b16 %v3646, %v3644
        %v3737 = vpack.c.b16 %v3649, %v3647
        %v3738 = vpack.c.b16 %v3650, %v3648
        %v3739 = vpack.c.b16 %v3653, %v3651
        %v3740 = vpack.c.b16 %v3654, %v3652
        %v3741 = vpack.c.b16 %v3657, %v3655
        %v3742 = vpack.c.b16 %v3658, %v3656
        %v3743 = vpack.c.b16 %v3661, %v3659
        %v3744 = vpack.c.b16 %v3662, %v3660
        %v3745 = vpack.c.b16 %v3665, %v3663
        %v3746 = vpack.c.b16 %v3666, %v3664
        %v3747 = vpack.c.b16 %v3669, %v3667
        %v3748 = vpack.c.b16 %v3670, %v3668
        %v3749 = vpack.c.b16 %v3673, %v3671
        %v3750 = vpack.c.b16 %v3674, %v3672
        %v3751 = vpack.c.b16 %v3677, %v3675
        %v3752 = vpack.c.b16 %v3678, %v3676
        %v3753 = vpack.c.b16 %v3681, %v3679
        %v3754 = vpack.c.b16 %v3682, %v3680
        %v3755 = vpack.c.b16 %v3685, %v3683
        %v3756 = vpack.c.b16 %v3686, %v3684
        %v3757 = vpack.c.b16 %v3689, %v3687
        %v3758 = vpack.c.b16 %v3690, %v3688
        %v3759 = vpack.c.b16 %v3693, %v3691
        %v3760 = vpack.c.b16 %v3694, %v3692
        %v3761 = vpack.c.b16 %v3697, %v3695
        %v3762 = vpack.c.b16 %v3698, %v3696
        %v3763 = vpack.c.b16 %v3701, %v3699
        %v3764 = vpack.c.b16 %v3702, %v3700
        %v3765 = vpack.c.b16 %v3705, %v3703
        %v3766 = vpack.c.b16 %v3706, %v3704
        %v3767 = vpack.c.b16 %v3709, %v3707
        %v3768 = vpack.c.b16 %v3710, %v3708
        %v3769 = vpack.c.b16 %v3713, %v3711
        %v3770 = vpack.c.b16 %v3714, %v3712
        %v3771 = vpack.c.b16 %v3717, %v3715
        %v3772 = vpack.c.b16 %v3718, %v3716
        %v3773 = vpack.c.b16 %v3721, %v3719
        %v3774 = vpack.c.b16 %v3722, %v3720
        %v3775 = vpack.c.b16 %v3725, %v3723
        %v3776 = vpack.c.b16 %v3726, %v3724
        %v3777 = vpack.c.b16 %v3729, %v3727
        %v3778 = vpack.c.b16 %v3730, %v3728
        %3827 = vmatprep.subr.bf16.mxu0 %v3746
        %3828 = vmatpush1.bf16.msra.mxu0 %v3745
        %3829 = vmatprep.subr.bf16.mxu0 %v3744
        %3830 = vmatpush1.bf16.msra.mxu0 %v3743
        %3831 = vmatprep.subr.bf16.mxu0 %v3742
        %3832 = vmatpush1.bf16.msra.mxu0 %v3741
        %3833 = vmatprep.subr.bf16.mxu0 %v3740
        %3834 = vmatpush1.bf16.msra.mxu0 %v3739
        %3835 = vmatprep.subr.bf16.mxu0 %v3738
        %3836 = vmatpush1.bf16.msra.mxu0 %v3737
        %3837 = vmatprep.subr.bf16.mxu0 %v3736
        %3838 = vmatpush1.bf16.msra.mxu0 %v3735
        %3839 = vmatprep.subr.bf16.mxu0 %v3734
        %3840 = vmatpush1.bf16.msra.mxu0 %v3733
        %3841 = vmatprep.subr.bf16.mxu0 %v3732
        %3842 = vmatpush1.bf16.msra.mxu0 %v3731
        %3843 = vmatprep.subr.bf16.mxu0 %v3762
        %3844 = vmatpush2.bf16.msra.mxu0 %v3761
        %3845 = vmatprep.subr.bf16.mxu0 %v3760
        %3846 = vmatpush2.bf16.msra.mxu0 %v3759
        %3847 = vmatprep.subr.bf16.mxu0 %v3758
        %3848 = vmatpush2.bf16.msra.mxu0 %v3757
        %3849 = vmatprep.subr.bf16.mxu0 %v3756
        %3850 = vmatpush2.bf16.msra.mxu0 %v3755
        %3851 = vmatprep.subr.bf16.mxu0 %v3754
        %3852 = vmatpush2.bf16.msra.mxu0 %v3753
        %3853 = vmatprep.subr.bf16.mxu0 %v3752
        %3854 = vmatpush2.bf16.msra.mxu0 %v3751
        %3855 = vmatprep.subr.bf16.mxu0 %v3750
        %3856 = vmatpush2.bf16.msra.mxu0 %v3749
        %3857 = vmatprep.subr.bf16.mxu0 %v3748
        %3858 = vmatpush2.bf16.msra.mxu0 %v3747
        %3859 = vmatprep.mubr.bf16.mxu0 %v3411
        %3860 = vmatmul.mubr.bf16.gmra.mxu0 %v3315
        %v3861 = vpop.f32.mrf.mxu0
        %v3862 = vadd.f32 0.0, %v3861
        %v3863 = vpop.f32.mrf.mxu0
        %v3864 = vadd.f32 0.0, %v3863
        %v3865 = vpop.f32.mrf.mxu0
        %v3866 = vadd.f32 0.0, %v3865
        %v3867 = vpop.f32.mrf.mxu0
        %v3868 = vadd.f32 0.0, %v3867
        %3869 = vmatprep.mubr.bf16.mxu0 %v3412
        %3870 = vmatmul.mubr.bf16.gmra.mxu0 %v3316
        %v3871 = vpop.f32.mrf.mxu0
        %v3872 = vadd.f32 0.0, %v3871
        %v3873 = vpop.f32.mrf.mxu0
        %v3874 = vadd.f32 0.0, %v3873
        %v3875 = vpop.f32.mrf.mxu0
        %v3876 = vadd.f32 0.0, %v3875
        %v3877 = vpop.f32.mrf.mxu0
        %v3878 = vadd.f32 0.0, %v3877
        %3879 = vmatprep.mubr.bf16.mxu0 %v3413
        %3880 = vmatmul.mubr.bf16.gmra.mxu0 %v3317
        %v3881 = vpop.f32.mrf.mxu0
        %v3882 = vadd.f32 0.0, %v3881
        %v3883 = vpop.f32.mrf.mxu0
        %v3884 = vadd.f32 0.0, %v3883
        %v3885 = vpop.f32.mrf.mxu0
        %v3886 = vadd.f32 0.0, %v3885
        %v3887 = vpop.f32.mrf.mxu0
        %v3888 = vadd.f32 0.0, %v3887
        %3889 = vmatprep.mubr.bf16.mxu0 %v3414
        %3890 = vmatmul.mubr.bf16.gmra.mxu0 %v3318
        %v3891 = vpop.f32.mrf.mxu0
        %v3892 = vadd.f32 0.0, %v3891
        %v3893 = vpop.f32.mrf.mxu0
        %v3894 = vadd.f32 0.0, %v3893
        %v3895 = vpop.f32.mrf.mxu0
        %v3896 = vadd.f32 0.0, %v3895
        %v3897 = vpop.f32.mrf.mxu0
        %v3898 = vadd.f32 0.0, %v3897
        %3899 = vmatprep.mubr.bf16.mxu0 %v3415
        %3900 = vmatmul.mubr.bf16.gmra.mxu0 %v3319
        %v3901 = vpop.f32.mrf.mxu0
        %v3902 = vadd.f32 0.0, %v3901
        %v3903 = vpop.f32.mrf.mxu0
        %v3904 = vadd.f32 0.0, %v3903
        %v3905 = vpop.f32.mrf.mxu0
        %v3906 = vadd.f32 0.0, %v3905
        %v3907 = vpop.f32.mrf.mxu0
        %v3908 = vadd.f32 0.0, %v3907
        %3909 = vmatprep.mubr.bf16.mxu0 %v3416
        %3910 = vmatmul.mubr.bf16.gmra.mxu0 %v3320
        %v3911 = vpop.f32.mrf.mxu0
        %v3912 = vadd.f32 0.0, %v3911
        %v3913 = vpop.f32.mrf.mxu0
        %v3914 = vadd.f32 0.0, %v3913
        %v3915 = vpop.f32.mrf.mxu0
        %v3916 = vadd.f32 0.0, %v3915
        %v3917 = vpop.f32.mrf.mxu0
        %v3918 = vadd.f32 0.0, %v3917
        %3919 = vmatprep.mubr.bf16.mxu0 %v3417
        %3920 = vmatmul.mubr.bf16.gmra.mxu0 %v3321
        %v3921 = vpop.f32.mrf.mxu0
        %v3922 = vadd.f32 0.0, %v3921
        %v3923 = vpop.f32.mrf.mxu0
        %v3924 = vadd.f32 0.0, %v3923
        %v3925 = vpop.f32.mrf.mxu0
        %v3926 = vadd.f32 0.0, %v3925
        %v3927 = vpop.f32.mrf.mxu0
        %v3928 = vadd.f32 0.0, %v3927
        %3929 = vmatprep.mubr.bf16.mxu0 %v3418
        %3930 = vmatmul.mubr.bf16.gmra.mxu0 %v3322
        %v3931 = vpop.f32.mrf.mxu0
        %v3932 = vadd.f32 0.0, %v3931
        %v3933 = vpop.f32.mrf.mxu0
        %v3934 = vadd.f32 0.0, %v3933
        %v3935 = vpop.f32.mrf.mxu0
        %v3936 = vadd.f32 0.0, %v3935
        %v3937 = vpop.f32.mrf.mxu0
        %v3938 = vadd.f32 0.0, %v3937
        %3939 = vmatprep.mubr.bf16.mxu0 %v3419
        %3940 = vmatmul.mubr.bf16.gmra.mxu0 %v3323
        %v3941 = vpop.f32.mrf.mxu0
        %v3942 = vadd.f32 0.0, %v3941
        %v3943 = vpop.f32.mrf.mxu0
        %v3944 = vadd.f32 0.0, %v3943
        %v3945 = vpop.f32.mrf.mxu0
        %v3946 = vadd.f32 0.0, %v3945
        %v3947 = vpop.f32.mrf.mxu0
        %v3948 = vadd.f32 0.0, %v3947
        %3949 = vmatprep.mubr.bf16.mxu0 %v3420
        %3950 = vmatmul.mubr.bf16.gmra.mxu0 %v3324
        %v3951 = vpop.f32.mrf.mxu0
        %v3952 = vadd.f32 0.0, %v3951
        %v3953 = vpop.f32.mrf.mxu0
        %v3954 = vadd.f32 0.0, %v3953
        %v3955 = vpop.f32.mrf.mxu0
        %v3956 = vadd.f32 0.0, %v3955
        %v3957 = vpop.f32.mrf.mxu0
        %v3958 = vadd.f32 0.0, %v3957
        %3959 = vmatprep.mubr.bf16.mxu0 %v3421
        %3960 = vmatmul.mubr.bf16.gmra.mxu0 %v3325
        %v3961 = vpop.f32.mrf.mxu0
        %v3962 = vadd.f32 0.0, %v3961
        %v3963 = vpop.f32.mrf.mxu0
        %v3964 = vadd.f32 0.0, %v3963
        %v3965 = vpop.f32.mrf.mxu0
        %v3966 = vadd.f32 0.0, %v3965
        %v3967 = vpop.f32.mrf.mxu0
        %v3968 = vadd.f32 0.0, %v3967
        %3969 = vmatprep.mubr.bf16.mxu0 %v3422
        %3970 = vmatmul.mubr.bf16.gmra.mxu0 %v3326
        %v3971 = vpop.f32.mrf.mxu0
        %v3972 = vadd.f32 0.0, %v3971
        %v3973 = vpop.f32.mrf.mxu0
        %v3974 = vadd.f32 0.0, %v3973
        %v3975 = vpop.f32.mrf.mxu0
        %v3976 = vadd.f32 0.0, %v3975
        %v3977 = vpop.f32.mrf.mxu0
        %v3978 = vadd.f32 0.0, %v3977
        %3979 = vmatprep.mubr.bf16.mxu0 %v3423
        %3980 = vmatmul.mubr.bf16.gmra.mxu0 %v3327
        %v3981 = vpop.f32.mrf.mxu0
        %v3982 = vadd.f32 0.0, %v3981
        %v3983 = vpop.f32.mrf.mxu0
        %v3984 = vadd.f32 0.0, %v3983
        %v3985 = vpop.f32.mrf.mxu0
        %v3986 = vadd.f32 0.0, %v3985
        %v3987 = vpop.f32.mrf.mxu0
        %v3988 = vadd.f32 0.0, %v3987
        %3989 = vmatprep.mubr.bf16.mxu0 %v3424
        %3990 = vmatmul.mubr.bf16.gmra.mxu0 %v3328
        %v3991 = vpop.f32.mrf.mxu0
        %v3992 = vadd.f32 0.0, %v3991
        %v3993 = vpop.f32.mrf.mxu0
        %v3994 = vadd.f32 0.0, %v3993
        %v3995 = vpop.f32.mrf.mxu0
        %v3996 = vadd.f32 0.0, %v3995
        %v3997 = vpop.f32.mrf.mxu0
        %v3998 = vadd.f32 0.0, %v3997
        %3999 = vmatprep.mubr.bf16.mxu0 %v3425
        %4000 = vmatmul.mubr.bf16.gmra.mxu0 %v3329
        %v4001 = vpop.f32.mrf.mxu0
        %v4002 = vadd.f32 0.0, %v4001
        %v4003 = vpop.f32.mrf.mxu0
        %v4004 = vadd.f32 0.0, %v4003
        %v4005 = vpop.f32.mrf.mxu0
        %v4006 = vadd.f32 0.0, %v4005
        %v4007 = vpop.f32.mrf.mxu0
        %v4008 = vadd.f32 0.0, %v4007
        %4009 = vmatprep.mubr.bf16.mxu0 %v3426
        %4010 = vmatmul.mubr.bf16.gmra.mxu0 %v3330
        %v4011 = vpop.f32.mrf.mxu0
        %v4012 = vadd.f32 0.0, %v4011
        %v4013 = vpop.f32.mrf.mxu0
        %v4014 = vadd.f32 0.0, %v4013
        %v4015 = vpop.f32.mrf.mxu0
        %v4016 = vadd.f32 0.0, %v4015
        %v4017 = vpop.f32.mrf.mxu0
        %v4018 = vadd.f32 0.0, %v4017
        %4019 = vdwg.mxu0
        %4020 = vmatprep.subr.bf16.mxu0 %v3778
        %4021 = vmatpush1.bf16.msra.mxu0 %v3777
        %4022 = vmatprep.subr.bf16.mxu0 %v3776
        %4023 = vmatpush1.bf16.msra.mxu0 %v3775
        %4024 = vmatprep.subr.bf16.mxu0 %v3774
        %4025 = vmatpush1.bf16.msra.mxu0 %v3773
        %4026 = vmatprep.subr.bf16.mxu0 %v3772
        %4027 = vmatpush1.bf16.msra.mxu0 %v3771
        %4028 = vmatprep.subr.bf16.mxu0 %v3770
        %4029 = vmatpush1.bf16.msra.mxu0 %v3769
        %4030 = vmatprep.subr.bf16.mxu0 %v3768
        %4031 = vmatpush1.bf16.msra.mxu0 %v3767
        %4032 = vmatprep.subr.bf16.mxu0 %v3766
        %4033 = vmatpush1.bf16.msra.mxu0 %v3765
        %4034 = vmatprep.subr.bf16.mxu0 %v3764
        %4035 = vmatpush1.bf16.msra.mxu0 %v3763
        %4036 = vmatprep.subr.bf16.mxu0 0
        %4037 = vmatpush2.bf16.msra.mxu0 0
        %4038 = vmatprep.subr.bf16.mxu0 0
        %4039 = vmatpush2.bf16.msra.mxu0 0
        %4040 = vmatprep.subr.bf16.mxu0 0
        %4041 = vmatpush2.bf16.msra.mxu0 0
        %4042 = vmatprep.subr.bf16.mxu0 0
        %4043 = vmatpush2.bf16.msra.mxu0 0
        %4044 = vmatprep.subr.bf16.mxu0 0
        %4045 = vmatpush2.bf16.msra.mxu0 0
        %4046 = vmatprep.subr.bf16.mxu0 0
        %4047 = vmatpush2.bf16.msra.mxu0 0
        %4048 = vmatprep.subr.bf16.mxu0 0
        %4049 = vmatpush2.bf16.msra.mxu0 0
        %4050 = vmatprep.subr.bf16.mxu0 0
        %4051 = vmatpush2.bf16.msra.mxu0 0
        %4052 = vmatprep.mubr.bf16.mxu0 0
        %4053 = vmatmul.mubr.bf16.gmra.mxu0 %v3507
        %v4054 = vpop.f32.mrf.mxu0
        %v4055 = vadd.f32 %v3862, %v4054
        %v4056 = vpop.f32.mrf.mxu0
        %v4057 = vadd.f32 %v3864, %v4056
        %v4058 = vpop.f32.mrf.mxu0
        %v4059 = vadd.f32 %v3866, %v4058
        %v4060 = vpop.f32.mrf.mxu0
        %v4061 = vadd.f32 %v3868, %v4060
        %4062 = vmatprep.mubr.bf16.mxu0 0
        %4063 = vmatmul.mubr.bf16.gmra.mxu0 %v3508
        %v4064 = vpop.f32.mrf.mxu0
        %v4065 = vadd.f32 %v3872, %v4064
        %v4066 = vpop.f32.mrf.mxu0
        %v4067 = vadd.f32 %v3874, %v4066
        %v4068 = vpop.f32.mrf.mxu0
        %v4069 = vadd.f32 %v3876, %v4068
        %v4070 = vpop.f32.mrf.mxu0
        %v4071 = vadd.f32 %v3878, %v4070
        %4072 = vmatprep.mubr.bf16.mxu0 0
        %4073 = vmatmul.mubr.bf16.gmra.mxu0 %v3509
        %v4074 = vpop.f32.mrf.mxu0
        %v4075 = vadd.f32 %v3882, %v4074
        %v4076 = vpop.f32.mrf.mxu0
        %v4077 = vadd.f32 %v3884, %v4076
        %v4078 = vpop.f32.mrf.mxu0
        %v4079 = vadd.f32 %v3886, %v4078
        %v4080 = vpop.f32.mrf.mxu0
        %v4081 = vadd.f32 %v3888, %v4080
        %4082 = vmatprep.mubr.bf16.mxu0 0
        %4083 = vmatmul.mubr.bf16.gmra.mxu0 %v3510
        %v4084 = vpop.f32.mrf.mxu0
        %v4085 = vadd.f32 %v3892, %v4084
        %v4086 = vpop.f32.mrf.mxu0
        %v4087 = vadd.f32 %v3894, %v4086
        %v4088 = vpop.f32.mrf.mxu0
        %v4089 = vadd.f32 %v3896, %v4088
        %v4090 = vpop.f32.mrf.mxu0
        %v4091 = vadd.f32 %v3898, %v4090
        %4092 = vmatprep.mubr.bf16.mxu0 0
        %4093 = vmatmul.mubr.bf16.gmra.mxu0 %v3511
        %v4094 = vpop.f32.mrf.mxu0
        %v4095 = vadd.f32 %v3902, %v4094
        %v4096 = vpop.f32.mrf.mxu0
        %v4097 = vadd.f32 %v3904, %v4096
        %v4098 = vpop.f32.mrf.mxu0
        %v4099 = vadd.f32 %v3906, %v4098
        %v4100 = vpop.f32.mrf.mxu0
        %v4101 = vadd.f32 %v3908, %v4100
        %4102 = vmatprep.mubr.bf16.mxu0 0
        %4103 = vmatmul.mubr.bf16.gmra.mxu0 %v3512
        %v4104 = vpop.f32.mrf.mxu0
        %v4105 = vadd.f32 %v3912, %v4104
        %v4106 = vpop.f32.mrf.mxu0
        %v4107 = vadd.f32 %v3914, %v4106
        %v4108 = vpop.f32.mrf.mxu0
        %v4109 = vadd.f32 %v3916, %v4108
        %v4110 = vpop.f32.mrf.mxu0
        %v4111 = vadd.f32 %v3918, %v4110
        %4112 = vmatprep.mubr.bf16.mxu0 0
        %4113 = vmatmul.mubr.bf16.gmra.mxu0 %v3513
        %v4114 = vpop.f32.mrf.mxu0
        %v4115 = vadd.f32 %v3922, %v4114
        %v4116 = vpop.f32.mrf.mxu0
        %v4117 = vadd.f32 %v3924, %v4116
        %v4118 = vpop.f32.mrf.mxu0
        %v4119 = vadd.f32 %v3926, %v4118
        %v4120 = vpop.f32.mrf.mxu0
        %v4121 = vadd.f32 %v3928, %v4120
        %4122 = vmatprep.mubr.bf16.mxu0 0
        %4123 = vmatmul.mubr.bf16.gmra.mxu0 %v3514
        %v4124 = vpop.f32.mrf.mxu0
        %v4125 = vadd.f32 %v3932, %v4124
        %v4126 = vpop.f32.mrf.mxu0
        %v4127 = vadd.f32 %v3934, %v4126
        %v4128 = vpop.f32.mrf.mxu0
        %v4129 = vadd.f32 %v3936, %v4128
        %v4130 = vpop.f32.mrf.mxu0
        %v4131 = vadd.f32 %v3938, %v4130
        %4132 = vmatprep.mubr.bf16.mxu0 0
        %4133 = vmatmul.mubr.bf16.gmra.mxu0 %v3515
        %v4134 = vpop.f32.mrf.mxu0
        %v4135 = vadd.f32 %v3942, %v4134
        %v4136 = vpop.f32.mrf.mxu0
        %v4137 = vadd.f32 %v3944, %v4136
        %v4138 = vpop.f32.mrf.mxu0
        %v4139 = vadd.f32 %v3946, %v4138
        %v4140 = vpop.f32.mrf.mxu0
        %v4141 = vadd.f32 %v3948, %v4140
        %4142 = vmatprep.mubr.bf16.mxu0 0
        %4143 = vmatmul.mubr.bf16.gmra.mxu0 %v3516
        %v4144 = vpop.f32.mrf.mxu0
        %v4145 = vadd.f32 %v3952, %v4144
        %v4146 = vpop.f32.mrf.mxu0
        %v4147 = vadd.f32 %v3954, %v4146
        %v4148 = vpop.f32.mrf.mxu0
        %v4149 = vadd.f32 %v3956, %v4148
        %v4150 = vpop.f32.mrf.mxu0
        %v4151 = vadd.f32 %v3958, %v4150
        %4152 = vmatprep.mubr.bf16.mxu0 0
        %4153 = vmatmul.mubr.bf16.gmra.mxu0 %v3517
        %v4154 = vpop.f32.mrf.mxu0
        %v4155 = vadd.f32 %v3962, %v4154
        %v4156 = vpop.f32.mrf.mxu0
        %v4157 = vadd.f32 %v3964, %v4156
        %v4158 = vpop.f32.mrf.mxu0
        %v4159 = vadd.f32 %v3966, %v4158
        %v4160 = vpop.f32.mrf.mxu0
        %v4161 = vadd.f32 %v3968, %v4160
        %4162 = vmatprep.mubr.bf16.mxu0 0
        %4163 = vmatmul.mubr.bf16.gmra.mxu0 %v3518
        %v4164 = vpop.f32.mrf.mxu0
        %v4165 = vadd.f32 %v3972, %v4164
        %v4166 = vpop.f32.mrf.mxu0
        %v4167 = vadd.f32 %v3974, %v4166
        %v4168 = vpop.f32.mrf.mxu0
        %v4169 = vadd.f32 %v3976, %v4168
        %v4170 = vpop.f32.mrf.mxu0
        %v4171 = vadd.f32 %v3978, %v4170
        %4172 = vmatprep.mubr.bf16.mxu0 0
        %4173 = vmatmul.mubr.bf16.gmra.mxu0 %v3519
        %v4174 = vpop.f32.mrf.mxu0
        %v4175 = vadd.f32 %v3982, %v4174
        %v4176 = vpop.f32.mrf.mxu0
        %v4177 = vadd.f32 %v3984, %v4176
        %v4178 = vpop.f32.mrf.mxu0
        %v4179 = vadd.f32 %v3986, %v4178
        %v4180 = vpop.f32.mrf.mxu0
        %v4181 = vadd.f32 %v3988, %v4180
        %4182 = vmatprep.mubr.bf16.mxu0 0
        %4183 = vmatmul.mubr.bf16.gmra.mxu0 %v3520
        %v4184 = vpop.f32.mrf.mxu0
        %v4185 = vadd.f32 %v3992, %v4184
        %v4186 = vpop.f32.mrf.mxu0
        %v4187 = vadd.f32 %v3994, %v4186
        %v4188 = vpop.f32.mrf.mxu0
        %v4189 = vadd.f32 %v3996, %v4188
        %v4190 = vpop.f32.mrf.mxu0
        %v4191 = vadd.f32 %v3998, %v4190
        %4192 = vmatprep.mubr.bf16.mxu0 0
        %4193 = vmatmul.mubr.bf16.gmra.mxu0 %v3521
        %v4194 = vpop.f32.mrf.mxu0
        %v4195 = vadd.f32 %v4002, %v4194
        %v4196 = vpop.f32.mrf.mxu0
        %v4197 = vadd.f32 %v4004, %v4196
        %v4198 = vpop.f32.mrf.mxu0
        %v4199 = vadd.f32 %v4006, %v4198
        %v4200 = vpop.f32.mrf.mxu0
        %v4201 = vadd.f32 %v4008, %v4200
        %4202 = vmatprep.mubr.bf16.mxu0 0
        %4203 = vmatmul.mubr.bf16.gmra.mxu0 %v3522
        %v4204 = vpop.f32.mrf.mxu0
        %v4205 = vadd.f32 %v4012, %v4204
        %v4206 = vpop.f32.mrf.mxu0
        %v4207 = vadd.f32 %v4014, %v4206
        %v4208 = vpop.f32.mrf.mxu0
        %v4209 = vadd.f32 %v4016, %v4208
        %v4210 = vpop.f32.mrf.mxu0
        %v4211 = vadd.f32 %v4018, %v4210
        %4212 = vdwg.mxu0
        %v4213 = vld [vmem:[#allocation3] sm:$0xff]
        %v4214 = vld [vmem:[#allocation3 + $0x8] sm:$0xff]
        %v4215 = vld [vmem:[#allocation3 + $0x10] sm:$0xff]
        %v4216 = vld [vmem:[#allocation3 + $0x18] sm:$0xff]
        %v4217 = vld [vmem:[#allocation3 + $0x20] sm:$0xff]
        %v4218 = vld [vmem:[#allocation3 + $0x28] sm:$0xff]
        %v4219 = vld [vmem:[#allocation3 + $0x30] sm:$0xff]
        %v4220 = vld [vmem:[#allocation3 + $0x38] sm:$0xff]
        %v4221 = vld [vmem:[#allocation3 + $0x40] sm:$0xff]
        %v4222 = vld [vmem:[#allocation3 + $0x48] sm:$0xff]
        %v4223 = vld [vmem:[#allocation3 + $0x50] sm:$0xff]
        %v4224 = vld [vmem:[#allocation3 + $0x58] sm:$0xff]
        %v4225 = vld [vmem:[#allocation3 + $0x60] sm:$0xff]
        %v4226 = vld [vmem:[#allocation3 + $0x68] sm:$0xff]
        %v4227 = vld [vmem:[#allocation3 + $0x70] sm:$0xff]
        %v4228 = vld [vmem:[#allocation3 + $0x78] sm:$0xff]
        %v4229 = vld [vmem:[#allocation3 + $0x80] sm:$0xff]
        %v4230 = vld [vmem:[#allocation3 + $0x88] sm:$0xff]
        %v4231 = vld [vmem:[#allocation3 + $0x90] sm:$0xff]
        %v4232 = vld [vmem:[#allocation3 + $0x98] sm:$0xff]
        %v4233 = vld [vmem:[#allocation3 + $0xa0] sm:$0xff]
        %v4234 = vld [vmem:[#allocation3 + $0xa8] sm:$0xff]
        %v4235 = vld [vmem:[#allocation3 + $0xb0] sm:$0xff]
        %v4236 = vld [vmem:[#allocation3 + $0xb8] sm:$0xff]
        %v4237 = vld [vmem:[#allocation3 + $0xc0] sm:$0xff]
        %v4238 = vld [vmem:[#allocation3 + $0xc8] sm:$0xff]
        %v4239 = vld [vmem:[#allocation3 + $0xd0] sm:$0xff]
        %v4240 = vld [vmem:[#allocation3 + $0xd8] sm:$0xff]
        %v4241 = vld [vmem:[#allocation3 + $0xe0] sm:$0xff]
        %v4242 = vld [vmem:[#allocation3 + $0xe8] sm:$0xff]
        %v4243 = vld [vmem:[#allocation3 + $0xf0] sm:$0xff]
        %v4244 = vld [vmem:[#allocation3 + $0xf8] sm:$0xff]
        %v4245 = vld [vmem:[#allocation3 + $0x100] sm:$0xff]
        %v4246 = vld [vmem:[#allocation3 + $0x108] sm:$0xff]
        %v4247 = vld [vmem:[#allocation3 + $0x110] sm:$0xff]
        %v4248 = vld [vmem:[#allocation3 + $0x118] sm:$0xff]
        %v4249 = vld [vmem:[#allocation3 + $0x120] sm:$0xff]
        %v4250 = vld [vmem:[#allocation3 + $0x128] sm:$0xff]
        %v4251 = vld [vmem:[#allocation3 + $0x130] sm:$0xff]
        %v4252 = vld [vmem:[#allocation3 + $0x138] sm:$0xff]
        %v4253 = vld [vmem:[#allocation3 + $0x140] sm:$0xff]
        %v4254 = vld [vmem:[#allocation3 + $0x148] sm:$0xff]
        %v4255 = vld [vmem:[#allocation3 + $0x150] sm:$0xff]
        %v4256 = vld [vmem:[#allocation3 + $0x158] sm:$0xff]
        %v4257 = vld [vmem:[#allocation3 + $0x160] sm:$0xff]
        %v4258 = vld [vmem:[#allocation3 + $0x168] sm:$0xff]
        %v4259 = vld [vmem:[#allocation3 + $0x170] sm:$0xff]
        %v4260 = vld [vmem:[#allocation3 + $0x178] sm:$0xff]
        %v4261 = vld [vmem:[#allocation3 + $0x180] sm:$0xff]
        %v4262 = vld [vmem:[#allocation3 + $0x188] sm:$0xff]
        %v4263 = vld [vmem:[#allocation3 + $0x190] sm:$0xff]
        %v4264 = vld [vmem:[#allocation3 + $0x198] sm:$0xff]
        %v4265 = vld [vmem:[#allocation3 + $0x1a0] sm:$0xff]
        %v4266 = vld [vmem:[#allocation3 + $0x1a8] sm:$0xff]
        %v4267 = vld [vmem:[#allocation3 + $0x1b0] sm:$0xff]
        %v4268 = vld [vmem:[#allocation3 + $0x1b8] sm:$0xff]
        %v4269 = vld [vmem:[#allocation3 + $0x1c0] sm:$0xff]
        %v4270 = vld [vmem:[#allocation3 + $0x1c8] sm:$0xff]
        %v4271 = vld [vmem:[#allocation3 + $0x1d0] sm:$0xff]
        %v4272 = vld [vmem:[#allocation3 + $0x1d8] sm:$0xff]
        %v4273 = vld [vmem:[#allocation3 + $0x1e0] sm:$0xff]
        %v4274 = vld [vmem:[#allocation3 + $0x1e8] sm:$0xff]
        %v4275 = vld [vmem:[#allocation3 + $0x1f0] sm:$0xff]
        %v4276 = vld [vmem:[#allocation3 + $0x1f8] sm:$0xff]
        %v4277 = vadd.f32 %v4213, %v4055
        %v4278 = vadd.f32 %v4214, %v4057
        %v4279 = vadd.f32 %v4215, %v4059
        %v4280 = vadd.f32 %v4216, %v4061
        %v4281 = vadd.f32 %v4217, %v4065
        %v4282 = vadd.f32 %v4218, %v4067
        %v4283 = vadd.f32 %v4219, %v4069
        %v4284 = vadd.f32 %v4220, %v4071
        %v4285 = vadd.f32 %v4221, %v4075
        %v4286 = vadd.f32 %v4222, %v4077
        %v4287 = vadd.f32 %v4223, %v4079
        %v4288 = vadd.f32 %v4224, %v4081
        %v4289 = vadd.f32 %v4225, %v4085
        %v4290 = vadd.f32 %v4226, %v4087
        %v4291 = vadd.f32 %v4227, %v4089
        %v4292 = vadd.f32 %v4228, %v4091
        %v4293 = vadd.f32 %v4229, %v4095
        %v4294 = vadd.f32 %v4230, %v4097
        %v4295 = vadd.f32 %v4231, %v4099
        %v4296 = vadd.f32 %v4232, %v4101
        %v4297 = vadd.f32 %v4233, %v4105
        %v4298 = vadd.f32 %v4234, %v4107
        %v4299 = vadd.f32 %v4235, %v4109
        %v4300 = vadd.f32 %v4236, %v4111
        %v4301 = vadd.f32 %v4237, %v4115
        %v4302 = vadd.f32 %v4238, %v4117
        %v4303 = vadd.f32 %v4239, %v4119
        %v4304 = vadd.f32 %v4240, %v4121
        %v4305 = vadd.f32 %v4241, %v4125
        %v4306 = vadd.f32 %v4242, %v4127
        %v4307 = vadd.f32 %v4243, %v4129
        %v4308 = vadd.f32 %v4244, %v4131
        %v4309 = vadd.f32 %v4245, %v4135
        %v4310 = vadd.f32 %v4246, %v4137
        %v4311 = vadd.f32 %v4247, %v4139
        %v4312 = vadd.f32 %v4248, %v4141
        %v4313 = vadd.f32 %v4249, %v4145
        %v4314 = vadd.f32 %v4250, %v4147
        %v4315 = vadd.f32 %v4251, %v4149
        %v4316 = vadd.f32 %v4252, %v4151
        %v4317 = vadd.f32 %v4253, %v4155
        %v4318 = vadd.f32 %v4254, %v4157
        %v4319 = vadd.f32 %v4255, %v4159
        %v4320 = vadd.f32 %v4256, %v4161
        %v4321 = vadd.f32 %v4257, %v4165
        %v4322 = vadd.f32 %v4258, %v4167
        %v4323 = vadd.f32 %v4259, %v4169
        %v4324 = vadd.f32 %v4260, %v4171
        %v4325 = vadd.f32 %v4261, %v4175
        %v4326 = vadd.f32 %v4262, %v4177
        %v4327 = vadd.f32 %v4263, %v4179
        %v4328 = vadd.f32 %v4264, %v4181
        %v4329 = vadd.f32 %v4265, %v4185
        %v4330 = vadd.f32 %v4266, %v4187
        %v4331 = vadd.f32 %v4267, %v4189
        %v4332 = vadd.f32 %v4268, %v4191
        %v4333 = vadd.f32 %v4269, %v4195
        %v4334 = vadd.f32 %v4270, %v4197
        %v4335 = vadd.f32 %v4271, %v4199
        %v4336 = vadd.f32 %v4272, %v4201
        %v4337 = vadd.f32 %v4273, %v4205
        %v4338 = vadd.f32 %v4274, %v4207
        %v4339 = vadd.f32 %v4275, %v4209
        %v4340 = vadd.f32 %v4276, %v4211
        %4341 = vst [vmem:[#allocation3] sm:$0xff] %v4277
        %4342 = vst [vmem:[#allocation3 + $0x8] sm:$0xff] %v4278
        %4343 = vst [vmem:[#allocation3 + $0x10] sm:$0xff] %v4279
        %4344 = vst [vmem:[#allocation3 + $0x18] sm:$0xff] %v4280
        %4345 = vst [vmem:[#allocation3 + $0x20] sm:$0xff] %v4281
        %4346 = vst [vmem:[#allocation3 + $0x28] sm:$0xff] %v4282
        %4347 = vst [vmem:[#allocation3 + $0x30] sm:$0xff] %v4283
        %4348 = vst [vmem:[#allocation3 + $0x38] sm:$0xff] %v4284
        %4349 = vst [vmem:[#allocation3 + $0x40] sm:$0xff] %v4285
        %4350 = vst [vmem:[#allocation3 + $0x48] sm:$0xff] %v4286
        %4351 = vst [vmem:[#allocation3 + $0x50] sm:$0xff] %v4287
        %4352 = vst [vmem:[#allocation3 + $0x58] sm:$0xff] %v4288
        %4353 = vst [vmem:[#allocation3 + $0x60] sm:$0xff] %v4289
        %4354 = vst [vmem:[#allocation3 + $0x68] sm:$0xff] %v4290
        %4355 = vst [vmem:[#allocation3 + $0x70] sm:$0xff] %v4291
        %4356 = vst [vmem:[#allocation3 + $0x78] sm:$0xff] %v4292
        %4357 = vst [vmem:[#allocation3 + $0x80] sm:$0xff] %v4293
        %4358 = vst [vmem:[#allocation3 + $0x88] sm:$0xff] %v4294
        %4359 = vst [vmem:[#allocation3 + $0x90] sm:$0xff] %v4295
        %4360 = vst [vmem:[#allocation3 + $0x98] sm:$0xff] %v4296
        %4361 = vst [vmem:[#allocation3 + $0xa0] sm:$0xff] %v4297
        %4362 = vst [vmem:[#allocation3 + $0xa8] sm:$0xff] %v4298
        %4363 = vst [vmem:[#allocation3 + $0xb0] sm:$0xff] %v4299
        %4364 = vst [vmem:[#allocation3 + $0xb8] sm:$0xff] %v4300
        %4365 = vst [vmem:[#allocation3 + $0xc0] sm:$0xff] %v4301
        %4366 = vst [vmem:[#allocation3 + $0xc8] sm:$0xff] %v4302
        %4367 = vst [vmem:[#allocation3 + $0xd0] sm:$0xff] %v4303
        %4368 = vst [vmem:[#allocation3 + $0xd8] sm:$0xff] %v4304
        %4369 = vst [vmem:[#allocation3 + $0xe0] sm:$0xff] %v4305
        %4370 = vst [vmem:[#allocation3 + $0xe8] sm:$0xff] %v4306
        %4371 = vst [vmem:[#allocation3 + $0xf0] sm:$0xff] %v4307
        %4372 = vst [vmem:[#allocation3 + $0xf8] sm:$0xff] %v4308
        %4373 = vst [vmem:[#allocation3 + $0x100] sm:$0xff] %v4309
        %4374 = vst [vmem:[#allocation3 + $0x108] sm:$0xff] %v4310
        %4375 = vst [vmem:[#allocation3 + $0x110] sm:$0xff] %v4311
        %4376 = vst [vmem:[#allocation3 + $0x118] sm:$0xff] %v4312
        %4377 = vst [vmem:[#allocation3 + $0x120] sm:$0xff] %v4313
        %4378 = vst [vmem:[#allocation3 + $0x128] sm:$0xff] %v4314
        %4379 = vst [vmem:[#allocation3 + $0x130] sm:$0xff] %v4315
        %4380 = vst [vmem:[#allocation3 + $0x138] sm:$0xff] %v4316
        %4381 = vst [vmem:[#allocation3 + $0x140] sm:$0xff] %v4317
        %4382 = vst [vmem:[#allocation3 + $0x148] sm:$0xff] %v4318
        %4383 = vst [vmem:[#allocation3 + $0x150] sm:$0xff] %v4319
        %4384 = vst [vmem:[#allocation3 + $0x158] sm:$0xff] %v4320
        %4385 = vst [vmem:[#allocation3 + $0x160] sm:$0xff] %v4321
        %4386 = vst [vmem:[#allocation3 + $0x168] sm:$0xff] %v4322
        %4387 = vst [vmem:[#allocation3 + $0x170] sm:$0xff] %v4323
        %4388 = vst [vmem:[#allocation3 + $0x178] sm:$0xff] %v4324
        %4389 = vst [vmem:[#allocation3 + $0x180] sm:$0xff] %v4325
        %4390 = vst [vmem:[#allocation3 + $0x188] sm:$0xff] %v4326
        %4391 = vst [vmem:[#allocation3 + $0x190] sm:$0xff] %v4327
        %4392 = vst [vmem:[#allocation3 + $0x198] sm:$0xff] %v4328
        %4393 = vst [vmem:[#allocation3 + $0x1a0] sm:$0xff] %v4329
        %4394 = vst [vmem:[#allocation3 + $0x1a8] sm:$0xff] %v4330
        %4395 = vst [vmem:[#allocation3 + $0x1b0] sm:$0xff] %v4331
        %4396 = vst [vmem:[#allocation3 + $0x1b8] sm:$0xff] %v4332
        %4397 = vst [vmem:[#allocation3 + $0x1c0] sm:$0xff] %v4333
        %4398 = vst [vmem:[#allocation3 + $0x1c8] sm:$0xff] %v4334
        %4399 = vst [vmem:[#allocation3 + $0x1d0] sm:$0xff] %v4335
        %4400 = vst [vmem:[#allocation3 + $0x1d8] sm:$0xff] %v4336
        %4401 = vst [vmem:[#allocation3 + $0x1e0] sm:$0xff] %v4337
        %4402 = vst [vmem:[#allocation3 + $0x1e8] sm:$0xff] %v4338
        %4403 = vst [vmem:[#allocation3 + $0x1f0] sm:$0xff] %v4339
        %4404 = vst [vmem:[#allocation3 + $0x1f8] sm:$0xff] %v4340
        %v4405 = vld [vmem:[#allocation2 + $0x8] sm:$0xf]
        %v4406 = vld [vmem:[#allocation2 + $0xc] sm:$0xf]
        %v4407 = vld [vmem:[#allocation2 + $0x10] sm:$0x1]
        %v4408 = vld [vmem:[#allocation2 + $0x1c] sm:$0xf]
        %v4409 = vld [vmem:[#allocation2 + $0x20] sm:$0xf]
        %v4410 = vld [vmem:[#allocation2 + $0x24] sm:$0x1]
        %v4411 = vld [vmem:[#allocation2 + $0x30] sm:$0xf]
        %v4412 = vld [vmem:[#allocation2 + $0x34] sm:$0xf]
        %v4413 = vld [vmem:[#allocation2 + $0x38] sm:$0x1]
        %v4414 = vld [vmem:[#allocation2 + $0x44] sm:$0xf]
        %v4415 = vld [vmem:[#allocation2 + $0x48] sm:$0xf]
        %v4416 = vld [vmem:[#allocation2 + $0x4c] sm:$0x1]
        %v4417 = vld [vmem:[#allocation2 + $0x58] sm:$0xf]
        %v4418 = vld [vmem:[#allocation2 + $0x5c] sm:$0xf]
        %v4419 = vld [vmem:[#allocation2 + $0x60] sm:$0x1]
        %v4420 = vld [vmem:[#allocation2 + $0x6c] sm:$0xf]
        %v4421 = vld [vmem:[#allocation2 + $0x70] sm:$0xf]
        %v4422 = vld [vmem:[#allocation2 + $0x74] sm:$0x1]
        %v4423 = vld [vmem:[#allocation2 + $0x80] sm:$0xf]
        %v4424 = vld [vmem:[#allocation2 + $0x84] sm:$0xf]
        %v4425 = vld [vmem:[#allocation2 + $0x88] sm:$0x1]
        %v4426 = vld [vmem:[#allocation2 + $0x94] sm:$0xf]
        %v4427 = vld [vmem:[#allocation2 + $0x98] sm:$0xf]
        %v4428 = vld [vmem:[#allocation2 + $0x9c] sm:$0x1]
        %v4429 = vld [vmem:[#allocation2 + $0xa8] sm:$0xf]
        %v4430 = vld [vmem:[#allocation2 + $0xac] sm:$0xf]
        %v4431 = vld [vmem:[#allocation2 + $0xb0] sm:$0x1]
        %v4432 = vld [vmem:[#allocation2 + $0xbc] sm:$0xf]
        %v4433 = vld [vmem:[#allocation2 + $0xc0] sm:$0xf]
        %v4434 = vld [vmem:[#allocation2 + $0xc4] sm:$0x1]
        %v4435 = vld [vmem:[#allocation2 + $0xd0] sm:$0xf]
        %v4436 = vld [vmem:[#allocation2 + $0xd4] sm:$0xf]
        %v4437 = vld [vmem:[#allocation2 + $0xd8] sm:$0x1]
        %v4438 = vld [vmem:[#allocation2 + $0xe4] sm:$0xf]
        %v4439 = vld [vmem:[#allocation2 + $0xe8] sm:$0xf]
        %v4440 = vld [vmem:[#allocation2 + $0xec] sm:$0x1]
        %v4441 = vld [vmem:[#allocation2 + $0xf8] sm:$0xf]
        %v4442 = vld [vmem:[#allocation2 + $0xfc] sm:$0xf]
        %v4443 = vld [vmem:[#allocation2 + $0x100] sm:$0x1]
        %v4444 = vld [vmem:[#allocation2 + $0x10c] sm:$0xf]
        %v4445 = vld [vmem:[#allocation2 + $0x110] sm:$0xf]
        %v4446 = vld [vmem:[#allocation2 + $0x114] sm:$0x1]
        %v4447 = vld [vmem:[#allocation2 + $0x120] sm:$0xf]
        %v4448 = vld [vmem:[#allocation2 + $0x124] sm:$0xf]
        %v4449 = vld [vmem:[#allocation2 + $0x128] sm:$0x1]
        %v4450 = vld [vmem:[#allocation2 + $0x134] sm:$0xf]
        %v4451 = vld [vmem:[#allocation2 + $0x138] sm:$0xf]
        %v4452 = vld [vmem:[#allocation2 + $0x13c] sm:$0x1]
        %v4453 = vld [vmem:[%s869 + $0x8] sm:$0xf]
        %v4454 = vld [vmem:[%s869 + $0xc] sm:$0xf]
        %v4455 = vld [vmem:[%s869 + $0x10] sm:$0x1]
        %v4456 = vld [vmem:[%s869 + $0x1c] sm:$0xf]
        %v4457 = vld [vmem:[%s869 + $0x20] sm:$0xf]
        %v4458 = vld [vmem:[%s869 + $0x24] sm:$0x1]
        %v4459 = vld [vmem:[%s869 + $0x30] sm:$0xf]
        %v4460 = vld [vmem:[%s869 + $0x34] sm:$0xf]
        %v4461 = vld [vmem:[%s869 + $0x38] sm:$0x1]
        %v4462 = vld [vmem:[%s869 + $0x44] sm:$0xf]
        %v4463 = vld [vmem:[%s869 + $0x48] sm:$0xf]
        %v4464 = vld [vmem:[%s869 + $0x4c] sm:$0x1]
        %v4465 = vld [vmem:[%s869 + $0x58] sm:$0xf]
        %v4466 = vld [vmem:[%s869 + $0x5c] sm:$0xf]
        %v4467 = vld [vmem:[%s869 + $0x60] sm:$0x1]
        %v4468 = vld [vmem:[%s869 + $0x6c] sm:$0xf]
        %v4469 = vld [vmem:[%s869 + $0x70] sm:$0xf]
        %v4470 = vld [vmem:[%s869 + $0x74] sm:$0x1]
        %v4471 = vld [vmem:[%s869 + $0x80] sm:$0xf]
        %v4472 = vld [vmem:[%s869 + $0x84] sm:$0xf]
        %v4473 = vld [vmem:[%s869 + $0x88] sm:$0x1]
        %v4474 = vld [vmem:[%s869 + $0x94] sm:$0xf]
        %v4475 = vld [vmem:[%s869 + $0x98] sm:$0xf]
        %v4476 = vld [vmem:[%s869 + $0x9c] sm:$0x1]
        %v4477 = vld [vmem:[%s869 + $0xa8] sm:$0xf]
        %v4478 = vld [vmem:[%s869 + $0xac] sm:$0xf]
        %v4479 = vld [vmem:[%s869 + $0xb0] sm:$0x1]
        %v4480 = vld [vmem:[%s869 + $0xbc] sm:$0xf]
        %v4481 = vld [vmem:[%s869 + $0xc0] sm:$0xf]
        %v4482 = vld [vmem:[%s869 + $0xc4] sm:$0x1]
        %v4483 = vld [vmem:[%s869 + $0xd0] sm:$0xf]
        %v4484 = vld [vmem:[%s869 + $0xd4] sm:$0xf]
        %v4485 = vld [vmem:[%s869 + $0xd8] sm:$0x1]
        %v4486 = vld [vmem:[%s869 + $0xe4] sm:$0xf]
        %v4487 = vld [vmem:[%s869 + $0xe8] sm:$0xf]
        %v4488 = vld [vmem:[%s869 + $0xec] sm:$0x1]
        %v4489 = vld [vmem:[%s869 + $0xf8] sm:$0xf]
        %v4490 = vld [vmem:[%s869 + $0xfc] sm:$0xf]
        %v4491 = vld [vmem:[%s869 + $0x100] sm:$0x1]
        %v4492 = vld [vmem:[%s869 + $0x10c] sm:$0xf]
        %v4493 = vld [vmem:[%s869 + $0x110] sm:$0xf]
        %v4494 = vld [vmem:[%s869 + $0x114] sm:$0x1]
        %v4495 = vld [vmem:[%s869 + $0x120] sm:$0xf]
        %v4496 = vld [vmem:[%s869 + $0x124] sm:$0xf]
        %v4497 = vld [vmem:[%s869 + $0x128] sm:$0x1]
        %v4498 = vld [vmem:[%s869 + $0x134] sm:$0xf]
        %v4499 = vld [vmem:[%s869 + $0x138] sm:$0xf]
        %v4500 = vld [vmem:[%s869 + $0x13c] sm:$0x1]
        %v4501 = vld [vmem:[%s1119 + $0x8] sm:$0xf]
        %v4502 = vld [vmem:[%s1119 + $0xc] sm:$0xf]
        %v4503 = vld [vmem:[%s1119 + $0x10] sm:$0x1]
        %v4504 = vld [vmem:[%s1119 + $0x1c] sm:$0xf]
        %v4505 = vld [vmem:[%s1119 + $0x20] sm:$0xf]
        %v4506 = vld [vmem:[%s1119 + $0x24] sm:$0x1]
        %v4507 = vld [vmem:[%s1119 + $0x30] sm:$0xf]
        %v4508 = vld [vmem:[%s1119 + $0x34] sm:$0xf]
        %v4509 = vld [vmem:[%s1119 + $0x38] sm:$0x1]
        %v4510 = vld [vmem:[%s1119 + $0x44] sm:$0xf]
        %v4511 = vld [vmem:[%s1119 + $0x48] sm:$0xf]
        %v4512 = vld [vmem:[%s1119 + $0x4c] sm:$0x1]
        %v4513 = vld [vmem:[%s1119 + $0x58] sm:$0xf]
        %v4514 = vld [vmem:[%s1119 + $0x5c] sm:$0xf]
        %v4515 = vld [vmem:[%s1119 + $0x60] sm:$0x1]
        %v4516 = vld [vmem:[%s1119 + $0x6c] sm:$0xf]
        %v4517 = vld [vmem:[%s1119 + $0x70] sm:$0xf]
        %v4518 = vld [vmem:[%s1119 + $0x74] sm:$0x1]
        %v4519 = vld [vmem:[%s1119 + $0x80] sm:$0xf]
        %v4520 = vld [vmem:[%s1119 + $0x84] sm:$0xf]
        %v4521 = vld [vmem:[%s1119 + $0x88] sm:$0x1]
        %v4522 = vld [vmem:[%s1119 + $0x94] sm:$0xf]
        %v4523 = vld [vmem:[%s1119 + $0x98] sm:$0xf]
        %v4524 = vld [vmem:[%s1119 + $0x9c] sm:$0x1]
        %v4525 = vld [vmem:[%s1119 + $0xa8] sm:$0xf]
        %v4526 = vld [vmem:[%s1119 + $0xac] sm:$0xf]
        %v4527 = vld [vmem:[%s1119 + $0xb0] sm:$0x1]
        %v4528 = vld [vmem:[%s1119 + $0xbc] sm:$0xf]
        %v4529 = vld [vmem:[%s1119 + $0xc0] sm:$0xf]
        %v4530 = vld [vmem:[%s1119 + $0xc4] sm:$0x1]
        %v4531 = vld [vmem:[%s1119 + $0xd0] sm:$0xf]
        %v4532 = vld [vmem:[%s1119 + $0xd4] sm:$0xf]
        %v4533 = vld [vmem:[%s1119 + $0xd8] sm:$0x1]
        %v4534 = vld [vmem:[%s1119 + $0xe4] sm:$0xf]
        %v4535 = vld [vmem:[%s1119 + $0xe8] sm:$0xf]
        %v4536 = vld [vmem:[%s1119 + $0xec] sm:$0x1]
        %v4537 = vld [vmem:[%s1119 + $0xf8] sm:$0xf]
        %v4538 = vld [vmem:[%s1119 + $0xfc] sm:$0xf]
        %v4539 = vld [vmem:[%s1119 + $0x100] sm:$0x1]
        %v4540 = vld [vmem:[%s1119 + $0x10c] sm:$0xf]
        %v4541 = vld [vmem:[%s1119 + $0x110] sm:$0xf]
        %v4542 = vld [vmem:[%s1119 + $0x114] sm:$0x1]
        %v4543 = vld [vmem:[%s1119 + $0x120] sm:$0xf]
        %v4544 = vld [vmem:[%s1119 + $0x124] sm:$0xf]
        %v4545 = vld [vmem:[%s1119 + $0x128] sm:$0x1]
        %v4546 = vld [vmem:[%s1119 + $0x134] sm:$0xf]
        %v4547 = vld [vmem:[%s1119 + $0x138] sm:$0xf]
        %v4548 = vld [vmem:[%s1119 + $0x13c] sm:$0x1]
        %v4597 = vunpack.c.l.b16 %v4405
        %v4598 = vunpack.c.l.b16 %v4406
        %v4599 = vunpack.c.l.b16 %v4407
        %v4600 = vunpack.c.l.b16 %v4408
        %v4601 = vunpack.c.l.b16 %v4409
        %v4602 = vunpack.c.l.b16 %v4410
        %v4603 = vunpack.c.l.b16 %v4411
        %v4604 = vunpack.c.l.b16 %v4412
        %v4605 = vunpack.c.l.b16 %v4413
        %v4606 = vunpack.c.l.b16 %v4414
        %v4607 = vunpack.c.l.b16 %v4415
        %v4608 = vunpack.c.l.b16 %v4416
        %v4609 = vunpack.c.l.b16 %v4417
        %v4610 = vunpack.c.l.b16 %v4418
        %v4611 = vunpack.c.l.b16 %v4419
        %v4612 = vunpack.c.l.b16 %v4420
        %v4613 = vunpack.c.l.b16 %v4421
        %v4614 = vunpack.c.l.b16 %v4422
        %v4615 = vunpack.c.l.b16 %v4423
        %v4616 = vunpack.c.l.b16 %v4424
        %v4617 = vunpack.c.l.b16 %v4425
        %v4618 = vunpack.c.l.b16 %v4426
        %v4619 = vunpack.c.l.b16 %v4427
        %v4620 = vunpack.c.l.b16 %v4428
        %v4621 = vunpack.c.l.b16 %v4429
        %v4622 = vunpack.c.l.b16 %v4430
        %v4623 = vunpack.c.l.b16 %v4431
        %v4624 = vunpack.c.l.b16 %v4432
        %v4625 = vunpack.c.l.b16 %v4433
        %v4626 = vunpack.c.l.b16 %v4434
        %v4627 = vunpack.c.l.b16 %v4435
        %v4628 = vunpack.c.l.b16 %v4436
        %v4629 = vunpack.c.l.b16 %v4437
        %v4630 = vunpack.c.l.b16 %v4438
        %v4631 = vunpack.c.l.b16 %v4439
        %v4632 = vunpack.c.l.b16 %v4440
        %v4633 = vunpack.c.l.b16 %v4441
        %v4634 = vunpack.c.l.b16 %v4442
        %v4635 = vunpack.c.l.b16 %v4443
        %v4636 = vunpack.c.l.b16 %v4444
        %v4637 = vunpack.c.l.b16 %v4445
        %v4638 = vunpack.c.l.b16 %v4446
        %v4639 = vunpack.c.l.b16 %v4447
        %v4640 = vunpack.c.l.b16 %v4448
        %v4641 = vunpack.c.l.b16 %v4449
        %v4642 = vunpack.c.l.b16 %v4450
        %v4643 = vunpack.c.l.b16 %v4451
        %v4644 = vunpack.c.l.b16 %v4452
        %v4645 = vpack.c.b16 %v4598, %v4597
        %v4646 = vpack.c.b16 %v4599, %v4599
        %v4647 = vpack.c.b16 %v4601, %v4600
        %v4648 = vpack.c.b16 %v4602, %v4602
        %v4649 = vpack.c.b16 %v4604, %v4603
        %v4650 = vpack.c.b16 %v4605, %v4605
        %v4651 = vpack.c.b16 %v4607, %v4606
        %v4652 = vpack.c.b16 %v4608, %v4608
        %v4653 = vpack.c.b16 %v4610, %v4609
        %v4654 = vpack.c.b16 %v4611, %v4611
        %v4655 = vpack.c.b16 %v4613, %v4612
        %v4656 = vpack.c.b16 %v4614, %v4614
        %v4657 = vpack.c.b16 %v4616, %v4615
        %v4658 = vpack.c.b16 %v4617, %v4617
        %v4659 = vpack.c.b16 %v4619, %v4618
        %v4660 = vpack.c.b16 %v4620, %v4620
        %v4661 = vpack.c.b16 %v4622, %v4621
        %v4662 = vpack.c.b16 %v4623, %v4623
        %v4663 = vpack.c.b16 %v4625, %v4624
        %v4664 = vpack.c.b16 %v4626, %v4626
        %v4665 = vpack.c.b16 %v4628, %v4627
        %v4666 = vpack.c.b16 %v4629, %v4629
        %v4667 = vpack.c.b16 %v4631, %v4630
        %v4668 = vpack.c.b16 %v4632, %v4632
        %v4669 = vpack.c.b16 %v4634, %v4633
        %v4670 = vpack.c.b16 %v4635, %v4635
        %v4671 = vpack.c.b16 %v4637, %v4636
        %v4672 = vpack.c.b16 %v4638, %v4638
        %v4673 = vpack.c.b16 %v4640, %v4639
        %v4674 = vpack.c.b16 %v4641, %v4641
        %v4675 = vpack.c.b16 %v4643, %v4642
        %v4676 = vpack.c.b16 %v4644, %v4644
        %v4725 = vunpack.c.l.b16 %v4453
        %v4726 = vunpack.c.l.b16 %v4454
        %v4727 = vunpack.c.l.b16 %v4455
        %v4728 = vunpack.c.l.b16 %v4456
        %v4729 = vunpack.c.l.b16 %v4457
        %v4730 = vunpack.c.l.b16 %v4458
        %v4731 = vunpack.c.l.b16 %v4459
        %v4732 = vunpack.c.l.b16 %v4460
        %v4733 = vunpack.c.l.b16 %v4461
        %v4734 = vunpack.c.l.b16 %v4462
        %v4735 = vunpack.c.l.b16 %v4463
        %v4736 = vunpack.c.l.b16 %v4464
        %v4737 = vunpack.c.l.b16 %v4465
        %v4738 = vunpack.c.l.b16 %v4466
        %v4739 = vunpack.c.l.b16 %v4467
        %v4740 = vunpack.c.l.b16 %v4468
        %v4741 = vunpack.c.l.b16 %v4469
        %v4742 = vunpack.c.l.b16 %v4470
        %v4743 = vunpack.c.l.b16 %v4471
        %v4744 = vunpack.c.l.b16 %v4472
        %v4745 = vunpack.c.l.b16 %v4473
        %v4746 = vunpack.c.l.b16 %v4474
        %v4747 = vunpack.c.l.b16 %v4475
        %v4748 = vunpack.c.l.b16 %v4476
        %v4749 = vunpack.c.l.b16 %v4477
        %v4750 = vunpack.c.l.b16 %v4478
        %v4751 = vunpack.c.l.b16 %v4479
        %v4752 = vunpack.c.l.b16 %v4480
        %v4753 = vunpack.c.l.b16 %v4481
        %v4754 = vunpack.c.l.b16 %v4482
        %v4755 = vunpack.c.l.b16 %v4483
        %v4756 = vunpack.c.l.b16 %v4484
        %v4757 = vunpack.c.l.b16 %v4485
        %v4758 = vunpack.c.l.b16 %v4486
        %v4759 = vunpack.c.l.b16 %v4487
        %v4760 = vunpack.c.l.b16 %v4488
        %v4761 = vunpack.c.l.b16 %v4489
        %v4762 = vunpack.c.l.b16 %v4490
        %v4763 = vunpack.c.l.b16 %v4491
        %v4764 = vunpack.c.l.b16 %v4492
        %v4765 = vunpack.c.l.b16 %v4493
        %v4766 = vunpack.c.l.b16 %v4494
        %v4767 = vunpack.c.l.b16 %v4495
        %v4768 = vunpack.c.l.b16 %v4496
        %v4769 = vunpack.c.l.b16 %v4497
        %v4770 = vunpack.c.l.b16 %v4498
        %v4771 = vunpack.c.l.b16 %v4499
        %v4772 = vunpack.c.l.b16 %v4500
        %v4773 = vpack.c.b16 %v4726, %v4725
        %v4774 = vpack.c.b16 %v4727, %v4727
        %v4775 = vpack.c.b16 %v4729, %v4728
        %v4776 = vpack.c.b16 %v4730, %v4730
        %v4777 = vpack.c.b16 %v4732, %v4731
        %v4778 = vpack.c.b16 %v4733, %v4733
        %v4779 = vpack.c.b16 %v4735, %v4734
        %v4780 = vpack.c.b16 %v4736, %v4736
        %v4781 = vpack.c.b16 %v4738, %v4737
        %v4782 = vpack.c.b16 %v4739, %v4739
        %v4783 = vpack.c.b16 %v4741, %v4740
        %v4784 = vpack.c.b16 %v4742, %v4742
        %v4785 = vpack.c.b16 %v4744, %v4743
        %v4786 = vpack.c.b16 %v4745, %v4745
        %v4787 = vpack.c.b16 %v4747, %v4746
        %v4788 = vpack.c.b16 %v4748, %v4748
        %v4789 = vpack.c.b16 %v4750, %v4749
        %v4790 = vpack.c.b16 %v4751, %v4751
        %v4791 = vpack.c.b16 %v4753, %v4752
        %v4792 = vpack.c.b16 %v4754, %v4754
        %v4793 = vpack.c.b16 %v4756, %v4755
        %v4794 = vpack.c.b16 %v4757, %v4757
        %v4795 = vpack.c.b16 %v4759, %v4758
        %v4796 = vpack.c.b16 %v4760, %v4760
        %v4797 = vpack.c.b16 %v4762, %v4761
        %v4798 = vpack.c.b16 %v4763, %v4763
        %v4799 = vpack.c.b16 %v4765, %v4764
        %v4800 = vpack.c.b16 %v4766, %v4766
        %v4801 = vpack.c.b16 %v4768, %v4767
        %v4802 = vpack.c.b16 %v4769, %v4769
        %v4803 = vpack.c.b16 %v4771, %v4770
        %v4804 = vpack.c.b16 %v4772, %v4772
        %v4853 = vunpack.c.l.b16 %v4501
        %v4854 = vunpack.c.l.b16 %v4502
        %v4855 = vunpack.c.l.b16 %v4503
        %v4856 = vunpack.c.l.b16 %v4504
        %v4857 = vunpack.c.l.b16 %v4505
        %v4858 = vunpack.c.l.b16 %v4506
        %v4859 = vunpack.c.l.b16 %v4507
        %v4860 = vunpack.c.l.b16 %v4508
        %v4861 = vunpack.c.l.b16 %v4509
        %v4862 = vunpack.c.l.b16 %v4510
        %v4863 = vunpack.c.l.b16 %v4511
        %v4864 = vunpack.c.l.b16 %v4512
        %v4865 = vunpack.c.l.b16 %v4513
        %v4866 = vunpack.c.l.b16 %v4514
        %v4867 = vunpack.c.l.b16 %v4515
        %v4868 = vunpack.c.l.b16 %v4516
        %v4869 = vunpack.c.l.b16 %v4517
        %v4870 = vunpack.c.l.b16 %v4518
        %v4871 = vunpack.c.l.b16 %v4519
        %v4872 = vunpack.c.l.b16 %v4520
        %v4873 = vunpack.c.l.b16 %v4521
        %v4874 = vunpack.c.l.b16 %v4522
        %v4875 = vunpack.c.l.b16 %v4523
        %v4876 = vunpack.c.l.b16 %v4524
        %v4877 = vunpack.c.l.b16 %v4525
        %v4878 = vunpack.c.l.b16 %v4526
        %v4879 = vunpack.c.l.b16 %v4527
        %v4880 = vunpack.c.l.b16 %v4528
        %v4881 = vunpack.c.l.b16 %v4529
        %v4882 = vunpack.c.l.b16 %v4530
        %v4883 = vunpack.c.l.b16 %v4531
        %v4884 = vunpack.c.l.b16 %v4532
        %v4885 = vunpack.c.l.b16 %v4533
        %v4886 = vunpack.c.l.b16 %v4534
        %v4887 = vunpack.c.l.b16 %v4535
        %v4888 = vunpack.c.l.b16 %v4536
        %v4889 = vunpack.c.l.b16 %v4537
        %v4890 = vunpack.c.l.b16 %v4538
        %v4891 = vunpack.c.l.b16 %v4539
        %v4892 = vunpack.c.l.b16 %v4540
        %v4893 = vunpack.c.l.b16 %v4541
        %v4894 = vunpack.c.l.b16 %v4542
        %v4895 = vunpack.c.l.b16 %v4543
        %v4896 = vunpack.c.l.b16 %v4544
        %v4897 = vunpack.c.l.b16 %v4545
        %v4898 = vunpack.c.l.b16 %v4546
        %v4899 = vunpack.c.l.b16 %v4547
        %v4900 = vunpack.c.l.b16 %v4548
        %v4901 = vpack.c.b16 %v4854, %v4853
        %v4902 = vpack.c.b16 %v4855, %v4855
        %v4903 = vpack.c.b16 %v4857, %v4856
        %v4904 = vpack.c.b16 %v4858, %v4858
        %v4905 = vpack.c.b16 %v4860, %v4859
        %v4906 = vpack.c.b16 %v4861, %v4861
        %v4907 = vpack.c.b16 %v4863, %v4862
        %v4908 = vpack.c.b16 %v4864, %v4864
        %v4909 = vpack.c.b16 %v4866, %v4865
        %v4910 = vpack.c.b16 %v4867, %v4867
        %v4911 = vpack.c.b16 %v4869, %v4868
        %v4912 = vpack.c.b16 %v4870, %v4870
        %v4913 = vpack.c.b16 %v4872, %v4871
        %v4914 = vpack.c.b16 %v4873, %v4873
        %v4915 = vpack.c.b16 %v4875, %v4874
        %v4916 = vpack.c.b16 %v4876, %v4876
        %v4917 = vpack.c.b16 %v4878, %v4877
        %v4918 = vpack.c.b16 %v4879, %v4879
        %v4919 = vpack.c.b16 %v4881, %v4880
        %v4920 = vpack.c.b16 %v4882, %v4882
        %v4921 = vpack.c.b16 %v4884, %v4883
        %v4922 = vpack.c.b16 %v4885, %v4885
        %v4923 = vpack.c.b16 %v4887, %v4886
        %v4924 = vpack.c.b16 %v4888, %v4888
        %v4925 = vpack.c.b16 %v4890, %v4889
        %v4926 = vpack.c.b16 %v4891, %v4891
        %v4927 = vpack.c.b16 %v4893, %v4892
        %v4928 = vpack.c.b16 %v4894, %v4894
        %v4929 = vpack.c.b16 %v4896, %v4895
        %v4930 = vpack.c.b16 %v4897, %v4897
        %v4931 = vpack.c.b16 %v4899, %v4898
        %v4932 = vpack.c.b16 %v4900, %v4900
        %vm4933 = vsmask.f32 7424
        %v4935 = vshrl.u32 %v4645, 16
        %v4937 = vshll.u32 %v4645, 16
        %v4939 = vrot.slane %v4937, 1
        %v4940 = vor.u32 %v4935, %v4939
        %v4942 = vshll.u32 %v4646, 16
        %v4944 = vrot.slane %v4942, 1
        %v4945 = vsel %vm4933, %v4940, %v4944
        %v4947 = vshrl.u32 %v4773, 16
        %v4949 = vshll.u32 %v4773, 16
        %v4951 = vrot.slane %v4949, 1
        %v4952 = vor.u32 %v4947, %v4951
        %v4954 = vshll.u32 %v4774, 16
        %v4956 = vrot.slane %v4954, 1
        %v4957 = vsel %vm4933, %v4952, %v4956
        %v4959 = vshrl.u32 %v4901, 16
        %v4961 = vshll.u32 %v4901, 16
        %v4963 = vrot.slane %v4961, 1
        %v4964 = vor.u32 %v4959, %v4963
        %v4966 = vshll.u32 %v4902, 16
        %v4968 = vrot.slane %v4966, 1
        %v4969 = vsel %vm4933, %v4964, %v4968
        %v4971 = vshrl.u32 %v4647, 16
        %v4973 = vshll.u32 %v4647, 16
        %v4975 = vrot.slane %v4973, 1
        %v4976 = vor.u32 %v4971, %v4975
        %v4978 = vshll.u32 %v4648, 16
        %v4980 = vrot.slane %v4978, 1
        %v4981 = vsel %vm4933, %v4976, %v4980
        %v4983 = vshrl.u32 %v4775, 16
        %v4985 = vshll.u32 %v4775, 16
        %v4987 = vrot.slane %v4985, 1
        %v4988 = vor.u32 %v4983, %v4987
        %v4990 = vshll.u32 %v4776, 16
        %v4992 = vrot.slane %v4990, 1
        %v4993 = vsel %vm4933, %v4988, %v4992
        %v4995 = vshrl.u32 %v4903, 16
        %v4997 = vshll.u32 %v4903, 16
        %v4999 = vrot.slane %v4997, 1
        %v5000 = vor.u32 %v4995, %v4999
        %v5002 = vshll.u32 %v4904, 16
        %v5004 = vrot.slane %v5002, 1
        %v5005 = vsel %vm4933, %v5000, %v5004
        %v5007 = vshrl.u32 %v4649, 16
        %v5009 = vshll.u32 %v4649, 16
        %v5011 = vrot.slane %v5009, 1
        %v5012 = vor.u32 %v5007, %v5011
        %v5014 = vshll.u32 %v4650, 16
        %v5016 = vrot.slane %v5014, 1
        %v5017 = vsel %vm4933, %v5012, %v5016
        %v5019 = vshrl.u32 %v4777, 16
        %v5021 = vshll.u32 %v4777, 16
        %v5023 = vrot.slane %v5021, 1
        %v5024 = vor.u32 %v5019, %v5023
        %v5026 = vshll.u32 %v4778, 16
        %v5028 = vrot.slane %v5026, 1
        %v5029 = vsel %vm4933, %v5024, %v5028
        %v5031 = vshrl.u32 %v4905, 16
        %v5033 = vshll.u32 %v4905, 16
        %v5035 = vrot.slane %v5033, 1
        %v5036 = vor.u32 %v5031, %v5035
        %v5038 = vshll.u32 %v4906, 16
        %v5040 = vrot.slane %v5038, 1
        %v5041 = vsel %vm4933, %v5036, %v5040
        %v5043 = vshrl.u32 %v4651, 16
        %v5045 = vshll.u32 %v4651, 16
        %v5047 = vrot.slane %v5045, 1
        %v5048 = vor.u32 %v5043, %v5047
        %v5050 = vshll.u32 %v4652, 16
        %v5052 = vrot.slane %v5050, 1
        %v5053 = vsel %vm4933, %v5048, %v5052
        %v5055 = vshrl.u32 %v4779, 16
        %v5057 = vshll.u32 %v4779, 16
        %v5059 = vrot.slane %v5057, 1
        %v5060 = vor.u32 %v5055, %v5059
        %v5062 = vshll.u32 %v4780, 16
        %v5064 = vrot.slane %v5062, 1
        %v5065 = vsel %vm4933, %v5060, %v5064
        %v5067 = vshrl.u32 %v4907, 16
        %v5069 = vshll.u32 %v4907, 16
        %v5071 = vrot.slane %v5069, 1
        %v5072 = vor.u32 %v5067, %v5071
        %v5074 = vshll.u32 %v4908, 16
        %v5076 = vrot.slane %v5074, 1
        %v5077 = vsel %vm4933, %v5072, %v5076
        %v5079 = vshrl.u32 %v4653, 16
        %v5081 = vshll.u32 %v4653, 16
        %v5083 = vrot.slane %v5081, 1
        %v5084 = vor.u32 %v5079, %v5083
        %v5086 = vshll.u32 %v4654, 16
        %v5088 = vrot.slane %v5086, 1
        %v5089 = vsel %vm4933, %v5084, %v5088
        %v5091 = vshrl.u32 %v4781, 16
        %v5093 = vshll.u32 %v4781, 16
        %v5095 = vrot.slane %v5093, 1
        %v5096 = vor.u32 %v5091, %v5095
        %v5098 = vshll.u32 %v4782, 16
        %v5100 = vrot.slane %v5098, 1
        %v5101 = vsel %vm4933, %v5096, %v5100
        %v5103 = vshrl.u32 %v4909, 16
        %v5105 = vshll.u32 %v4909, 16
        %v5107 = vrot.slane %v5105, 1
        %v5108 = vor.u32 %v5103, %v5107
        %v5110 = vshll.u32 %v4910, 16
        %v5112 = vrot.slane %v5110, 1
        %v5113 = vsel %vm4933, %v5108, %v5112
        %v5115 = vshrl.u32 %v4655, 16
        %v5117 = vshll.u32 %v4655, 16
        %v5119 = vrot.slane %v5117, 1
        %v5120 = vor.u32 %v5115, %v5119
        %v5122 = vshll.u32 %v4656, 16
        %v5124 = vrot.slane %v5122, 1
        %v5125 = vsel %vm4933, %v5120, %v5124
        %v5127 = vshrl.u32 %v4783, 16
        %v5129 = vshll.u32 %v4783, 16
        %v5131 = vrot.slane %v5129, 1
        %v5132 = vor.u32 %v5127, %v5131
        %v5134 = vshll.u32 %v4784, 16
        %v5136 = vrot.slane %v5134, 1
        %v5137 = vsel %vm4933, %v5132, %v5136
        %v5139 = vshrl.u32 %v4911, 16
        %v5141 = vshll.u32 %v4911, 16
        %v5143 = vrot.slane %v5141, 1
        %v5144 = vor.u32 %v5139, %v5143
        %v5146 = vshll.u32 %v4912, 16
        %v5148 = vrot.slane %v5146, 1
        %v5149 = vsel %vm4933, %v5144, %v5148
        %v5151 = vshrl.u32 %v4657, 16
        %v5153 = vshll.u32 %v4657, 16
        %v5155 = vrot.slane %v5153, 1
        %v5156 = vor.u32 %v5151, %v5155
        %v5158 = vshll.u32 %v4658, 16
        %v5160 = vrot.slane %v5158, 1
        %v5161 = vsel %vm4933, %v5156, %v5160
        %v5163 = vshrl.u32 %v4785, 16
        %v5165 = vshll.u32 %v4785, 16
        %v5167 = vrot.slane %v5165, 1
        %v5168 = vor.u32 %v5163, %v5167
        %v5170 = vshll.u32 %v4786, 16
        %v5172 = vrot.slane %v5170, 1
        %v5173 = vsel %vm4933, %v5168, %v5172
        %v5175 = vshrl.u32 %v4913, 16
        %v5177 = vshll.u32 %v4913, 16
        %v5179 = vrot.slane %v5177, 1
        %v5180 = vor.u32 %v5175, %v5179
        %v5182 = vshll.u32 %v4914, 16
        %v5184 = vrot.slane %v5182, 1
        %v5185 = vsel %vm4933, %v5180, %v5184
        %v5187 = vshrl.u32 %v4659, 16
        %v5189 = vshll.u32 %v4659, 16
        %v5191 = vrot.slane %v5189, 1
        %v5192 = vor.u32 %v5187, %v5191
        %v5194 = vshll.u32 %v4660, 16
        %v5196 = vrot.slane %v5194, 1
        %v5197 = vsel %vm4933, %v5192, %v5196
        %v5199 = vshrl.u32 %v4787, 16
        %v5201 = vshll.u32 %v4787, 16
        %v5203 = vrot.slane %v5201, 1
        %v5204 = vor.u32 %v5199, %v5203
        %v5206 = vshll.u32 %v4788, 16
        %v5208 = vrot.slane %v5206, 1
        %v5209 = vsel %vm4933, %v5204, %v5208
        %v5211 = vshrl.u32 %v4915, 16
        %v5213 = vshll.u32 %v4915, 16
        %v5215 = vrot.slane %v5213, 1
        %v5216 = vor.u32 %v5211, %v5215
        %v5218 = vshll.u32 %v4916, 16
        %v5220 = vrot.slane %v5218, 1
        %v5221 = vsel %vm4933, %v5216, %v5220
        %v5223 = vshrl.u32 %v4661, 16
        %v5225 = vshll.u32 %v4661, 16
        %v5227 = vrot.slane %v5225, 1
        %v5228 = vor.u32 %v5223, %v5227
        %v5230 = vshll.u32 %v4662, 16
        %v5232 = vrot.slane %v5230, 1
        %v5233 = vsel %vm4933, %v5228, %v5232
        %v5235 = vshrl.u32 %v4789, 16
        %v5237 = vshll.u32 %v4789, 16
        %v5239 = vrot.slane %v5237, 1
        %v5240 = vor.u32 %v5235, %v5239
        %v5242 = vshll.u32 %v4790, 16
        %v5244 = vrot.slane %v5242, 1
        %v5245 = vsel %vm4933, %v5240, %v5244
        %v5247 = vshrl.u32 %v4917, 16
        %v5249 = vshll.u32 %v4917, 16
        %v5251 = vrot.slane %v5249, 1
        %v5252 = vor.u32 %v5247, %v5251
        %v5254 = vshll.u32 %v4918, 16
        %v5256 = vrot.slane %v5254, 1
        %v5257 = vsel %vm4933, %v5252, %v5256
        %v5259 = vshrl.u32 %v4663, 16
        %v5261 = vshll.u32 %v4663, 16
        %v5263 = vrot.slane %v5261, 1
        %v5264 = vor.u32 %v5259, %v5263
        %v5266 = vshll.u32 %v4664, 16
        %v5268 = vrot.slane %v5266, 1
        %v5269 = vsel %vm4933, %v5264, %v5268
        %v5271 = vshrl.u32 %v4791, 16
        %v5273 = vshll.u32 %v4791, 16
        %v5275 = vrot.slane %v5273, 1
        %v5276 = vor.u32 %v5271, %v5275
        %v5278 = vshll.u32 %v4792, 16
        %v5280 = vrot.slane %v5278, 1
        %v5281 = vsel %vm4933, %v5276, %v5280
        %v5283 = vshrl.u32 %v4919, 16
        %v5285 = vshll.u32 %v4919, 16
        %v5287 = vrot.slane %v5285, 1
        %v5288 = vor.u32 %v5283, %v5287
        %v5290 = vshll.u32 %v4920, 16
        %v5292 = vrot.slane %v5290, 1
        %v5293 = vsel %vm4933, %v5288, %v5292
        %v5295 = vshrl.u32 %v4665, 16
        %v5297 = vshll.u32 %v4665, 16
        %v5299 = vrot.slane %v5297, 1
        %v5300 = vor.u32 %v5295, %v5299
        %v5302 = vshll.u32 %v4666, 16
        %v5304 = vrot.slane %v5302, 1
        %v5305 = vsel %vm4933, %v5300, %v5304
        %v5307 = vshrl.u32 %v4793, 16
        %v5309 = vshll.u32 %v4793, 16
        %v5311 = vrot.slane %v5309, 1
        %v5312 = vor.u32 %v5307, %v5311
        %v5314 = vshll.u32 %v4794, 16
        %v5316 = vrot.slane %v5314, 1
        %v5317 = vsel %vm4933, %v5312, %v5316
        %v5319 = vshrl.u32 %v4921, 16
        %v5321 = vshll.u32 %v4921, 16
        %v5323 = vrot.slane %v5321, 1
        %v5324 = vor.u32 %v5319, %v5323
        %v5326 = vshll.u32 %v4922, 16
        %v5328 = vrot.slane %v5326, 1
        %v5329 = vsel %vm4933, %v5324, %v5328
        %v5331 = vshrl.u32 %v4667, 16
        %v5333 = vshll.u32 %v4667, 16
        %v5335 = vrot.slane %v5333, 1
        %v5336 = vor.u32 %v5331, %v5335
        %v5338 = vshll.u32 %v4668, 16
        %v5340 = vrot.slane %v5338, 1
        %v5341 = vsel %vm4933, %v5336, %v5340
        %v5343 = vshrl.u32 %v4795, 16
        %v5345 = vshll.u32 %v4795, 16
        %v5347 = vrot.slane %v5345, 1
        %v5348 = vor.u32 %v5343, %v5347
        %v5350 = vshll.u32 %v4796, 16
        %v5352 = vrot.slane %v5350, 1
        %v5353 = vsel %vm4933, %v5348, %v5352
        %v5355 = vshrl.u32 %v4923, 16
        %v5357 = vshll.u32 %v4923, 16
        %v5359 = vrot.slane %v5357, 1
        %v5360 = vor.u32 %v5355, %v5359
        %v5362 = vshll.u32 %v4924, 16
        %v5364 = vrot.slane %v5362, 1
        %v5365 = vsel %vm4933, %v5360, %v5364
        %v5367 = vshrl.u32 %v4669, 16
        %v5369 = vshll.u32 %v4669, 16
        %v5371 = vrot.slane %v5369, 1
        %v5372 = vor.u32 %v5367, %v5371
        %v5374 = vshll.u32 %v4670, 16
        %v5376 = vrot.slane %v5374, 1
        %v5377 = vsel %vm4933, %v5372, %v5376
        %v5379 = vshrl.u32 %v4797, 16
        %v5381 = vshll.u32 %v4797, 16
        %v5383 = vrot.slane %v5381, 1
        %v5384 = vor.u32 %v5379, %v5383
        %v5386 = vshll.u32 %v4798, 16
        %v5388 = vrot.slane %v5386, 1
        %v5389 = vsel %vm4933, %v5384, %v5388
        %v5391 = vshrl.u32 %v4925, 16
        %v5393 = vshll.u32 %v4925, 16
        %v5395 = vrot.slane %v5393, 1
        %v5396 = vor.u32 %v5391, %v5395
        %v5398 = vshll.u32 %v4926, 16
        %v5400 = vrot.slane %v5398, 1
        %v5401 = vsel %vm4933, %v5396, %v5400
        %v5403 = vshrl.u32 %v4671, 16
        %v5405 = vshll.u32 %v4671, 16
        %v5407 = vrot.slane %v5405, 1
        %v5408 = vor.u32 %v5403, %v5407
        %v5410 = vshll.u32 %v4672, 16
        %v5412 = vrot.slane %v5410, 1
        %v5413 = vsel %vm4933, %v5408, %v5412
        %v5415 = vshrl.u32 %v4799, 16
        %v5417 = vshll.u32 %v4799, 16
        %v5419 = vrot.slane %v5417, 1
        %v5420 = vor.u32 %v5415, %v5419
        %v5422 = vshll.u32 %v4800, 16
        %v5424 = vrot.slane %v5422, 1
        %v5425 = vsel %vm4933, %v5420, %v5424
        %v5427 = vshrl.u32 %v4927, 16
        %v5429 = vshll.u32 %v4927, 16
        %v5431 = vrot.slane %v5429, 1
        %v5432 = vor.u32 %v5427, %v5431
        %v5434 = vshll.u32 %v4928, 16
        %v5436 = vrot.slane %v5434, 1
        %v5437 = vsel %vm4933, %v5432, %v5436
        %v5439 = vshrl.u32 %v4673, 16
        %v5441 = vshll.u32 %v4673, 16
        %v5443 = vrot.slane %v5441, 1
        %v5444 = vor.u32 %v5439, %v5443
        %v5446 = vshll.u32 %v4674, 16
        %v5448 = vrot.slane %v5446, 1
        %v5449 = vsel %vm4933, %v5444, %v5448
        %v5451 = vshrl.u32 %v4801, 16
        %v5453 = vshll.u32 %v4801, 16
        %v5455 = vrot.slane %v5453, 1
        %v5456 = vor.u32 %v5451, %v5455
        %v5458 = vshll.u32 %v4802, 16
        %v5460 = vrot.slane %v5458, 1
        %v5461 = vsel %vm4933, %v5456, %v5460
        %v5463 = vshrl.u32 %v4929, 16
        %v5465 = vshll.u32 %v4929, 16
        %v5467 = vrot.slane %v5465, 1
        %v5468 = vor.u32 %v5463, %v5467
        %v5470 = vshll.u32 %v4930, 16
        %v5472 = vrot.slane %v5470, 1
        %v5473 = vsel %vm4933, %v5468, %v5472
        %v5475 = vshrl.u32 %v4675, 16
        %v5477 = vshll.u32 %v4675, 16
        %v5479 = vrot.slane %v5477, 1
        %v5480 = vor.u32 %v5475, %v5479
        %v5482 = vshll.u32 %v4676, 16
        %v5484 = vrot.slane %v5482, 1
        %v5485 = vsel %vm4933, %v5480, %v5484
        %v5487 = vshrl.u32 %v4803, 16
        %v5489 = vshll.u32 %v4803, 16
        %v5491 = vrot.slane %v5489, 1
        %v5492 = vor.u32 %v5487, %v5491
        %v5494 = vshll.u32 %v4804, 16
        %v5496 = vrot.slane %v5494, 1
        %v5497 = vsel %vm4933, %v5492, %v5496
        %v5499 = vshrl.u32 %v4931, 16
        %v5501 = vshll.u32 %v4931, 16
        %v5503 = vrot.slane %v5501, 1
        %v5504 = vor.u32 %v5499, %v5503
        %v5506 = vshll.u32 %v4932, 16
        %v5508 = vrot.slane %v5506, 1
        %v5509 = vsel %vm4933, %v5504, %v5508
        %v5558 = vld [vmem:[%s4 + $0x300] sm:$0xff]
        %v5559 = vld [vmem:[%s4 + $0x308] sm:$0xff]
        %v5560 = vld [vmem:[%s4 + $0x310] sm:$0xff]
        %v5561 = vld [vmem:[%s4 + $0x318] sm:$0xff]
        %v5562 = vld [vmem:[%s4 + $0x320] sm:$0xff]
        %v5563 = vld [vmem:[%s4 + $0x328] sm:$0xff]
        %v5564 = vld [vmem:[%s4 + $0x330] sm:$0xff]
        %v5565 = vld [vmem:[%s4 + $0x338] sm:$0xff]
        %v5566 = vld [vmem:[%s4 + $0x340] sm:$0xff]
        %v5567 = vld [vmem:[%s4 + $0x348] sm:$0xff]
        %v5568 = vld [vmem:[%s4 + $0x350] sm:$0xff]
        %v5569 = vld [vmem:[%s4 + $0x358] sm:$0xff]
        %v5570 = vld [vmem:[%s4 + $0x360] sm:$0xff]
        %v5571 = vld [vmem:[%s4 + $0x368] sm:$0xff]
        %v5572 = vld [vmem:[%s4 + $0x370] sm:$0xff]
        %v5573 = vld [vmem:[%s4 + $0x378] sm:$0xff]
        %v5574 = vld [vmem:[%s4 + $0x380] sm:$0xff]
        %v5575 = vld [vmem:[%s4 + $0x388] sm:$0xff]
        %v5576 = vld [vmem:[%s4 + $0x390] sm:$0xff]
        %v5577 = vld [vmem:[%s4 + $0x398] sm:$0xff]
        %v5578 = vld [vmem:[%s4 + $0x3a0] sm:$0xff]
        %v5579 = vld [vmem:[%s4 + $0x3a8] sm:$0xff]
        %v5580 = vld [vmem:[%s4 + $0x3b0] sm:$0xff]
        %v5581 = vld [vmem:[%s4 + $0x3b8] sm:$0xff]
        %v5582 = vld [vmem:[%s4 + $0x3c0] sm:$0xff]
        %v5583 = vld [vmem:[%s4 + $0x3c8] sm:$0xff]
        %v5584 = vld [vmem:[%s4 + $0x3d0] sm:$0xff]
        %v5585 = vld [vmem:[%s4 + $0x3d8] sm:$0xff]
        %v5586 = vld [vmem:[%s4 + $0x3e0] sm:$0xff]
        %v5587 = vld [vmem:[%s4 + $0x3e8] sm:$0xff]
        %v5588 = vld [vmem:[%s4 + $0x3f0] sm:$0xff]
        %v5589 = vld [vmem:[%s4 + $0x3f8] sm:$0xff]
        %v5590 = vld [vmem:[%s4 + $0x400] sm:$0xff]
        %v5591 = vld [vmem:[%s4 + $0x408] sm:$0xff]
        %v5592 = vld [vmem:[%s4 + $0x410] sm:$0xff]
        %v5593 = vld [vmem:[%s4 + $0x418] sm:$0xff]
        %v5594 = vld [vmem:[%s4 + $0x420] sm:$0xff]
        %v5595 = vld [vmem:[%s4 + $0x428] sm:$0xff]
        %v5596 = vld [vmem:[%s4 + $0x430] sm:$0xff]
        %v5597 = vld [vmem:[%s4 + $0x438] sm:$0xff]
        %v5598 = vld [vmem:[%s4 + $0x440] sm:$0xff]
        %v5599 = vld [vmem:[%s4 + $0x448] sm:$0xff]
        %v5600 = vld [vmem:[%s4 + $0x450] sm:$0xff]
        %v5601 = vld [vmem:[%s4 + $0x458] sm:$0xff]
        %v5602 = vld [vmem:[%s4 + $0x460] sm:$0xff]
        %v5603 = vld [vmem:[%s4 + $0x468] sm:$0xff]
        %v5604 = vld [vmem:[%s4 + $0x470] sm:$0xff]
        %v5605 = vld [vmem:[%s4 + $0x478] sm:$0xff]
        %v5654 = vunpack.c.l.b16 %v5558
        %v5655 = vunpack.c.h.b16 %v5558
        %v5656 = vunpack.c.l.b16 %v5559
        %v5657 = vunpack.c.h.b16 %v5559
        %v5658 = vunpack.c.l.b16 %v5560
        %v5659 = vunpack.c.h.b16 %v5560
        %v5660 = vunpack.c.l.b16 %v5561
        %v5661 = vunpack.c.h.b16 %v5561
        %v5662 = vunpack.c.l.b16 %v5562
        %v5663 = vunpack.c.h.b16 %v5562
        %v5664 = vunpack.c.l.b16 %v5563
        %v5665 = vunpack.c.h.b16 %v5563
        %v5666 = vunpack.c.l.b16 %v5564
        %v5667 = vunpack.c.h.b16 %v5564
        %v5668 = vunpack.c.l.b16 %v5565
        %v5669 = vunpack.c.h.b16 %v5565
        %v5670 = vunpack.c.l.b16 %v5566
        %v5671 = vunpack.c.h.b16 %v5566
        %v5672 = vunpack.c.l.b16 %v5567
        %v5673 = vunpack.c.h.b16 %v5567
        %v5674 = vunpack.c.l.b16 %v5568
        %v5675 = vunpack.c.h.b16 %v5568
        %v5676 = vunpack.c.l.b16 %v5569
        %v5677 = vunpack.c.h.b16 %v5569
        %v5678 = vunpack.c.l.b16 %v5570
        %v5679 = vunpack.c.h.b16 %v5570
        %v5680 = vunpack.c.l.b16 %v5571
        %v5681 = vunpack.c.h.b16 %v5571
        %v5682 = vunpack.c.l.b16 %v5572
        %v5683 = vunpack.c.h.b16 %v5572
        %v5684 = vunpack.c.l.b16 %v5573
        %v5685 = vunpack.c.h.b16 %v5573
        %v5686 = vunpack.c.l.b16 %v5574
        %v5687 = vunpack.c.h.b16 %v5574
        %v5688 = vunpack.c.l.b16 %v5575
        %v5689 = vunpack.c.h.b16 %v5575
        %v5690 = vunpack.c.l.b16 %v5576
        %v5691 = vunpack.c.h.b16 %v5576
        %v5692 = vunpack.c.l.b16 %v5577
        %v5693 = vunpack.c.h.b16 %v5577
        %v5694 = vunpack.c.l.b16 %v5578
        %v5695 = vunpack.c.h.b16 %v5578
        %v5696 = vunpack.c.l.b16 %v5579
        %v5697 = vunpack.c.h.b16 %v5579
        %v5698 = vunpack.c.l.b16 %v5580
        %v5699 = vunpack.c.h.b16 %v5580
        %v5700 = vunpack.c.l.b16 %v5581
        %v5701 = vunpack.c.h.b16 %v5581
        %v5702 = vunpack.c.l.b16 %v5582
        %v5703 = vunpack.c.h.b16 %v5582
        %v5704 = vunpack.c.l.b16 %v5583
        %v5705 = vunpack.c.h.b16 %v5583
        %v5706 = vunpack.c.l.b16 %v5584
        %v5707 = vunpack.c.h.b16 %v5584
        %v5708 = vunpack.c.l.b16 %v5585
        %v5709 = vunpack.c.h.b16 %v5585
        %v5710 = vunpack.c.l.b16 %v5586
        %v5711 = vunpack.c.h.b16 %v5586
        %v5712 = vunpack.c.l.b16 %v5587
        %v5713 = vunpack.c.h.b16 %v5587
        %v5714 = vunpack.c.l.b16 %v5588
        %v5715 = vunpack.c.h.b16 %v5588
        %v5716 = vunpack.c.l.b16 %v5589
        %v5717 = vunpack.c.h.b16 %v5589
        %v5718 = vunpack.c.l.b16 %v5590
        %v5719 = vunpack.c.h.b16 %v5590
        %v5720 = vunpack.c.l.b16 %v5591
        %v5721 = vunpack.c.h.b16 %v5591
        %v5722 = vunpack.c.l.b16 %v5592
        %v5723 = vunpack.c.h.b16 %v5592
        %v5724 = vunpack.c.l.b16 %v5593
        %v5725 = vunpack.c.h.b16 %v5593
        %v5726 = vunpack.c.l.b16 %v5594
        %v5727 = vunpack.c.h.b16 %v5594
        %v5728 = vunpack.c.l.b16 %v5595
        %v5729 = vunpack.c.h.b16 %v5595
        %v5730 = vunpack.c.l.b16 %v5596
        %v5731 = vunpack.c.h.b16 %v5596
        %v5732 = vunpack.c.l.b16 %v5597
        %v5733 = vunpack.c.h.b16 %v5597
        %v5734 = vunpack.c.l.b16 %v5598
        %v5735 = vunpack.c.h.b16 %v5598
        %v5736 = vunpack.c.l.b16 %v5599
        %v5737 = vunpack.c.h.b16 %v5599
        %v5738 = vunpack.c.l.b16 %v5600
        %v5739 = vunpack.c.h.b16 %v5600
        %v5740 = vunpack.c.l.b16 %v5601
        %v5741 = vunpack.c.h.b16 %v5601
        %v5742 = vunpack.c.l.b16 %v5602
        %v5743 = vunpack.c.h.b16 %v5602
        %v5744 = vunpack.c.l.b16 %v5603
        %v5745 = vunpack.c.h.b16 %v5603
        %v5746 = vunpack.c.l.b16 %v5604
        %v5747 = vunpack.c.h.b16 %v5604
        %v5748 = vunpack.c.l.b16 %v5605
        %v5749 = vunpack.c.h.b16 %v5605
        %v5750 = vpack.c.b16 %v5656, %v5654
        %v5751 = vpack.c.b16 %v5657, %v5655
        %v5752 = vpack.c.b16 %v5660, %v5658
        %v5753 = vpack.c.b16 %v5661, %v5659
        %v5754 = vpack.c.b16 %v5664, %v5662
        %v5755 = vpack.c.b16 %v5665, %v5663
        %v5756 = vpack.c.b16 %v5668, %v5666
        %v5757 = vpack.c.b16 %v5669, %v5667
        %v5758 = vpack.c.b16 %v5672, %v5670
        %v5759 = vpack.c.b16 %v5673, %v5671
        %v5760 = vpack.c.b16 %v5676, %v5674
        %v5761 = vpack.c.b16 %v5677, %v5675
        %v5762 = vpack.c.b16 %v5680, %v5678
        %v5763 = vpack.c.b16 %v5681, %v5679
        %v5764 = vpack.c.b16 %v5684, %v5682
        %v5765 = vpack.c.b16 %v5685, %v5683
        %v5766 = vpack.c.b16 %v5688, %v5686
        %v5767 = vpack.c.b16 %v5689, %v5687
        %v5768 = vpack.c.b16 %v5692, %v5690
        %v5769 = vpack.c.b16 %v5693, %v5691
        %v5770 = vpack.c.b16 %v5696, %v5694
        %v5771 = vpack.c.b16 %v5697, %v5695
        %v5772 = vpack.c.b16 %v5700, %v5698
        %v5773 = vpack.c.b16 %v5701, %v5699
        %v5774 = vpack.c.b16 %v5704, %v5702
        %v5775 = vpack.c.b16 %v5705, %v5703
        %v5776 = vpack.c.b16 %v5708, %v5706
        %v5777 = vpack.c.b16 %v5709, %v5707
        %v5778 = vpack.c.b16 %v5712, %v5710
        %v5779 = vpack.c.b16 %v5713, %v5711
        %v5780 = vpack.c.b16 %v5716, %v5714
        %v5781 = vpack.c.b16 %v5717, %v5715
        %v5782 = vpack.c.b16 %v5720, %v5718
        %v5783 = vpack.c.b16 %v5721, %v5719
        %v5784 = vpack.c.b16 %v5724, %v5722
        %v5785 = vpack.c.b16 %v5725, %v5723
        %v5786 = vpack.c.b16 %v5728, %v5726
        %v5787 = vpack.c.b16 %v5729, %v5727
        %v5788 = vpack.c.b16 %v5732, %v5730
        %v5789 = vpack.c.b16 %v5733, %v5731
        %v5790 = vpack.c.b16 %v5736, %v5734
        %v5791 = vpack.c.b16 %v5737, %v5735
        %v5792 = vpack.c.b16 %v5740, %v5738
        %v5793 = vpack.c.b16 %v5741, %v5739
        %v5794 = vpack.c.b16 %v5744, %v5742
        %v5795 = vpack.c.b16 %v5745, %v5743
        %v5796 = vpack.c.b16 %v5748, %v5746
        %v5797 = vpack.c.b16 %v5749, %v5747
        %5846 = vmatprep.subr.bf16.mxu0 %v5765
        %5847 = vmatpush1.bf16.msra.mxu0 %v5764
        %5848 = vmatprep.subr.bf16.mxu0 %v5763
        %5849 = vmatpush1.bf16.msra.mxu0 %v5762
        %5850 = vmatprep.subr.bf16.mxu0 %v5761
        %5851 = vmatpush1.bf16.msra.mxu0 %v5760
        %5852 = vmatprep.subr.bf16.mxu0 %v5759
        %5853 = vmatpush1.bf16.msra.mxu0 %v5758
        %5854 = vmatprep.subr.bf16.mxu0 %v5757
        %5855 = vmatpush1.bf16.msra.mxu0 %v5756
        %5856 = vmatprep.subr.bf16.mxu0 %v5755
        %5857 = vmatpush1.bf16.msra.mxu0 %v5754
        %5858 = vmatprep.subr.bf16.mxu0 %v5753
        %5859 = vmatpush1.bf16.msra.mxu0 %v5752
        %5860 = vmatprep.subr.bf16.mxu0 %v5751
        %5861 = vmatpush1.bf16.msra.mxu0 %v5750
        %5862 = vmatprep.subr.bf16.mxu0 %v5781
        %5863 = vmatpush2.bf16.msra.mxu0 %v5780
        %5864 = vmatprep.subr.bf16.mxu0 %v5779
        %5865 = vmatpush2.bf16.msra.mxu0 %v5778
        %5866 = vmatprep.subr.bf16.mxu0 %v5777
        %5867 = vmatpush2.bf16.msra.mxu0 %v5776
        %5868 = vmatprep.subr.bf16.mxu0 %v5775
        %5869 = vmatpush2.bf16.msra.mxu0 %v5774
        %5870 = vmatprep.subr.bf16.mxu0 %v5773
        %5871 = vmatpush2.bf16.msra.mxu0 %v5772
        %5872 = vmatprep.subr.bf16.mxu0 %v5771
        %5873 = vmatpush2.bf16.msra.mxu0 %v5770
        %5874 = vmatprep.subr.bf16.mxu0 %v5769
        %5875 = vmatpush2.bf16.msra.mxu0 %v5768
        %5876 = vmatprep.subr.bf16.mxu0 %v5767
        %5877 = vmatpush2.bf16.msra.mxu0 %v5766
        %5878 = vmatprep.mubr.bf16.mxu0 %v4957
        %5879 = vmatmul.mubr.bf16.gmra.mxu0 %v4945
        %v5880 = vpop.f32.mrf.mxu0
        %v5881 = vadd.f32 0.0, %v5880
        %v5882 = vpop.f32.mrf.mxu0
        %v5883 = vadd.f32 0.0, %v5882
        %v5884 = vpop.f32.mrf.mxu0
        %v5885 = vadd.f32 0.0, %v5884
        %v5886 = vpop.f32.mrf.mxu0
        %v5887 = vadd.f32 0.0, %v5886
        %5888 = vmatprep.mubr.bf16.mxu0 %v4993
        %5889 = vmatmul.mubr.bf16.gmra.mxu0 %v4981
        %v5890 = vpop.f32.mrf.mxu0
        %v5891 = vadd.f32 0.0, %v5890
        %v5892 = vpop.f32.mrf.mxu0
        %v5893 = vadd.f32 0.0, %v5892
        %v5894 = vpop.f32.mrf.mxu0
        %v5895 = vadd.f32 0.0, %v5894
        %v5896 = vpop.f32.mrf.mxu0
        %v5897 = vadd.f32 0.0, %v5896
        %5898 = vmatprep.mubr.bf16.mxu0 %v5029
        %5899 = vmatmul.mubr.bf16.gmra.mxu0 %v5017
        %v5900 = vpop.f32.mrf.mxu0
        %v5901 = vadd.f32 0.0, %v5900
        %v5902 = vpop.f32.mrf.mxu0
        %v5903 = vadd.f32 0.0, %v5902
        %v5904 = vpop.f32.mrf.mxu0
        %v5905 = vadd.f32 0.0, %v5904
        %v5906 = vpop.f32.mrf.mxu0
        %v5907 = vadd.f32 0.0, %v5906
        %5908 = vmatprep.mubr.bf16.mxu0 %v5065
        %5909 = vmatmul.mubr.bf16.gmra.mxu0 %v5053
        %v5910 = vpop.f32.mrf.mxu0
        %v5911 = vadd.f32 0.0, %v5910
        %v5912 = vpop.f32.mrf.mxu0
        %v5913 = vadd.f32 0.0, %v5912
        %v5914 = vpop.f32.mrf.mxu0
        %v5915 = vadd.f32 0.0, %v5914
        %v5916 = vpop.f32.mrf.mxu0
        %v5917 = vadd.f32 0.0, %v5916
        %5918 = vmatprep.mubr.bf16.mxu0 %v5101
        %5919 = vmatmul.mubr.bf16.gmra.mxu0 %v5089
        %v5920 = vpop.f32.mrf.mxu0
        %v5921 = vadd.f32 0.0, %v5920
        %v5922 = vpop.f32.mrf.mxu0
        %v5923 = vadd.f32 0.0, %v5922
        %v5924 = vpop.f32.mrf.mxu0
        %v5925 = vadd.f32 0.0, %v5924
        %v5926 = vpop.f32.mrf.mxu0
        %v5927 = vadd.f32 0.0, %v5926
        %5928 = vmatprep.mubr.bf16.mxu0 %v5137
        %5929 = vmatmul.mubr.bf16.gmra.mxu0 %v5125
        %v5930 = vpop.f32.mrf.mxu0
        %v5931 = vadd.f32 0.0, %v5930
        %v5932 = vpop.f32.mrf.mxu0
        %v5933 = vadd.f32 0.0, %v5932
        %v5934 = vpop.f32.mrf.mxu0
        %v5935 = vadd.f32 0.0, %v5934
        %v5936 = vpop.f32.mrf.mxu0
        %v5937 = vadd.f32 0.0, %v5936
        %5938 = vmatprep.mubr.bf16.mxu0 %v5173
        %5939 = vmatmul.mubr.bf16.gmra.mxu0 %v5161
        %v5940 = vpop.f32.mrf.mxu0
        %v5941 = vadd.f32 0.0, %v5940
        %v5942 = vpop.f32.mrf.mxu0
        %v5943 = vadd.f32 0.0, %v5942
        %v5944 = vpop.f32.mrf.mxu0
        %v5945 = vadd.f32 0.0, %v5944
        %v5946 = vpop.f32.mrf.mxu0
        %v5947 = vadd.f32 0.0, %v5946
        %5948 = vmatprep.mubr.bf16.mxu0 %v5209
        %5949 = vmatmul.mubr.bf16.gmra.mxu0 %v5197
        %v5950 = vpop.f32.mrf.mxu0
        %v5951 = vadd.f32 0.0, %v5950
        %v5952 = vpop.f32.mrf.mxu0
        %v5953 = vadd.f32 0.0, %v5952
        %v5954 = vpop.f32.mrf.mxu0
        %v5955 = vadd.f32 0.0, %v5954
        %v5956 = vpop.f32.mrf.mxu0
        %v5957 = vadd.f32 0.0, %v5956
        %5958 = vmatprep.mubr.bf16.mxu0 %v5245
        %5959 = vmatmul.mubr.bf16.gmra.mxu0 %v5233
        %v5960 = vpop.f32.mrf.mxu0
        %v5961 = vadd.f32 0.0, %v5960
        %v5962 = vpop.f32.mrf.mxu0
        %v5963 = vadd.f32 0.0, %v5962
        %v5964 = vpop.f32.mrf.mxu0
        %v5965 = vadd.f32 0.0, %v5964
        %v5966 = vpop.f32.mrf.mxu0
        %v5967 = vadd.f32 0.0, %v5966
        %5968 = vmatprep.mubr.bf16.mxu0 %v5281
        %5969 = vmatmul.mubr.bf16.gmra.mxu0 %v5269
        %v5970 = vpop.f32.mrf.mxu0
        %v5971 = vadd.f32 0.0, %v5970
        %v5972 = vpop.f32.mrf.mxu0
        %v5973 = vadd.f32 0.0, %v5972
        %v5974 = vpop.f32.mrf.mxu0
        %v5975 = vadd.f32 0.0, %v5974
        %v5976 = vpop.f32.mrf.mxu0
        %v5977 = vadd.f32 0.0, %v5976
        %5978 = vmatprep.mubr.bf16.mxu0 %v5317
        %5979 = vmatmul.mubr.bf16.gmra.mxu0 %v5305
        %v5980 = vpop.f32.mrf.mxu0
        %v5981 = vadd.f32 0.0, %v5980
        %v5982 = vpop.f32.mrf.mxu0
        %v5983 = vadd.f32 0.0, %v5982
        %v5984 = vpop.f32.mrf.mxu0
        %v5985 = vadd.f32 0.0, %v5984
        %v5986 = vpop.f32.mrf.mxu0
        %v5987 = vadd.f32 0.0, %v5986
        %5988 = vmatprep.mubr.bf16.mxu0 %v5353
        %5989 = vmatmul.mubr.bf16.gmra.mxu0 %v5341
        %v5990 = vpop.f32.mrf.mxu0
        %v5991 = vadd.f32 0.0, %v5990
        %v5992 = vpop.f32.mrf.mxu0
        %v5993 = vadd.f32 0.0, %v5992
        %v5994 = vpop.f32.mrf.mxu0
        %v5995 = vadd.f32 0.0, %v5994
        %v5996 = vpop.f32.mrf.mxu0
        %v5997 = vadd.f32 0.0, %v5996
        %5998 = vmatprep.mubr.bf16.mxu0 %v5389
        %5999 = vmatmul.mubr.bf16.gmra.mxu0 %v5377
        %v6000 = vpop.f32.mrf.mxu0
        %v6001 = vadd.f32 0.0, %v6000
        %v6002 = vpop.f32.mrf.mxu0
        %v6003 = vadd.f32 0.0, %v6002
        %v6004 = vpop.f32.mrf.mxu0
        %v6005 = vadd.f32 0.0, %v6004
        %v6006 = vpop.f32.mrf.mxu0
        %v6007 = vadd.f32 0.0, %v6006
        %6008 = vmatprep.mubr.bf16.mxu0 %v5425
        %6009 = vmatmul.mubr.bf16.gmra.mxu0 %v5413
        %v6010 = vpop.f32.mrf.mxu0
        %v6011 = vadd.f32 0.0, %v6010
        %v6012 = vpop.f32.mrf.mxu0
        %v6013 = vadd.f32 0.0, %v6012
        %v6014 = vpop.f32.mrf.mxu0
        %v6015 = vadd.f32 0.0, %v6014
        %v6016 = vpop.f32.mrf.mxu0
        %v6017 = vadd.f32 0.0, %v6016
        %6018 = vmatprep.mubr.bf16.mxu0 %v5461
        %6019 = vmatmul.mubr.bf16.gmra.mxu0 %v5449
        %v6020 = vpop.f32.mrf.mxu0
        %v6021 = vadd.f32 0.0, %v6020
        %v6022 = vpop.f32.mrf.mxu0
        %v6023 = vadd.f32 0.0, %v6022
        %v6024 = vpop.f32.mrf.mxu0
        %v6025 = vadd.f32 0.0, %v6024
        %v6026 = vpop.f32.mrf.mxu0
        %v6027 = vadd.f32 0.0, %v6026
        %6028 = vmatprep.mubr.bf16.mxu0 %v5497
        %6029 = vmatmul.mubr.bf16.gmra.mxu0 %v5485
        %v6030 = vpop.f32.mrf.mxu0
        %v6031 = vadd.f32 0.0, %v6030
        %v6032 = vpop.f32.mrf.mxu0
        %v6033 = vadd.f32 0.0, %v6032
        %v6034 = vpop.f32.mrf.mxu0
        %v6035 = vadd.f32 0.0, %v6034
        %v6036 = vpop.f32.mrf.mxu0
        %v6037 = vadd.f32 0.0, %v6036
        %6038 = vdwg.mxu0
        %6039 = vmatprep.subr.bf16.mxu0 %v5797
        %6040 = vmatpush1.bf16.msra.mxu0 %v5796
        %6041 = vmatprep.subr.bf16.mxu0 %v5795
        %6042 = vmatpush1.bf16.msra.mxu0 %v5794
        %6043 = vmatprep.subr.bf16.mxu0 %v5793
        %6044 = vmatpush1.bf16.msra.mxu0 %v5792
        %6045 = vmatprep.subr.bf16.mxu0 %v5791
        %6046 = vmatpush1.bf16.msra.mxu0 %v5790
        %6047 = vmatprep.subr.bf16.mxu0 %v5789
        %6048 = vmatpush1.bf16.msra.mxu0 %v5788
        %6049 = vmatprep.subr.bf16.mxu0 %v5787
        %6050 = vmatpush1.bf16.msra.mxu0 %v5786
        %6051 = vmatprep.subr.bf16.mxu0 %v5785
        %6052 = vmatpush1.bf16.msra.mxu0 %v5784
        %6053 = vmatprep.subr.bf16.mxu0 %v5783
        %6054 = vmatpush1.bf16.msra.mxu0 %v5782
        %6055 = vmatprep.subr.bf16.mxu0 0
        %6056 = vmatpush2.bf16.msra.mxu0 0
        %6057 = vmatprep.subr.bf16.mxu0 0
        %6058 = vmatpush2.bf16.msra.mxu0 0
        %6059 = vmatprep.subr.bf16.mxu0 0
        %6060 = vmatpush2.bf16.msra.mxu0 0
        %6061 = vmatprep.subr.bf16.mxu0 0
        %6062 = vmatpush2.bf16.msra.mxu0 0
        %6063 = vmatprep.subr.bf16.mxu0 0
        %6064 = vmatpush2.bf16.msra.mxu0 0
        %6065 = vmatprep.subr.bf16.mxu0 0
        %6066 = vmatpush2.bf16.msra.mxu0 0
        %6067 = vmatprep.subr.bf16.mxu0 0
        %6068 = vmatpush2.bf16.msra.mxu0 0
        %6069 = vmatprep.subr.bf16.mxu0 0
        %6070 = vmatpush2.bf16.msra.mxu0 0
        %6071 = vmatprep.mubr.bf16.mxu0 0
        %6072 = vmatmul.mubr.bf16.gmra.mxu0 %v4969
        %v6073 = vpop.f32.mrf.mxu0
        %v6074 = vadd.f32 %v5881, %v6073
        %v6075 = vpop.f32.mrf.mxu0
        %v6076 = vadd.f32 %v5883, %v6075
        %v6077 = vpop.f32.mrf.mxu0
        %v6078 = vadd.f32 %v5885, %v6077
        %v6079 = vpop.f32.mrf.mxu0
        %v6080 = vadd.f32 %v5887, %v6079
        %6081 = vmatprep.mubr.bf16.mxu0 0
        %6082 = vmatmul.mubr.bf16.gmra.mxu0 %v5005
        %v6083 = vpop.f32.mrf.mxu0
        %v6084 = vadd.f32 %v5891, %v6083
        %v6085 = vpop.f32.mrf.mxu0
        %v6086 = vadd.f32 %v5893, %v6085
        %v6087 = vpop.f32.mrf.mxu0
        %v6088 = vadd.f32 %v5895, %v6087
        %v6089 = vpop.f32.mrf.mxu0
        %v6090 = vadd.f32 %v5897, %v6089
        %6091 = vmatprep.mubr.bf16.mxu0 0
        %6092 = vmatmul.mubr.bf16.gmra.mxu0 %v5041
        %v6093 = vpop.f32.mrf.mxu0
        %v6094 = vadd.f32 %v5901, %v6093
        %v6095 = vpop.f32.mrf.mxu0
        %v6096 = vadd.f32 %v5903, %v6095
        %v6097 = vpop.f32.mrf.mxu0
        %v6098 = vadd.f32 %v5905, %v6097
        %v6099 = vpop.f32.mrf.mxu0
        %v6100 = vadd.f32 %v5907, %v6099
        %6101 = vmatprep.mubr.bf16.mxu0 0
        %6102 = vmatmul.mubr.bf16.gmra.mxu0 %v5077
        %v6103 = vpop.f32.mrf.mxu0
        %v6104 = vadd.f32 %v5911, %v6103
        %v6105 = vpop.f32.mrf.mxu0
        %v6106 = vadd.f32 %v5913, %v6105
        %v6107 = vpop.f32.mrf.mxu0
        %v6108 = vadd.f32 %v5915, %v6107
        %v6109 = vpop.f32.mrf.mxu0
        %v6110 = vadd.f32 %v5917, %v6109
        %6111 = vmatprep.mubr.bf16.mxu0 0
        %6112 = vmatmul.mubr.bf16.gmra.mxu0 %v5113
        %v6113 = vpop.f32.mrf.mxu0
        %v6114 = vadd.f32 %v5921, %v6113
        %v6115 = vpop.f32.mrf.mxu0
        %v6116 = vadd.f32 %v5923, %v6115
        %v6117 = vpop.f32.mrf.mxu0
        %v6118 = vadd.f32 %v5925, %v6117
        %v6119 = vpop.f32.mrf.mxu0
        %v6120 = vadd.f32 %v5927, %v6119
        %6121 = vmatprep.mubr.bf16.mxu0 0
        %6122 = vmatmul.mubr.bf16.gmra.mxu0 %v5149
        %v6123 = vpop.f32.mrf.mxu0
        %v6124 = vadd.f32 %v5931, %v6123
        %v6125 = vpop.f32.mrf.mxu0
        %v6126 = vadd.f32 %v5933, %v6125
        %v6127 = vpop.f32.mrf.mxu0
        %v6128 = vadd.f32 %v5935, %v6127
        %v6129 = vpop.f32.mrf.mxu0
        %v6130 = vadd.f32 %v5937, %v6129
        %6131 = vmatprep.mubr.bf16.mxu0 0
        %6132 = vmatmul.mubr.bf16.gmra.mxu0 %v5185
        %v6133 = vpop.f32.mrf.mxu0
        %v6134 = vadd.f32 %v5941, %v6133
        %v6135 = vpop.f32.mrf.mxu0
        %v6136 = vadd.f32 %v5943, %v6135
        %v6137 = vpop.f32.mrf.mxu0
        %v6138 = vadd.f32 %v5945, %v6137
        %v6139 = vpop.f32.mrf.mxu0
        %v6140 = vadd.f32 %v5947, %v6139
        %6141 = vmatprep.mubr.bf16.mxu0 0
        %6142 = vmatmul.mubr.bf16.gmra.mxu0 %v5221
        %v6143 = vpop.f32.mrf.mxu0
        %v6144 = vadd.f32 %v5951, %v6143
        %v6145 = vpop.f32.mrf.mxu0
        %v6146 = vadd.f32 %v5953, %v6145
        %v6147 = vpop.f32.mrf.mxu0
        %v6148 = vadd.f32 %v5955, %v6147
        %v6149 = vpop.f32.mrf.mxu0
        %v6150 = vadd.f32 %v5957, %v6149
        %6151 = vmatprep.mubr.bf16.mxu0 0
        %6152 = vmatmul.mubr.bf16.gmra.mxu0 %v5257
        %v6153 = vpop.f32.mrf.mxu0
        %v6154 = vadd.f32 %v5961, %v6153
        %v6155 = vpop.f32.mrf.mxu0
        %v6156 = vadd.f32 %v5963, %v6155
        %v6157 = vpop.f32.mrf.mxu0
        %v6158 = vadd.f32 %v5965, %v6157
        %v6159 = vpop.f32.mrf.mxu0
        %v6160 = vadd.f32 %v5967, %v6159
        %6161 = vmatprep.mubr.bf16.mxu0 0
        %6162 = vmatmul.mubr.bf16.gmra.mxu0 %v5293
        %v6163 = vpop.f32.mrf.mxu0
        %v6164 = vadd.f32 %v5971, %v6163
        %v6165 = vpop.f32.mrf.mxu0
        %v6166 = vadd.f32 %v5973, %v6165
        %v6167 = vpop.f32.mrf.mxu0
        %v6168 = vadd.f32 %v5975, %v6167
        %v6169 = vpop.f32.mrf.mxu0
        %v6170 = vadd.f32 %v5977, %v6169
        %6171 = vmatprep.mubr.bf16.mxu0 0
        %6172 = vmatmul.mubr.bf16.gmra.mxu0 %v5329
        %v6173 = vpop.f32.mrf.mxu0
        %v6174 = vadd.f32 %v5981, %v6173
        %v6175 = vpop.f32.mrf.mxu0
        %v6176 = vadd.f32 %v5983, %v6175
        %v6177 = vpop.f32.mrf.mxu0
        %v6178 = vadd.f32 %v5985, %v6177
        %v6179 = vpop.f32.mrf.mxu0
        %v6180 = vadd.f32 %v5987, %v6179
        %6181 = vmatprep.mubr.bf16.mxu0 0
        %6182 = vmatmul.mubr.bf16.gmra.mxu0 %v5365
        %v6183 = vpop.f32.mrf.mxu0
        %v6184 = vadd.f32 %v5991, %v6183
        %v6185 = vpop.f32.mrf.mxu0
        %v6186 = vadd.f32 %v5993, %v6185
        %v6187 = vpop.f32.mrf.mxu0
        %v6188 = vadd.f32 %v5995, %v6187
        %v6189 = vpop.f32.mrf.mxu0
        %v6190 = vadd.f32 %v5997, %v6189
        %6191 = vmatprep.mubr.bf16.mxu0 0
        %6192 = vmatmul.mubr.bf16.gmra.mxu0 %v5401
        %v6193 = vpop.f32.mrf.mxu0
        %v6194 = vadd.f32 %v6001, %v6193
        %v6195 = vpop.f32.mrf.mxu0
        %v6196 = vadd.f32 %v6003, %v6195
        %v6197 = vpop.f32.mrf.mxu0
        %v6198 = vadd.f32 %v6005, %v6197
        %v6199 = vpop.f32.mrf.mxu0
        %v6200 = vadd.f32 %v6007, %v6199
        %6201 = vmatprep.mubr.bf16.mxu0 0
        %6202 = vmatmul.mubr.bf16.gmra.mxu0 %v5437
        %v6203 = vpop.f32.mrf.mxu0
        %v6204 = vadd.f32 %v6011, %v6203
        %v6205 = vpop.f32.mrf.mxu0
        %v6206 = vadd.f32 %v6013, %v6205
        %v6207 = vpop.f32.mrf.mxu0
        %v6208 = vadd.f32 %v6015, %v6207
        %v6209 = vpop.f32.mrf.mxu0
        %v6210 = vadd.f32 %v6017, %v6209
        %6211 = vmatprep.mubr.bf16.mxu0 0
        %6212 = vmatmul.mubr.bf16.gmra.mxu0 %v5473
        %v6213 = vpop.f32.mrf.mxu0
        %v6214 = vadd.f32 %v6021, %v6213
        %v6215 = vpop.f32.mrf.mxu0
        %v6216 = vadd.f32 %v6023, %v6215
        %v6217 = vpop.f32.mrf.mxu0
        %v6218 = vadd.f32 %v6025, %v6217
        %v6219 = vpop.f32.mrf.mxu0
        %v6220 = vadd.f32 %v6027, %v6219
        %6221 = vmatprep.mubr.bf16.mxu0 0
        %6222 = vmatmul.mubr.bf16.gmra.mxu0 %v5509
        %v6223 = vpop.f32.mrf.mxu0
        %v6224 = vadd.f32 %v6031, %v6223
        %v6225 = vpop.f32.mrf.mxu0
        %v6226 = vadd.f32 %v6033, %v6225
        %v6227 = vpop.f32.mrf.mxu0
        %v6228 = vadd.f32 %v6035, %v6227
        %v6229 = vpop.f32.mrf.mxu0
        %v6230 = vadd.f32 %v6037, %v6229
        %6231 = vdwg.mxu0
        %v6232 = vld [vmem:[#allocation3] sm:$0xff]
        %v6233 = vld [vmem:[#allocation3 + $0x8] sm:$0xff]
        %v6234 = vld [vmem:[#allocation3 + $0x10] sm:$0xff]
        %v6235 = vld [vmem:[#allocation3 + $0x18] sm:$0xff]
        %v6236 = vld [vmem:[#allocation3 + $0x20] sm:$0xff]
        %v6237 = vld [vmem:[#allocation3 + $0x28] sm:$0xff]
        %v6238 = vld [vmem:[#allocation3 + $0x30] sm:$0xff]
        %v6239 = vld [vmem:[#allocation3 + $0x38] sm:$0xff]
        %v6240 = vld [vmem:[#allocation3 + $0x40] sm:$0xff]
        %v6241 = vld [vmem:[#allocation3 + $0x48] sm:$0xff]
        %v6242 = vld [vmem:[#allocation3 + $0x50] sm:$0xff]
        %v6243 = vld [vmem:[#allocation3 + $0x58] sm:$0xff]
        %v6244 = vld [vmem:[#allocation3 + $0x60] sm:$0xff]
        %v6245 = vld [vmem:[#allocation3 + $0x68] sm:$0xff]
        %v6246 = vld [vmem:[#allocation3 + $0x70] sm:$0xff]
        %v6247 = vld [vmem:[#allocation3 + $0x78] sm:$0xff]
        %v6248 = vld [vmem:[#allocation3 + $0x80] sm:$0xff]
        %v6249 = vld [vmem:[#allocation3 + $0x88] sm:$0xff]
        %v6250 = vld [vmem:[#allocation3 + $0x90] sm:$0xff]
        %v6251 = vld [vmem:[#allocation3 + $0x98] sm:$0xff]
        %v6252 = vld [vmem:[#allocation3 + $0xa0] sm:$0xff]
        %v6253 = vld [vmem:[#allocation3 + $0xa8] sm:$0xff]
        %v6254 = vld [vmem:[#allocation3 + $0xb0] sm:$0xff]
        %v6255 = vld [vmem:[#allocation3 + $0xb8] sm:$0xff]
        %v6256 = vld [vmem:[#allocation3 + $0xc0] sm:$0xff]
        %v6257 = vld [vmem:[#allocation3 + $0xc8] sm:$0xff]
        %v6258 = vld [vmem:[#allocation3 + $0xd0] sm:$0xff]
        %v6259 = vld [vmem:[#allocation3 + $0xd8] sm:$0xff]
        %v6260 = vld [vmem:[#allocation3 + $0xe0] sm:$0xff]
        %v6261 = vld [vmem:[#allocation3 + $0xe8] sm:$0xff]
        %v6262 = vld [vmem:[#allocation3 + $0xf0] sm:$0xff]
        %v6263 = vld [vmem:[#allocation3 + $0xf8] sm:$0xff]
        %v6264 = vld [vmem:[#allocation3 + $0x100] sm:$0xff]
        %v6265 = vld [vmem:[#allocation3 + $0x108] sm:$0xff]
        %v6266 = vld [vmem:[#allocation3 + $0x110] sm:$0xff]
        %v6267 = vld [vmem:[#allocation3 + $0x118] sm:$0xff]
        %v6268 = vld [vmem:[#allocation3 + $0x120] sm:$0xff]
        %v6269 = vld [vmem:[#allocation3 + $0x128] sm:$0xff]
        %v6270 = vld [vmem:[#allocation3 + $0x130] sm:$0xff]
        %v6271 = vld [vmem:[#allocation3 + $0x138] sm:$0xff]
        %v6272 = vld [vmem:[#allocation3 + $0x140] sm:$0xff]
        %v6273 = vld [vmem:[#allocation3 + $0x148] sm:$0xff]
        %v6274 = vld [vmem:[#allocation3 + $0x150] sm:$0xff]
        %v6275 = vld [vmem:[#allocation3 + $0x158] sm:$0xff]
        %v6276 = vld [vmem:[#allocation3 + $0x160] sm:$0xff]
        %v6277 = vld [vmem:[#allocation3 + $0x168] sm:$0xff]
        %v6278 = vld [vmem:[#allocation3 + $0x170] sm:$0xff]
        %v6279 = vld [vmem:[#allocation3 + $0x178] sm:$0xff]
        %v6280 = vld [vmem:[#allocation3 + $0x180] sm:$0xff]
        %v6281 = vld [vmem:[#allocation3 + $0x188] sm:$0xff]
        %v6282 = vld [vmem:[#allocation3 + $0x190] sm:$0xff]
        %v6283 = vld [vmem:[#allocation3 + $0x198] sm:$0xff]
        %v6284 = vld [vmem:[#allocation3 + $0x1a0] sm:$0xff]
        %v6285 = vld [vmem:[#allocation3 + $0x1a8] sm:$0xff]
        %v6286 = vld [vmem:[#allocation3 + $0x1b0] sm:$0xff]
        %v6287 = vld [vmem:[#allocation3 + $0x1b8] sm:$0xff]
        %v6288 = vld [vmem:[#allocation3 + $0x1c0] sm:$0xff]
        %v6289 = vld [vmem:[#allocation3 + $0x1c8] sm:$0xff]
        %v6290 = vld [vmem:[#allocation3 + $0x1d0] sm:$0xff]
        %v6291 = vld [vmem:[#allocation3 + $0x1d8] sm:$0xff]
        %v6292 = vld [vmem:[#allocation3 + $0x1e0] sm:$0xff]
        %v6293 = vld [vmem:[#allocation3 + $0x1e8] sm:$0xff]
        %v6294 = vld [vmem:[#allocation3 + $0x1f0] sm:$0xff]
        %v6295 = vld [vmem:[#allocation3 + $0x1f8] sm:$0xff]
        %v6296 = vadd.f32 %v6232, %v6074
        %v6297 = vadd.f32 %v6233, %v6076
        %v6298 = vadd.f32 %v6234, %v6078
        %v6299 = vadd.f32 %v6235, %v6080
        %v6300 = vadd.f32 %v6236, %v6084
        %v6301 = vadd.f32 %v6237, %v6086
        %v6302 = vadd.f32 %v6238, %v6088
        %v6303 = vadd.f32 %v6239, %v6090
        %v6304 = vadd.f32 %v6240, %v6094
        %v6305 = vadd.f32 %v6241, %v6096
        %v6306 = vadd.f32 %v6242, %v6098
        %v6307 = vadd.f32 %v6243, %v6100
        %v6308 = vadd.f32 %v6244, %v6104
        %v6309 = vadd.f32 %v6245, %v6106
        %v6310 = vadd.f32 %v6246, %v6108
        %v6311 = vadd.f32 %v6247, %v6110
        %v6312 = vadd.f32 %v6248, %v6114
        %v6313 = vadd.f32 %v6249, %v6116
        %v6314 = vadd.f32 %v6250, %v6118
        %v6315 = vadd.f32 %v6251, %v6120
        %v6316 = vadd.f32 %v6252, %v6124
        %v6317 = vadd.f32 %v6253, %v6126
        %v6318 = vadd.f32 %v6254, %v6128
        %v6319 = vadd.f32 %v6255, %v6130
        %v6320 = vadd.f32 %v6256, %v6134
        %v6321 = vadd.f32 %v6257, %v6136
        %v6322 = vadd.f32 %v6258, %v6138
        %v6323 = vadd.f32 %v6259, %v6140
        %v6324 = vadd.f32 %v6260, %v6144
        %v6325 = vadd.f32 %v6261, %v6146
        %v6326 = vadd.f32 %v6262, %v6148
        %v6327 = vadd.f32 %v6263, %v6150
        %v6328 = vadd.f32 %v6264, %v6154
        %v6329 = vadd.f32 %v6265, %v6156
        %v6330 = vadd.f32 %v6266, %v6158
        %v6331 = vadd.f32 %v6267, %v6160
        %v6332 = vadd.f32 %v6268, %v6164
        %v6333 = vadd.f32 %v6269, %v6166
        %v6334 = vadd.f32 %v6270, %v6168
        %v6335 = vadd.f32 %v6271, %v6170
        %v6336 = vadd.f32 %v6272, %v6174
        %v6337 = vadd.f32 %v6273, %v6176
        %v6338 = vadd.f32 %v6274, %v6178
        %v6339 = vadd.f32 %v6275, %v6180
        %v6340 = vadd.f32 %v6276, %v6184
        %v6341 = vadd.f32 %v6277, %v6186
        %v6342 = vadd.f32 %v6278, %v6188
        %v6343 = vadd.f32 %v6279, %v6190
        %v6344 = vadd.f32 %v6280, %v6194
        %v6345 = vadd.f32 %v6281, %v6196
        %v6346 = vadd.f32 %v6282, %v6198
        %v6347 = vadd.f32 %v6283, %v6200
        %v6348 = vadd.f32 %v6284, %v6204
        %v6349 = vadd.f32 %v6285, %v6206
        %v6350 = vadd.f32 %v6286, %v6208
        %v6351 = vadd.f32 %v6287, %v6210
        %v6352 = vadd.f32 %v6288, %v6214
        %v6353 = vadd.f32 %v6289, %v6216
        %v6354 = vadd.f32 %v6290, %v6218
        %v6355 = vadd.f32 %v6291, %v6220
        %v6356 = vadd.f32 %v6292, %v6224
        %v6357 = vadd.f32 %v6293, %v6226
        %v6358 = vadd.f32 %v6294, %v6228
        %v6359 = vadd.f32 %v6295, %v6230
        %6360 = vst [vmem:[#allocation3] sm:$0xff] %v6296
        %6361 = vst [vmem:[#allocation3 + $0x8] sm:$0xff] %v6297
        %6362 = vst [vmem:[#allocation3 + $0x10] sm:$0xff] %v6298
        %6363 = vst [vmem:[#allocation3 + $0x18] sm:$0xff] %v6299
        %6364 = vst [vmem:[#allocation3 + $0x20] sm:$0xff] %v6300
        %6365 = vst [vmem:[#allocation3 + $0x28] sm:$0xff] %v6301
        %6366 = vst [vmem:[#allocation3 + $0x30] sm:$0xff] %v6302
        %6367 = vst [vmem:[#allocation3 + $0x38] sm:$0xff] %v6303
        %6368 = vst [vmem:[#allocation3 + $0x40] sm:$0xff] %v6304
        %6369 = vst [vmem:[#allocation3 + $0x48] sm:$0xff] %v6305
        %6370 = vst [vmem:[#allocation3 + $0x50] sm:$0xff] %v6306
        %6371 = vst [vmem:[#allocation3 + $0x58] sm:$0xff] %v6307
        %6372 = vst [vmem:[#allocation3 + $0x60] sm:$0xff] %v6308
        %6373 = vst [vmem:[#allocation3 + $0x68] sm:$0xff] %v6309
        %6374 = vst [vmem:[#allocation3 + $0x70] sm:$0xff] %v6310
        %6375 = vst [vmem:[#allocation3 + $0x78] sm:$0xff] %v6311
        %6376 = vst [vmem:[#allocation3 + $0x80] sm:$0xff] %v6312
        %6377 = vst [vmem:[#allocation3 + $0x88] sm:$0xff] %v6313
        %6378 = vst [vmem:[#allocation3 + $0x90] sm:$0xff] %v6314
        %6379 = vst [vmem:[#allocation3 + $0x98] sm:$0xff] %v6315
        %6380 = vst [vmem:[#allocation3 + $0xa0] sm:$0xff] %v6316
        %6381 = vst [vmem:[#allocation3 + $0xa8] sm:$0xff] %v6317
        %6382 = vst [vmem:[#allocation3 + $0xb0] sm:$0xff] %v6318
        %6383 = vst [vmem:[#allocation3 + $0xb8] sm:$0xff] %v6319
        %6384 = vst [vmem:[#allocation3 + $0xc0] sm:$0xff] %v6320
        %6385 = vst [vmem:[#allocation3 + $0xc8] sm:$0xff] %v6321
        %6386 = vst [vmem:[#allocation3 + $0xd0] sm:$0xff] %v6322
        %6387 = vst [vmem:[#allocation3 + $0xd8] sm:$0xff] %v6323
        %6388 = vst [vmem:[#allocation3 + $0xe0] sm:$0xff] %v6324
        %6389 = vst [vmem:[#allocation3 + $0xe8] sm:$0xff] %v6325
        %6390 = vst [vmem:[#allocation3 + $0xf0] sm:$0xff] %v6326
        %6391 = vst [vmem:[#allocation3 + $0xf8] sm:$0xff] %v6327
        %6392 = vst [vmem:[#allocation3 + $0x100] sm:$0xff] %v6328
        %6393 = vst [vmem:[#allocation3 + $0x108] sm:$0xff] %v6329
        %6394 = vst [vmem:[#allocation3 + $0x110] sm:$0xff] %v6330
        %6395 = vst [vmem:[#allocation3 + $0x118] sm:$0xff] %v6331
        %6396 = vst [vmem:[#allocation3 + $0x120] sm:$0xff] %v6332
        %6397 = vst [vmem:[#allocation3 + $0x128] sm:$0xff] %v6333
        %6398 = vst [vmem:[#allocation3 + $0x130] sm:$0xff] %v6334
        %6399 = vst [vmem:[#allocation3 + $0x138] sm:$0xff] %v6335
        %6400 = vst [vmem:[#allocation3 + $0x140] sm:$0xff] %v6336
        %6401 = vst [vmem:[#allocation3 + $0x148] sm:$0xff] %v6337
        %6402 = vst [vmem:[#allocation3 + $0x150] sm:$0xff] %v6338
        %6403 = vst [vmem:[#allocation3 + $0x158] sm:$0xff] %v6339
        %6404 = vst [vmem:[#allocation3 + $0x160] sm:$0xff] %v6340
        %6405 = vst [vmem:[#allocation3 + $0x168] sm:$0xff] %v6341
        %6406 = vst [vmem:[#allocation3 + $0x170] sm:$0xff] %v6342
        %6407 = vst [vmem:[#allocation3 + $0x178] sm:$0xff] %v6343
        %6408 = vst [vmem:[#allocation3 + $0x180] sm:$0xff] %v6344
        %6409 = vst [vmem:[#allocation3 + $0x188] sm:$0xff] %v6345
        %6410 = vst [vmem:[#allocation3 + $0x190] sm:$0xff] %v6346
        %6411 = vst [vmem:[#allocation3 + $0x198] sm:$0xff] %v6347
        %6412 = vst [vmem:[#allocation3 + $0x1a0] sm:$0xff] %v6348
        %6413 = vst [vmem:[#allocation3 + $0x1a8] sm:$0xff] %v6349
        %6414 = vst [vmem:[#allocation3 + $0x1b0] sm:$0xff] %v6350
        %6415 = vst [vmem:[#allocation3 + $0x1b8] sm:$0xff] %v6351
        %6416 = vst [vmem:[#allocation3 + $0x1c0] sm:$0xff] %v6352
        %6417 = vst [vmem:[#allocation3 + $0x1c8] sm:$0xff] %v6353
        %6418 = vst [vmem:[#allocation3 + $0x1d0] sm:$0xff] %v6354
        %6419 = vst [vmem:[#allocation3 + $0x1d8] sm:$0xff] %v6355
        %6420 = vst [vmem:[#allocation3 + $0x1e0] sm:$0xff] %v6356
        %6421 = vst [vmem:[#allocation3 + $0x1e8] sm:$0xff] %v6357
        %6422 = vst [vmem:[#allocation3 + $0x1f0] sm:$0xff] %v6358
        %6423 = vst [vmem:[#allocation3 + $0x1f8] sm:$0xff] %v6359
        %v6424 = vld [vmem:[#allocation3] sm:$0xff]
        %v6425 = vld [vmem:[#allocation3 + $0x8] sm:$0xff]
        %v6426 = vld [vmem:[#allocation3 + $0x10] sm:$0xff]
        %v6427 = vld [vmem:[#allocation3 + $0x18] sm:$0xff]
        %v6428 = vld [vmem:[#allocation3 + $0x20] sm:$0xff]
        %v6429 = vld [vmem:[#allocation3 + $0x28] sm:$0xff]
        %v6430 = vld [vmem:[#allocation3 + $0x30] sm:$0xff]
        %v6431 = vld [vmem:[#allocation3 + $0x38] sm:$0xff]
        %v6432 = vld [vmem:[#allocation3 + $0x40] sm:$0xff]
        %v6433 = vld [vmem:[#allocation3 + $0x48] sm:$0xff]
        %v6434 = vld [vmem:[#allocation3 + $0x50] sm:$0xff]
        %v6435 = vld [vmem:[#allocation3 + $0x58] sm:$0xff]
        %v6436 = vld [vmem:[#allocation3 + $0x60] sm:$0xff]
        %v6437 = vld [vmem:[#allocation3 + $0x68] sm:$0xff]
        %v6438 = vld [vmem:[#allocation3 + $0x70] sm:$0xff]
        %v6439 = vld [vmem:[#allocation3 + $0x78] sm:$0xff]
        %v6440 = vld [vmem:[#allocation3 + $0x80] sm:$0xff]
        %v6441 = vld [vmem:[#allocation3 + $0x88] sm:$0xff]
        %v6442 = vld [vmem:[#allocation3 + $0x90] sm:$0xff]
        %v6443 = vld [vmem:[#allocation3 + $0x98] sm:$0xff]
        %v6444 = vld [vmem:[#allocation3 + $0xa0] sm:$0xff]
        %v6445 = vld [vmem:[#allocation3 + $0xa8] sm:$0xff]
        %v6446 = vld [vmem:[#allocation3 + $0xb0] sm:$0xff]
        %v6447 = vld [vmem:[#allocation3 + $0xb8] sm:$0xff]
        %v6448 = vld [vmem:[#allocation3 + $0xc0] sm:$0xff]
        %v6449 = vld [vmem:[#allocation3 + $0xc8] sm:$0xff]
        %v6450 = vld [vmem:[#allocation3 + $0xd0] sm:$0xff]
        %v6451 = vld [vmem:[#allocation3 + $0xd8] sm:$0xff]
        %v6452 = vld [vmem:[#allocation3 + $0xe0] sm:$0xff]
        %v6453 = vld [vmem:[#allocation3 + $0xe8] sm:$0xff]
        %v6454 = vld [vmem:[#allocation3 + $0xf0] sm:$0xff]
        %v6455 = vld [vmem:[#allocation3 + $0xf8] sm:$0xff]
        %v6456 = vld [vmem:[#allocation3 + $0x100] sm:$0xff]
        %v6457 = vld [vmem:[#allocation3 + $0x108] sm:$0xff]
        %v6458 = vld [vmem:[#allocation3 + $0x110] sm:$0xff]
        %v6459 = vld [vmem:[#allocation3 + $0x118] sm:$0xff]
        %v6460 = vld [vmem:[#allocation3 + $0x120] sm:$0xff]
        %v6461 = vld [vmem:[#allocation3 + $0x128] sm:$0xff]
        %v6462 = vld [vmem:[#allocation3 + $0x130] sm:$0xff]
        %v6463 = vld [vmem:[#allocation3 + $0x138] sm:$0xff]
        %v6464 = vld [vmem:[#allocation3 + $0x140] sm:$0xff]
        %v6465 = vld [vmem:[#allocation3 + $0x148] sm:$0xff]
        %v6466 = vld [vmem:[#allocation3 + $0x150] sm:$0xff]
        %v6467 = vld [vmem:[#allocation3 + $0x158] sm:$0xff]
        %v6468 = vld [vmem:[#allocation3 + $0x160] sm:$0xff]
        %v6469 = vld [vmem:[#allocation3 + $0x168] sm:$0xff]
        %v6470 = vld [vmem:[#allocation3 + $0x170] sm:$0xff]
        %v6471 = vld [vmem:[#allocation3 + $0x178] sm:$0xff]
        %v6472 = vld [vmem:[#allocation3 + $0x180] sm:$0xff]
        %v6473 = vld [vmem:[#allocation3 + $0x188] sm:$0xff]
        %v6474 = vld [vmem:[#allocation3 + $0x190] sm:$0xff]
        %v6475 = vld [vmem:[#allocation3 + $0x198] sm:$0xff]
        %v6476 = vld [vmem:[#allocation3 + $0x1a0] sm:$0xff]
        %v6477 = vld [vmem:[#allocation3 + $0x1a8] sm:$0xff]
        %v6478 = vld [vmem:[#allocation3 + $0x1b0] sm:$0xff]
        %v6479 = vld [vmem:[#allocation3 + $0x1b8] sm:$0xff]
        %v6480 = vld [vmem:[#allocation3 + $0x1c0] sm:$0xff]
        %v6481 = vld [vmem:[#allocation3 + $0x1c8] sm:$0xff]
        %v6482 = vld [vmem:[#allocation3 + $0x1d0] sm:$0xff]
        %v6483 = vld [vmem:[#allocation3 + $0x1d8] sm:$0xff]
        %v6484 = vld [vmem:[#allocation3 + $0x1e0] sm:$0xff]
        %v6485 = vld [vmem:[#allocation3 + $0x1e8] sm:$0xff]
        %v6486 = vld [vmem:[#allocation3 + $0x1f0] sm:$0xff]
        %v6487 = vld [vmem:[#allocation3 + $0x1f8] sm:$0xff]
        %v6489 = vlaneseq
        %v6490 = vshrl.u32 %v6489, 7
        %v6491 = vsub.s32 0, %v6490
        %v6492 = vrot.slane %v1021, %v6491
        %v6493 = vlaneseq
        %v6494 = vshrl.u32 %v6493, 7
        %v6495 = vsub.s32 1, %v6494
        %v6496 = vrot.slane %v1021, %v6495
        %v6499 = vmul.f32 %v6424, %v6492
        %v6500 = vmul.f32 %v6425, %v6496
        %v6501 = vmul.f32 %v6426, %v6492
        %v6502 = vmul.f32 %v6427, %v6496
        %v6503 = vmul.f32 %v6428, %v6492
        %v6504 = vmul.f32 %v6429, %v6496
        %v6505 = vmul.f32 %v6430, %v6492
        %v6506 = vmul.f32 %v6431, %v6496
        %v6507 = vmul.f32 %v6432, %v6492
        %v6508 = vmul.f32 %v6433, %v6496
        %v6509 = vmul.f32 %v6434, %v6492
        %v6510 = vmul.f32 %v6435, %v6496
        %v6511 = vmul.f32 %v6436, %v6492
        %v6512 = vmul.f32 %v6437, %v6496
        %v6513 = vmul.f32 %v6438, %v6492
        %v6514 = vmul.f32 %v6439, %v6496
        %v6515 = vmul.f32 %v6440, %v6492
        %v6516 = vmul.f32 %v6441, %v6496
        %v6517 = vmul.f32 %v6442, %v6492
        %v6518 = vmul.f32 %v6443, %v6496
        %v6519 = vmul.f32 %v6444, %v6492
        %v6520 = vmul.f32 %v6445, %v6496
        %v6521 = vmul.f32 %v6446, %v6492
        %v6522 = vmul.f32 %v6447, %v6496
        %v6523 = vmul.f32 %v6448, %v6492
        %v6524 = vmul.f32 %v6449, %v6496
        %v6525 = vmul.f32 %v6450, %v6492
        %v6526 = vmul.f32 %v6451, %v6496
        %v6527 = vmul.f32 %v6452, %v6492
        %v6528 = vmul.f32 %v6453, %v6496
        %v6529 = vmul.f32 %v6454, %v6492
        %v6530 = vmul.f32 %v6455, %v6496
        %v6531 = vmul.f32 %v6456, %v6492
        %v6532 = vmul.f32 %v6457, %v6496
        %v6533 = vmul.f32 %v6458, %v6492
        %v6534 = vmul.f32 %v6459, %v6496
        %v6535 = vmul.f32 %v6460, %v6492
        %v6536 = vmul.f32 %v6461, %v6496
        %v6537 = vmul.f32 %v6462, %v6492
        %v6538 = vmul.f32 %v6463, %v6496
        %v6539 = vmul.f32 %v6464, %v6492
        %v6540 = vmul.f32 %v6465, %v6496
        %v6541 = vmul.f32 %v6466, %v6492
        %v6542 = vmul.f32 %v6467, %v6496
        %v6543 = vmul.f32 %v6468, %v6492
        %v6544 = vmul.f32 %v6469, %v6496
        %v6545 = vmul.f32 %v6470, %v6492
        %v6546 = vmul.f32 %v6471, %v6496
        %v6547 = vmul.f32 %v6472, %v6492
        %v6548 = vmul.f32 %v6473, %v6496
        %v6549 = vmul.f32 %v6474, %v6492
        %v6550 = vmul.f32 %v6475, %v6496
        %v6551 = vmul.f32 %v6476, %v6492
        %v6552 = vmul.f32 %v6477, %v6496
        %v6553 = vmul.f32 %v6478, %v6492
        %v6554 = vmul.f32 %v6479, %v6496
        %v6555 = vmul.f32 %v6480, %v6492
        %v6556 = vmul.f32 %v6481, %v6496
        %v6557 = vmul.f32 %v6482, %v6492
        %v6558 = vmul.f32 %v6483, %v6496
        %v6559 = vmul.f32 %v6484, %v6492
        %v6560 = vmul.f32 %v6485, %v6496
        %v6561 = vmul.f32 %v6486, %v6492
        %v6562 = vmul.f32 %v6487, %v6496
        %v6564 = vlaneseq
        %v6565 = vshrl.u32 %v6564, 7
        %v6566 = vsub.s32 0, %v6565
        %v6567 = vrot.slane %v1022, %v6566
        %v6568 = vlaneseq
        %v6569 = vshrl.u32 %v6568, 7
        %v6570 = vsub.s32 1, %v6569
        %v6571 = vrot.slane %v1022, %v6570
        %v6574 = vadd.f32 %v6499, %v6567
        %v6575 = vadd.f32 %v6500, %v6571
        %v6576 = vadd.f32 %v6501, %v6567
        %v6577 = vadd.f32 %v6502, %v6571
        %v6578 = vadd.f32 %v6503, %v6567
        %v6579 = vadd.f32 %v6504, %v6571
        %v6580 = vadd.f32 %v6505, %v6567
        %v6581 = vadd.f32 %v6506, %v6571
        %v6582 = vadd.f32 %v6507, %v6567
        %v6583 = vadd.f32 %v6508, %v6571
        %v6584 = vadd.f32 %v6509, %v6567
        %v6585 = vadd.f32 %v6510, %v6571
        %v6586 = vadd.f32 %v6511, %v6567
        %v6587 = vadd.f32 %v6512, %v6571
        %v6588 = vadd.f32 %v6513, %v6567
        %v6589 = vadd.f32 %v6514, %v6571
        %v6590 = vadd.f32 %v6515, %v6567
        %v6591 = vadd.f32 %v6516, %v6571
        %v6592 = vadd.f32 %v6517, %v6567
        %v6593 = vadd.f32 %v6518, %v6571
        %v6594 = vadd.f32 %v6519, %v6567
        %v6595 = vadd.f32 %v6520, %v6571
        %v6596 = vadd.f32 %v6521, %v6567
        %v6597 = vadd.f32 %v6522, %v6571
        %v6598 = vadd.f32 %v6523, %v6567
        %v6599 = vadd.f32 %v6524, %v6571
        %v6600 = vadd.f32 %v6525, %v6567
        %v6601 = vadd.f32 %v6526, %v6571
        %v6602 = vadd.f32 %v6527, %v6567
        %v6603 = vadd.f32 %v6528, %v6571
        %v6604 = vadd.f32 %v6529, %v6567
        %v6605 = vadd.f32 %v6530, %v6571
        %v6606 = vadd.f32 %v6531, %v6567
        %v6607 = vadd.f32 %v6532, %v6571
        %v6608 = vadd.f32 %v6533, %v6567
        %v6609 = vadd.f32 %v6534, %v6571
        %v6610 = vadd.f32 %v6535, %v6567
        %v6611 = vadd.f32 %v6536, %v6571
        %v6612 = vadd.f32 %v6537, %v6567
        %v6613 = vadd.f32 %v6538, %v6571
        %v6614 = vadd.f32 %v6539, %v6567
        %v6615 = vadd.f32 %v6540, %v6571
        %v6616 = vadd.f32 %v6541, %v6567
        %v6617 = vadd.f32 %v6542, %v6571
        %v6618 = vadd.f32 %v6543, %v6567
        %v6619 = vadd.f32 %v6544, %v6571
        %v6620 = vadd.f32 %v6545, %v6567
        %v6621 = vadd.f32 %v6546, %v6571
        %v6622 = vadd.f32 %v6547, %v6567
        %v6623 = vadd.f32 %v6548, %v6571
        %v6624 = vadd.f32 %v6549, %v6567
        %v6625 = vadd.f32 %v6550, %v6571
        %v6626 = vadd.f32 %v6551, %v6567
        %v6627 = vadd.f32 %v6552, %v6571
        %v6628 = vadd.f32 %v6553, %v6567
        %v6629 = vadd.f32 %v6554, %v6571
        %v6630 = vadd.f32 %v6555, %v6567
        %v6631 = vadd.f32 %v6556, %v6571
        %v6632 = vadd.f32 %v6557, %v6567
        %v6633 = vadd.f32 %v6558, %v6571
        %v6634 = vadd.f32 %v6559, %v6567
        %v6635 = vadd.f32 %v6560, %v6571
        %v6636 = vadd.f32 %v6561, %v6567
        %v6637 = vadd.f32 %v6562, %v6571
        %v6638 = vmax.f32 %v6574, 0.0
        %v6639 = vmax.f32 %v6575, 0.0
        %v6640 = vmax.f32 %v6576, 0.0
        %v6641 = vmax.f32 %v6577, 0.0
        %v6642 = vmax.f32 %v6578, 0.0
        %v6643 = vmax.f32 %v6579, 0.0
        %v6644 = vmax.f32 %v6580, 0.0
        %v6645 = vmax.f32 %v6581, 0.0
        %v6646 = vmax.f32 %v6582, 0.0
        %v6647 = vmax.f32 %v6583, 0.0
        %v6648 = vmax.f32 %v6584, 0.0
        %v6649 = vmax.f32 %v6585, 0.0
        %v6650 = vmax.f32 %v6586, 0.0
        %v6651 = vmax.f32 %v6587, 0.0
        %v6652 = vmax.f32 %v6588, 0.0
        %v6653 = vmax.f32 %v6589, 0.0
        %v6654 = vmax.f32 %v6590, 0.0
        %v6655 = vmax.f32 %v6591, 0.0
        %v6656 = vmax.f32 %v6592, 0.0
        %v6657 = vmax.f32 %v6593, 0.0
        %v6658 = vmax.f32 %v6594, 0.0
        %v6659 = vmax.f32 %v6595, 0.0
        %v6660 = vmax.f32 %v6596, 0.0
        %v6661 = vmax.f32 %v6597, 0.0
        %v6662 = vmax.f32 %v6598, 0.0
        %v6663 = vmax.f32 %v6599, 0.0
        %v6664 = vmax.f32 %v6600, 0.0
        %v6665 = vmax.f32 %v6601, 0.0
        %v6666 = vmax.f32 %v6602, 0.0
        %v6667 = vmax.f32 %v6603, 0.0
        %v6668 = vmax.f32 %v6604, 0.0
        %v6669 = vmax.f32 %v6605, 0.0
        %v6670 = vmax.f32 %v6606, 0.0
        %v6671 = vmax.f32 %v6607, 0.0
        %v6672 = vmax.f32 %v6608, 0.0
        %v6673 = vmax.f32 %v6609, 0.0
        %v6674 = vmax.f32 %v6610, 0.0
        %v6675 = vmax.f32 %v6611, 0.0
        %v6676 = vmax.f32 %v6612, 0.0
        %v6677 = vmax.f32 %v6613, 0.0
        %v6678 = vmax.f32 %v6614, 0.0
        %v6679 = vmax.f32 %v6615, 0.0
        %v6680 = vmax.f32 %v6616, 0.0
        %v6681 = vmax.f32 %v6617, 0.0
        %v6682 = vmax.f32 %v6618, 0.0
        %v6683 = vmax.f32 %v6619, 0.0
        %v6684 = vmax.f32 %v6620, 0.0
        %v6685 = vmax.f32 %v6621, 0.0
        %v6686 = vmax.f32 %v6622, 0.0
        %v6687 = vmax.f32 %v6623, 0.0
        %v6688 = vmax.f32 %v6624, 0.0
        %v6689 = vmax.f32 %v6625, 0.0
        %v6690 = vmax.f32 %v6626, 0.0
        %v6691 = vmax.f32 %v6627, 0.0
        %v6692 = vmax.f32 %v6628, 0.0
        %v6693 = vmax.f32 %v6629, 0.0
        %v6694 = vmax.f32 %v6630, 0.0
        %v6695 = vmax.f32 %v6631, 0.0
        %v6696 = vmax.f32 %v6632, 0.0
        %v6697 = vmax.f32 %v6633, 0.0
        %v6698 = vmax.f32 %v6634, 0.0
        %v6699 = vmax.f32 %v6635, 0.0
        %v6700 = vmax.f32 %v6636, 0.0
        %v6701 = vmax.f32 %v6637, 0.0
        %v6702 = vpack.c.bf16 %v6640, %v6638
        %v6703 = vpack.c.bf16 %v6641, %v6639
        %v6704 = vpack.c.bf16 %v6644, %v6642
        %v6705 = vpack.c.bf16 %v6645, %v6643
        %v6706 = vpack.c.bf16 %v6648, %v6646
        %v6707 = vpack.c.bf16 %v6649, %v6647
        %v6708 = vpack.c.bf16 %v6652, %v6650
        %v6709 = vpack.c.bf16 %v6653, %v6651
        %v6710 = vpack.c.bf16 %v6656, %v6654
        %v6711 = vpack.c.bf16 %v6657, %v6655
        %v6712 = vpack.c.bf16 %v6660, %v6658
        %v6713 = vpack.c.bf16 %v6661, %v6659
        %v6714 = vpack.c.bf16 %v6664, %v6662
        %v6715 = vpack.c.bf16 %v6665, %v6663
        %v6716 = vpack.c.bf16 %v6668, %v6666
        %v6717 = vpack.c.bf16 %v6669, %v6667
        %v6718 = vpack.c.bf16 %v6672, %v6670
        %v6719 = vpack.c.bf16 %v6673, %v6671
        %v6720 = vpack.c.bf16 %v6676, %v6674
        %v6721 = vpack.c.bf16 %v6677, %v6675
        %v6722 = vpack.c.bf16 %v6680, %v6678
        %v6723 = vpack.c.bf16 %v6681, %v6679
        %v6724 = vpack.c.bf16 %v6684, %v6682
        %v6725 = vpack.c.bf16 %v6685, %v6683
        %v6726 = vpack.c.bf16 %v6688, %v6686
        %v6727 = vpack.c.bf16 %v6689, %v6687
        %v6728 = vpack.c.bf16 %v6692, %v6690
        %v6729 = vpack.c.bf16 %v6693, %v6691
        %v6730 = vpack.c.bf16 %v6696, %v6694
        %v6731 = vpack.c.bf16 %v6697, %v6695
        %v6732 = vpack.c.bf16 %v6700, %v6698
        %v6733 = vpack.c.bf16 %v6701, %v6699
        %v6766 = vunpack.c.l.b16 %v6702
        %v6767 = vunpack.c.l.b16 %v6703
        %v6768 = vunpack.c.h.b16 %v6702
        %v6769 = vunpack.c.h.b16 %v6703
        %v6770 = vunpack.c.l.b16 %v6704
        %v6771 = vunpack.c.l.b16 %v6705
        %v6772 = vunpack.c.h.b16 %v6704
        %v6773 = vunpack.c.h.b16 %v6705
        %v6774 = vunpack.c.l.b16 %v6706
        %v6775 = vunpack.c.l.b16 %v6707
        %v6776 = vunpack.c.h.b16 %v6706
        %v6777 = vunpack.c.h.b16 %v6707
        %v6778 = vunpack.c.l.b16 %v6708
        %v6779 = vunpack.c.l.b16 %v6709
        %v6780 = vunpack.c.h.b16 %v6708
        %v6781 = vunpack.c.h.b16 %v6709
        %v6782 = vunpack.c.l.b16 %v6710
        %v6783 = vunpack.c.l.b16 %v6711
        %v6784 = vunpack.c.h.b16 %v6710
        %v6785 = vunpack.c.h.b16 %v6711
        %v6786 = vunpack.c.l.b16 %v6712
        %v6787 = vunpack.c.l.b16 %v6713
        %v6788 = vunpack.c.h.b16 %v6712
        %v6789 = vunpack.c.h.b16 %v6713
        %v6790 = vunpack.c.l.b16 %v6714
        %v6791 = vunpack.c.l.b16 %v6715
        %v6792 = vunpack.c.h.b16 %v6714
        %v6793 = vunpack.c.h.b16 %v6715
        %v6794 = vunpack.c.l.b16 %v6716
        %v6795 = vunpack.c.l.b16 %v6717
        %v6796 = vunpack.c.h.b16 %v6716
        %v6797 = vunpack.c.h.b16 %v6717
        %v6798 = vunpack.c.l.b16 %v6718
        %v6799 = vunpack.c.l.b16 %v6719
        %v6800 = vunpack.c.h.b16 %v6718
        %v6801 = vunpack.c.h.b16 %v6719
        %v6802 = vunpack.c.l.b16 %v6720
        %v6803 = vunpack.c.l.b16 %v6721
        %v6804 = vunpack.c.h.b16 %v6720
        %v6805 = vunpack.c.h.b16 %v6721
        %v6806 = vunpack.c.l.b16 %v6722
        %v6807 = vunpack.c.l.b16 %v6723
        %v6808 = vunpack.c.h.b16 %v6722
        %v6809 = vunpack.c.h.b16 %v6723
        %v6810 = vunpack.c.l.b16 %v6724
        %v6811 = vunpack.c.l.b16 %v6725
        %v6812 = vunpack.c.h.b16 %v6724
        %v6813 = vunpack.c.h.b16 %v6725
        %v6814 = vunpack.c.l.b16 %v6726
        %v6815 = vunpack.c.l.b16 %v6727
        %v6816 = vunpack.c.h.b16 %v6726
        %v6817 = vunpack.c.h.b16 %v6727
        %v6818 = vunpack.c.l.b16 %v6728
        %v6819 = vunpack.c.l.b16 %v6729
        %v6820 = vunpack.c.h.b16 %v6728
        %v6821 = vunpack.c.h.b16 %v6729
        %v6822 = vunpack.c.l.b16 %v6730
        %v6823 = vunpack.c.l.b16 %v6731
        %v6824 = vunpack.c.h.b16 %v6730
        %v6825 = vunpack.c.h.b16 %v6731
        %v6826 = vunpack.c.l.b16 %v6732
        %v6827 = vunpack.c.l.b16 %v6733
        %v6828 = vunpack.c.h.b16 %v6732
        %v6829 = vunpack.c.h.b16 %v6733
        %v6830 = vpack.c.b16 %v6767, %v6766
        %v6831 = vpack.c.b16 %v6769, %v6768
        %v6832 = vpack.c.b16 %v6771, %v6770
        %v6833 = vpack.c.b16 %v6773, %v6772
        %v6834 = vpack.c.b16 %v6775, %v6774
        %v6835 = vpack.c.b16 %v6777, %v6776
        %v6836 = vpack.c.b16 %v6779, %v6778
        %v6837 = vpack.c.b16 %v6781, %v6780
        %v6838 = vpack.c.b16 %v6783, %v6782
        %v6839 = vpack.c.b16 %v6785, %v6784
        %v6840 = vpack.c.b16 %v6787, %v6786
        %v6841 = vpack.c.b16 %v6789, %v6788
        %v6842 = vpack.c.b16 %v6791, %v6790
        %v6843 = vpack.c.b16 %v6793, %v6792
        %v6844 = vpack.c.b16 %v6795, %v6794
        %v6845 = vpack.c.b16 %v6797, %v6796
        %v6846 = vpack.c.b16 %v6799, %v6798
        %v6847 = vpack.c.b16 %v6801, %v6800
        %v6848 = vpack.c.b16 %v6803, %v6802
        %v6849 = vpack.c.b16 %v6805, %v6804
        %v6850 = vpack.c.b16 %v6807, %v6806
        %v6851 = vpack.c.b16 %v6809, %v6808
        %v6852 = vpack.c.b16 %v6811, %v6810
        %v6853 = vpack.c.b16 %v6813, %v6812
        %v6854 = vpack.c.b16 %v6815, %v6814
        %v6855 = vpack.c.b16 %v6817, %v6816
        %v6856 = vpack.c.b16 %v6819, %v6818
        %v6857 = vpack.c.b16 %v6821, %v6820
        %v6858 = vpack.c.b16 %v6823, %v6822
        %v6859 = vpack.c.b16 %v6825, %v6824
        %v6860 = vpack.c.b16 %v6827, %v6826
        %v6861 = vpack.c.b16 %v6829, %v6828
        %6894 = vst [vmem:[%s271] sm:$0xff] %v6830
        %6895 = vst [vmem:[%s271 + $0x8] sm:$0xff] %v6831
        %6896 = vst [vmem:[%s271 + $0x10] sm:$0xff] %v6832
        %6897 = vst [vmem:[%s271 + $0x18] sm:$0xff] %v6833
        %6898 = vst [vmem:[%s271 + $0x20] sm:$0xff] %v6834
        %6899 = vst [vmem:[%s271 + $0x28] sm:$0xff] %v6835
        %6900 = vst [vmem:[%s271 + $0x30] sm:$0xff] %v6836
        %6901 = vst [vmem:[%s271 + $0x38] sm:$0xff] %v6837
        %6902 = vst [vmem:[%s271 + $0x40] sm:$0xff] %v6838
        %6903 = vst [vmem:[%s271 + $0x48] sm:$0xff] %v6839
        %6904 = vst [vmem:[%s271 + $0x50] sm:$0xff] %v6840
        %6905 = vst [vmem:[%s271 + $0x58] sm:$0xff] %v6841
        %6906 = vst [vmem:[%s271 + $0x60] sm:$0xff] %v6842
        %6907 = vst [vmem:[%s271 + $0x68] sm:$0xff] %v6843
        %6908 = vst [vmem:[%s271 + $0x70] sm:$0xff] %v6844
        %6909 = vst [vmem:[%s271 + $0x78] sm:$0xff] %v6845
        %6910 = vst [vmem:[%s271 + $0x80] sm:$0xff] %v6846
        %6911 = vst [vmem:[%s271 + $0x88] sm:$0xff] %v6847
        %6912 = vst [vmem:[%s271 + $0x90] sm:$0xff] %v6848
        %6913 = vst [vmem:[%s271 + $0x98] sm:$0xff] %v6849
        %6914 = vst [vmem:[%s271 + $0xa0] sm:$0xff] %v6850
        %6915 = vst [vmem:[%s271 + $0xa8] sm:$0xff] %v6851
        %6916 = vst [vmem:[%s271 + $0xb0] sm:$0xff] %v6852
        %6917 = vst [vmem:[%s271 + $0xb8] sm:$0xff] %v6853
        %6918 = vst [vmem:[%s271 + $0xc0] sm:$0xff] %v6854
        %6919 = vst [vmem:[%s271 + $0xc8] sm:$0xff] %v6855
        %6920 = vst [vmem:[%s271 + $0xd0] sm:$0xff] %v6856
        %6921 = vst [vmem:[%s271 + $0xd8] sm:$0xff] %v6857
        %6922 = vst [vmem:[%s271 + $0xe0] sm:$0xff] %v6858
        %6923 = vst [vmem:[%s271 + $0xe8] sm:$0xff] %v6859
        %6924 = vst [vmem:[%s271 + $0xf0] sm:$0xff] %v6860
        %6925 = vst [vmem:[%s271 + $0xf8] sm:$0xff] %v6861
        %s6926 = sand.u32 %s181, 1
        %s6927 = scalar_lea.sflag [#allocation5], %s6926
        %s6928 = sand.u32 %s181, 1
        %s6929 = smul.addr %s6928, 256
        %s6930 = scalar_lea.vmem [#allocation4], %s6929
        // Predicated region
        $region49: #{double_conv_pallas.1} parent=47 // pred_check
          %p6931 = pneg %p191
        $region50: #{double_conv_pallas.1} parent=47 // pred_check_branch
          %6933 = sbr.rel (%p6931) target = $region52
        $region51: #{double_conv_pallas.1} parent=47 // pred_region
          %s6935 = ssub.s32 4096, 4096
          %6936 = vsyncadd %s6927, %s6935
          %s6937 = smul.addr %s21, 64
          %s6938 = smul.addr %s6937, 64
          %s6939 = scalar_lea.hbm %s7, %s6938
          %s6940 = sshll.u32 %s6930, 4
          %s6941 = int_to_ptr.vmem [resolvable:$true] %s6940
          %6946 = dma.vmem_to_hbm [thread:$0]  %s6941, 4096, %s6939, %s6927, 128, 128, 8
        $region52: #{double_conv_pallas.1} parent=47 // pred_fallthru
          _
      $region48: #{double_conv_pallas.1} parent=5 // pred_fallthru
        _
      %p6947 = scmp.le.s32.totalorder 2, %s16
      // Predicated region
      $region53: #{double_conv_pallas.1} parent=5 // pred_check
        %p6948 = pneg %p6947
      $region54: #{double_conv_pallas.1} parent=5 // pred_check_branch
        %6950 = sbr.rel (%p6948) target = $region56
      $region55: #{double_conv_pallas.1} parent=5 // pred_region
        %s6951 = ssub.s32 %s16, 2
        // Predicated region
        $region57: #{double_conv_pallas.1} parent=55 // pred_check
          %p6952 = pneg %p197
        $region58: #{double_conv_pallas.1} parent=55 // pred_check_branch
          %6954 = sbr.rel (%p6952) target = $region60
        $region59: #{double_conv_pallas.1} parent=55 // pred_region
          %s6955 = sand.u32 %s182, 1
          %s6956 = scalar_lea.sflag [#allocation5], %s6955
          %s6957 = sand.u32 %s182, 1
          %s6958 = smul.addr %s6957, 256
          %s6959 = scalar_lea.vmem [#allocation4], %s6958
          %6960 = dma.done %s6956, 4096
        $region60: #{double_conv_pallas.1} parent=55 // pred_fallthru
          _
      $region56: #{double_conv_pallas.1} parent=5 // pred_fallthru
        _
    $region6: #{double_conv_pallas.1} parent=1 // loop_footer
      %s20 = sadd.s32 1, %s16
    $region7: #{double_conv_pallas.1} parent=1 // loop_footer_branch
      %15 = sbr.rel target = $region3
    $region8: #{double_conv_pallas.1} parent=1 // loop_exit
      _
    %6961 = vsyncpa [#allocation5], 1
    %s6962 = scalar_lea.sflag [#allocation5], 1
    %6963 = vsyncpa %s6962, 1

</llo_original>
